<compile_context>
chip_gen: v7x
topology: tpu7x:2x2x1
jax: 0.10.0
libtpu: 0.0.40
codegen_flags: <defaults>
</compile_context>

<pallas_src>
import functools

import jax
import jax.numpy as jnp
from jax.experimental import pallas as pl
from jax.experimental.pallas import tpu as pltpu


def _round_up(x, m):
    return ((x + m - 1) // m) * m


# ----------------------------------------------------------------------------
# Fused kernel
# ----------------------------------------------------------------------------
def _make_fused_lstm_kernel(T, B_pad, H, num_layers, ndir, n_seq):
    G = 4 * H          # gate width per direction
    GW = ndir * G      # packed gate width (8H when bidirectional)
    HW = ndir * H      # packed hidden width (2H when bidirectional)

    def gates(g):
        """g: (B_pad, 4H) pre-activations -> (i, f, g~, o).
        One full-width sigmoid (single EUP pass over the 128-lane vreg),
        i/f/o sliced from it; one tanh on the g slice."""
        sig = jax.nn.sigmoid(g)
        i_g = sig[:, 0 * H:1 * H]
        f_g = sig[:, 1 * H:2 * H]
        o_g = sig[:, 3 * H:4 * H]
        g_g = jnp.tanh(g[:, 2 * H:3 * H])
        return i_g, f_g, g_g, o_g

    def kernel(*refs):
        # ---- unpack refs (inputs..., output, scratch...) --------------------
        idx = 0
        x_ref = refs[idx]; idx += 1                       # (T*B_pad, D) time-major
        layer_refs = []
        for _ in range(num_layers):
            layer_refs.append((refs[idx], refs[idx + 1], refs[idx + 2]))
            idx += 3                                      # (W_ih^T cat, W_hh^T blk, b cat)
        fc1_w_ref, fc1_b_ref, fc2_w_ref, fc2_b_ref = refs[idx:idx + 4]
        idx += 4
        out_ref = refs[idx]; idx += 1                     # (B_pad, O_pad)
        pre_ref = refs[idx]; idx += 1                     # (T*B_pad, GW) pre-gates
        seq_refs = refs[idx:idx + n_seq]                  # (T*B_pad, HW) ping-pong

        cur_in = x_ref[...]                               # current layer input (T*B_pad, feat)
        last = None                                       # (B_pad, HW) head input

        for layer in range(num_layers):
            wih_ref, whh_ref, b_ref = layer_refs[layer]
            is_last = layer == num_layers - 1

            # ---- phase 1: direction-fused hoisted input projection ---------
            pre_ref[...] = jnp.dot(cur_in, wih_ref[...],
                                   preferred_element_type=jnp.float32) + b_ref[...]

            if not is_last:
                out_seq = seq_refs[layer % n_seq]
                if ndir == 2:
                    whh = whh_ref[...]                    # (2H, 8H) block-diagonal
                    h_cat = jnp.zeros((B_pad, HW), jnp.float32)
                    c_f = jnp.zeros((B_pad, H), jnp.float32)
                    c_b = jnp.zeros((B_pad, H), jnp.float32)
                    # T is small & static -> full unroll (static, 8-aligned slices).
                    for step in range(T):
                        t_f = step
                        t_b = T - 1 - step
                        # one MXU push for BOTH directions' recurrent term
                        rec = jnp.dot(h_cat, whh, preferred_element_type=jnp.float32)
                        g_f = pre_ref[pl.ds(t_f * B_pad, B_pad), 0:G] + rec[:, 0:G]
                        g_b = pre_ref[pl.ds(t_b * B_pad, B_pad), G:2 * G] + rec[:, G:2 * G]
                        i_f, f_f, gg_f, o_f = gates(g_f)
                        i_b, f_b, gg_b, o_b = gates(g_b)
                        c_f = f_f * c_f + i_f * gg_f
                        c_b = f_b * c_b + i_b * gg_b
                        h_f = o_f * jnp.tanh(c_f)
                        h_b = o_b * jnp.tanh(c_b)
                        out_seq[pl.ds(t_f * B_pad, B_pad), 0:H] = h_f
                        out_seq[pl.ds(t_b * B_pad, B_pad), H:2 * H] = h_b
                        h_cat = jnp.concatenate([h_f, h_b], axis=1)
                else:
                    whh = whh_ref[...]                    # (H, 4H)
                    h = jnp.zeros((B_pad, H), jnp.float32)
                    c = jnp.zeros((B_pad, H), jnp.float32)
                    for step in range(T):
                        rec = jnp.dot(h, whh, preferred_element_type=jnp.float32)
                        g = pre_ref[pl.ds(step * B_pad, B_pad), 0:G] + rec
                        i_g, f_g, gg, o_g = gates(g)
                        c = f_g * c + i_g * gg
                        h = o_g * jnp.tanh(c)
                        out_seq[pl.ds(step * B_pad, B_pad), 0:H] = h
                cur_in = out_seq[...]
            else:
                # ---- last layer: only the final-timestep outputs feed the
                #      head, so skip ALL sequence stores.
                whh_f = whh_ref[0:H, 0:G]                 # fwd block of the block-diag
                h_f = jnp.zeros((B_pad, H), jnp.float32)
                c_f = jnp.zeros((B_pad, H), jnp.float32)
                for step in range(T):
                    rec = jnp.dot(h_f, whh_f, preferred_element_type=jnp.float32)
                    g_f = pre_ref[pl.ds(step * B_pad, B_pad), 0:G] + rec
                    i_g, f_g, gg, o_g = gates(g_f)
                    c_f = f_g * c_f + i_g * gg
                    h_f = o_g * jnp.tanh(c_f)
                if ndir == 2:
                    # bwd output at timestep T-1 is its FIRST step; h0=c0=0 so
                    # the recurrent matmul vanishes entirely.
                    g_b = pre_ref[pl.ds((T - 1) * B_pad, B_pad), G:2 * G]
                    i_g, f_g, gg, o_g = gates(g_b)
                    c_b = i_g * gg
                    h_b = o_g * jnp.tanh(c_b)
                    last = jnp.concatenate([h_f, h_b], axis=1)
                else:
                    last = h_f

        # ---- MLP head (fc1 -> ReLU -> fc2), all VMEM-resident ---------------
        h1 = jnp.maximum(
            jnp.dot(last, fc1_w_ref[...], preferred_element_type=jnp.float32)
            + fc1_b_ref[...], 0.0)
        y = jnp.dot(h1, fc2_w_ref[...],
                    preferred_element_type=jnp.float32) + fc2_b_ref[...]
        out_ref[...] = y.astype(out_ref.dtype)

    return kernel


# ----------------------------------------------------------------------------
# Wrapper
# ----------------------------------------------------------------------------
def lstm_model_forward(x_btd, params, hidden_size, num_layers, bidirectional=True):
    """Full LSTMModel forward.  x_btd: (B, T, D_in), batch_first like PyTorch."""
    B, T, D = x_btd.shape
    H = hidden_size
    ndir = 2 if bidirectional else 1
    O = params["fc2_w"].shape[0]

    B_pad = max(8, _round_up(B, 8))       # sublane-aligned per-timestep tiles
    O_pad = max(128, _round_up(O, 128))   # lane-dense output store
    G = 4 * H
    GW = ndir * G
    HW = ndir * H

    # Time-major, batch padded, flattened to (T*B_pad, D).
    x_tbd = jnp.transpose(x_btd, (1, 0, 2)).astype(jnp.float32)
    x_tbd = jnp.pad(x_tbd, ((0, 0), (0, B_pad - B), (0, 0)))
    x2d = x_tbd.reshape(T * B_pad, D)

    dirs = ["fwd", "bwd"][:ndir]
    inputs = [x2d]
    in_specs = [pl.BlockSpec((T * B_pad, D), lambda: (0, 0))]

    for layer in range(num_layers):
        p = params["lstm"][layer]
        d_in = D if layer == 0 else HW
        # Direction-fused input-projection weights / biases: (d_in, ndir*4H)
        wih_cat = jnp.concatenate(
            [jnp.transpose(p[d]["w_ih"]).astype(jnp.float32) for d in dirs], axis=1)
        b_cat = jnp.concatenate(
            [p[d]["b"].astype(jnp.float32) for d in dirs], axis=1)
        if ndir == 2:
            # Block-diagonal recurrent weights: (2H, 8H)
            wf = jnp.transpose(p["fwd"]["w_hh"]).astype(jnp.float32)
            wb = jnp.transpose(p["bwd"]["w_hh"]).astype(jnp.float32)
            z = jnp.zeros((H, G), jnp.float32)
            whh_blk = jnp.concatenate(
                [jnp.concatenate([wf, z], axis=1),
                 jnp.concatenate([z, wb], axis=1)], axis=0)
        else:
            whh_blk = jnp.transpose(p["fwd"]["w_hh"]).astype(jnp.float32)
        inputs += [wih_cat, whh_blk, b_cat]
        in_specs += [
            pl.BlockSpec((d_in, GW), lambda: (0, 0)),
            pl.BlockSpec((HW, GW), lambda: (0, 0)),
            pl.BlockSpec((1, GW), lambda: (0, 0)),
        ]

    fc1_wt = jnp.transpose(params["fc1_w"]).astype(jnp.float32)        # (HW, H)
    fc1_b = params["fc1_b"].astype(jnp.float32)                        # (1, H)
    fc2_wt = jnp.pad(jnp.transpose(params["fc2_w"]).astype(jnp.float32),
                     ((0, 0), (0, O_pad - O)))                         # (H, O_pad)
    fc2_b = jnp.pad(params["fc2_b"].astype(jnp.float32),
                    ((0, 0), (0, O_pad - O)))                          # (1, O_pad)
    inputs += [fc1_wt, fc1_b, fc2_wt, fc2_b]
    in_specs += [
        pl.BlockSpec((HW, H), lambda: (0, 0)),
        pl.BlockSpec((1, H), lambda: (0, 0)),
        pl.BlockSpec((H, O_pad), lambda: (0, 0)),
        pl.BlockSpec((1, O_pad), lambda: (0, 0)),
    ]

    # Scratch: one fused pre-gate buffer + (num_layers-1 capped at 2) hidden
    # sequence buffers (ping-pong).  ~80 KiB total here; budget stated below.
    n_seq = min(num_layers - 1, 2)
    scratch_shapes = (
        [pltpu.VMEM((T * B_pad, GW), jnp.float32)]
        + [pltpu.VMEM((T * B_pad, HW), jnp.float32) for _ in range(n_seq)]
    )

    kernel = _make_fused_lstm_kernel(T, B_pad, H, num_layers, ndir, n_seq)

    out_pad = pl.pallas_call(
        kernel,
        out_shape=jax.ShapeDtypeStruct((B_pad, O_pad), jnp.float32),
        in_specs=in_specs,
        out_specs=pl.BlockSpec((B_pad, O_pad), lambda: (0, 0)),
        scratch_shapes=scratch_shapes,
        compiler_params=pltpu.CompilerParams(vmem_limit_bytes=32 * 1024 * 1024),
    )(*inputs)
    return out_pad[:B, :O]


# ----------------------------------------------------------------------------
# Pure-JAX reference (correctness check)
# ----------------------------------------------------------------------------
def _lstm_direction_ref(x_tbd, w_ih, w_hh, bias, H):
    B = x_tbd.shape[1]

    def step(carry, xt):
        h, c = carry
        gates = xt @ w_ih.T + h @ w_hh.T + bias
        i_g = jax.nn.sigmoid(gates[:, 0 * H:1 * H])
        f_g = jax.nn.sigmoid(gates[:, 1 * H:2 * H])
        g_g = jnp.tanh(gates[:, 2 * H:3 * H])
        o_g = jax.nn.sigmoid(gates[:, 3 * H:4 * H])
        c = f_g * c + i_g * g_g
        h = o_g * jnp.tanh(c)
        return (h, c), h

    h0 = jnp.zeros((B, H), jnp.float32)
    c0 = jnp.zeros((B, H), jnp.float32)
    _, hs = jax.lax.scan(step, (h0, c0), x_tbd)
    return hs


def lstm_model_forward_ref(x_btd, params, hidden_size, num_layers, bidirectional=True):
    x = jnp.transpose(x_btd, (1, 0, 2)).astype(jnp.float32)
    for layer in range(num_layers):
        p = params["lstm"][layer]
        h_fwd = _lstm_direction_ref(x, p["fwd"]["w_ih"], p["fwd"]["w_hh"],
                                    p["fwd"]["b"], hidden_size)
        if bidirectional:
            h_bwd = _lstm_direction_ref(x[::-1], p["bwd"]["w_ih"], p["bwd"]["w_hh"],
                                        p["bwd"]["b"], hidden_size)[::-1]
            x = jnp.concatenate([h_fwd, h_bwd], axis=-1)
        else:
            x = h_fwd
    last = x[-1]
    h = jnp.maximum(last @ params["fc1_w"].T + params["fc1_b"], 0.0)
    return h @ params["fc2_w"].T + params["fc2_b"]


# ----------------------------------------------------------------------------
# Deterministic parameter construction
# ----------------------------------------------------------------------------
def init_params(key, input_size, hidden_size, num_layers, output_size, bidirectional=True):
    H = hidden_size
    nd = 2 if bidirectional else 1
    scale = 1.0 / jnp.sqrt(H)
    params = {"lstm": []}
    for layer in range(num_layers):
        d_in = input_size if layer == 0 else H * nd
        layer_p = {}
        for dname in (["fwd", "bwd"] if bidirectional else ["fwd"]):
            key, k1, k2, k3, k4 = jax.random.split(key, 5)
            w_ih = jax.random.uniform(k1, (4 * H, d_in), jnp.float32, -scale, scale)
            w_hh = jax.random.uniform(k2, (4 * H, H), jnp.float32, -scale, scale)
            b_ih = jax.random.uniform(k3, (4 * H,), jnp.float32, -scale, scale)
            b_hh = jax.random.uniform(k4, (4 * H,), jnp.float32, -scale, scale)
            layer_p[dname] = {"w_ih": w_ih, "w_hh": w_hh,
                              "b": (b_ih + b_hh)[None, :]}   # (1, 4H)
        params["lstm"].append(layer_p)
    key, k1, k2, k3, k4 = jax.random.split(key, 5)
    params["fc1_w"] = jax.random.uniform(k1, (H, H * nd), jnp.float32, -scale, scale)
    params["fc1_b"] = jax.random.uniform(k2, (1, H), jnp.float32, -scale, scale)
    params["fc2_w"] = jax.random.uniform(k3, (output_size, H), jnp.float32, -scale, scale)
    params["fc2_b"] = jax.random.uniform(k4, (1, output_size), jnp.float32, -scale, scale)
    return params


# ----------------------------------------------------------------------------
if __name__ == "__main__":
    input_size = 16
    hidden_size = 32
    num_layers = 2
    output_size = 8
    bidirectional = True

    batch = 4
    seq = 8

    key = jax.random.PRNGKey(0)
    key, kp, kx = jax.random.split(key, 3)
    params = init_params(kp, input_size, hidden_size, num_layers,
                         output_size, bidirectional)
    x = jax.random.normal(kx, (batch, seq, input_size), jnp.float32)  # (B, T, D)

    fwd = functools.partial(lstm_model_forward, hidden_size=hidden_size,
                            num_layers=num_layers, bidirectional=bidirectional)
    out = jax.jit(fwd)(x, params)
    out = jax.block_until_ready(out)

    ref = lstm_model_forward_ref(x, params, hidden_size, num_layers, bidirectional)
    ref = jax.block_until_ready(ref)

    assert out.shape == (batch, output_size), out.shape
    assert jnp.allclose(out, ref, atol=1e-4, rtol=1e-4), \
        f"max abs diff = {jnp.max(jnp.abs(out - ref))}"

    print("KERNEL_OK")
</pallas_src>

<mosaic_0001>
module attributes {stable_mosaic.version = 11 : i64} {
  func.func @kernel(%arg0: memref<64x16xf32, #tpu.memory_space<vmem>>, %arg1: memref<16x256xf32, #tpu.memory_space<vmem>>, %arg2: memref<64x256xf32, #tpu.memory_space<vmem>>, %arg3: memref<1x256xf32, #tpu.memory_space<vmem>>, %arg4: memref<64x256xf32, #tpu.memory_space<vmem>>, %arg5: memref<64x256xf32, #tpu.memory_space<vmem>>, %arg6: memref<1x256xf32, #tpu.memory_space<vmem>>, %arg7: memref<64x32xf32, #tpu.memory_space<vmem>>, %arg8: memref<1x32xf32, #tpu.memory_space<vmem>>, %arg9: memref<32x128xf32, #tpu.memory_space<vmem>>, %arg10: memref<1x128xf32, #tpu.memory_space<vmem>>, %arg11: memref<8x128xf32, #tpu.memory_space<vmem>>, %arg12: memref<64x256xf32, #tpu.memory_space<vmem>>, %arg13: memref<64x64xf32, #tpu.memory_space<vmem>>) attributes {dimension_semantics = [], scalar_prefetch = 0 : i64, scratch_operands = 2 : i64, tpu.core_type = #tpu.core_type<tc>} {
    %c0 = arith.constant 0 : index
    %c0_0 = arith.constant 0 : index
    %0 = vector.load %arg0[%c0, %c0_0] : memref<64x16xf32, #tpu.memory_space<vmem>>, vector<64x16xf32>
    %c0_1 = arith.constant 0 : index
    %c0_2 = arith.constant 0 : index
    %1 = vector.load %arg1[%c0_1, %c0_2] : memref<16x256xf32, #tpu.memory_space<vmem>>, vector<16x256xf32>
    %cst = arith.constant dense<0.000000e+00> : vector<64x256xf32>
    %2 = tpu.matmul %0, %1, %cst {dimension_numbers = #tpu.dot_dimension_numbers<[1], [0], [0], [1], [0, 0, 1, 1], [], []>} : vector<64x16xf32>, vector<16x256xf32>, vector<64x256xf32> -> vector<64x256xf32>
    %c0_3 = arith.constant 0 : index
    %c0_4 = arith.constant 0 : index
    %3 = vector.load %arg3[%c0_3, %c0_4] : memref<1x256xf32, #tpu.memory_space<vmem>>, vector<1x256xf32>
    %4 = vector.broadcast %3 : vector<1x256xf32> to vector<64x256xf32>
    %5 = arith.addf %2, %4 : vector<64x256xf32>
    %c0_5 = arith.constant 0 : index
    %c0_6 = arith.constant 0 : index
    %6 = vector.load %arg12[%c0_5, %c0_6] : memref<64x256xf32, #tpu.memory_space<vmem>>, vector<64x256xf32>
    tpu.vector_store %arg12[%c0_5, %c0_6], %5 {strides = array<i32>} : memref<64x256xf32, #tpu.memory_space<vmem>>, vector<64x256xf32>,
    %c0_7 = arith.constant 0 : index
    %c0_8 = arith.constant 0 : index
    %7 = vector.load %arg2[%c0_7, %c0_8] : memref<64x256xf32, #tpu.memory_space<vmem>>, vector<64x256xf32>
    %cst_9 = arith.constant 0.000000e+00 : f32
    %8 = vector.broadcast %cst_9 : f32 to vector<8x64xf32>
    %cst_10 = arith.constant 0.000000e+00 : f32
    %9 = vector.broadcast %cst_10 : f32 to vector<8x32xf32>
    %cst_11 = arith.constant 0.000000e+00 : f32
    %10 = vector.broadcast %cst_11 : f32 to vector<8x32xf32>
    %cst_12 = arith.constant dense<0.000000e+00> : vector<8x256xf32>
    %11 = tpu.matmul %8, %7, %cst_12 {dimension_numbers = #tpu.dot_dimension_numbers<[1], [0], [0], [1], [0, 0, 1, 1], [], []>} : vector<8x64xf32>, vector<64x256xf32>, vector<8x256xf32> -> vector<8x256xf32>
    %c0_13 = arith.constant 0 : index
    %c0_14 = arith.constant 0 : index
    %12 = vector.load %arg12[%c0_13, %c0_14] : memref<64x256xf32, #tpu.memory_space<vmem>>, vector<8x128xf32>
    %13 = vector.extract_strided_slice %11 {offsets = [0, 0], sizes = [8, 128], strides = [1, 1]} : vector<8x256xf32> to vector<8x128xf32>
    %14 = arith.addf %12, %13 : vector<8x128xf32>
    %c56 = arith.constant 56 : index
    %c128 = arith.constant 128 : index
    %15 = vector.load %arg12[%c56, %c128] : memref<64x256xf32, #tpu.memory_space<vmem>>, vector<8x128xf32>
    %16 = vector.extract_strided_slice %11 {offsets = [0, 128], sizes = [8, 128], strides = [1, 1]} : vector<8x256xf32> to vector<8x128xf32>
    %17 = arith.addf %15, %16 : vector<8x128xf32>
    %18 = arith.negf %14 : vector<8x128xf32>
    %19 = math.exp %18 : vector<8x128xf32>
    %cst_15 = arith.constant 1.000000e+00 : f32
    %20 = vector.broadcast %cst_15 : f32 to vector<8x128xf32>
    %21 = arith.addf %20, %19 : vector<8x128xf32>
    %22 = arith.divf %20, %21 : vector<8x128xf32>
    %23 = vector.extract_strided_slice %22 {offsets = [0, 0], sizes = [8, 32], strides = [1, 1]} : vector<8x128xf32> to vector<8x32xf32>
    %24 = vector.extract_strided_slice %22 {offsets = [0, 32], sizes = [8, 32], strides = [1, 1]} : vector<8x128xf32> to vector<8x32xf32>
    %25 = vector.extract_strided_slice %22 {offsets = [0, 96], sizes = [8, 32], strides = [1, 1]} : vector<8x128xf32> to vector<8x32xf32>
    %26 = vector.extract_strided_slice %14 {offsets = [0, 64], sizes = [8, 32], strides = [1, 1]} : vector<8x128xf32> to vector<8x32xf32>
    %27 = math.tanh %26 : vector<8x32xf32>
    %28 = arith.negf %17 : vector<8x128xf32>
    %29 = math.exp %28 : vector<8x128xf32>
    %cst_16 = arith.constant 1.000000e+00 : f32
    %30 = vector.broadcast %cst_16 : f32 to vector<8x128xf32>
    %31 = arith.addf %30, %29 : vector<8x128xf32>
    %32 = arith.divf %30, %31 : vector<8x128xf32>
    %33 = vector.extract_strided_slice %32 {offsets = [0, 0], sizes = [8, 32], strides = [1, 1]} : vector<8x128xf32> to vector<8x32xf32>
    %34 = vector.extract_strided_slice %32 {offsets = [0, 32], sizes = [8, 32], strides = [1, 1]} : vector<8x128xf32> to vector<8x32xf32>
    %35 = vector.extract_strided_slice %32 {offsets = [0, 96], sizes = [8, 32], strides = [1, 1]} : vector<8x128xf32> to vector<8x32xf32>
    %36 = vector.extract_strided_slice %17 {offsets = [0, 64], sizes = [8, 32], strides = [1, 1]} : vector<8x128xf32> to vector<8x32xf32>
    %37 = math.tanh %36 : vector<8x32xf32>
    %38 = arith.mulf %24, %9 : vector<8x32xf32>
    %39 = arith.mulf %23, %27 : vector<8x32xf32>
    %40 = arith.addf %38, %39 : vector<8x32xf32>
    %41 = arith.mulf %34, %10 : vector<8x32xf32>
    %42 = arith.mulf %33, %37 : vector<8x32xf32>
    %43 = arith.addf %41, %42 : vector<8x32xf32>
    %44 = math.tanh %40 : vector<8x32xf32>
    %45 = arith.mulf %25, %44 : vector<8x32xf32>
    %46 = math.tanh %43 : vector<8x32xf32>
    %47 = arith.mulf %35, %46 : vector<8x32xf32>
    %c0_17 = arith.constant 0 : index
    %c0_18 = arith.constant 0 : index
    %48 = vector.load %arg13[%c0_17, %c0_18] : memref<64x64xf32, #tpu.memory_space<vmem>>, vector<8x32xf32>
    tpu.vector_store %arg13[%c0_17, %c0_18], %45 {strides = array<i32>} : memref<64x64xf32, #tpu.memory_space<vmem>>, vector<8x32xf32>,
    %c56_19 = arith.constant 56 : index
    %c32 = arith.constant 32 : index
    %49 = vector.load %arg13[%c56_19, %c32] : memref<64x64xf32, #tpu.memory_space<vmem>>, vector<8x32xf32>
    tpu.vector_store %arg13[%c56_19, %c32], %47 {strides = array<i32>} : memref<64x64xf32, #tpu.memory_space<vmem>>, vector<8x32xf32>,
    %50 = tpu.concatenate %45, %47 in 1 : vector<8x32xf32>, vector<8x32xf32> -> vector<8x64xf32>
    %cst_20 = arith.constant dense<0.000000e+00> : vector<8x256xf32>
    %51 = tpu.matmul %50, %7, %cst_20 {dimension_numbers = #tpu.dot_dimension_numbers<[1], [0], [0], [1], [0, 0, 1, 1], [], []>} : vector<8x64xf32>, vector<64x256xf32>, vector<8x256xf32> -> vector<8x256xf32>
    %c8 = arith.constant 8 : index
    %c0_21 = arith.constant 0 : index
    %52 = vector.load %arg12[%c8, %c0_21] : memref<64x256xf32, #tpu.memory_space<vmem>>, vector<8x128xf32>
    %53 = vector.extract_strided_slice %51 {offsets = [0, 0], sizes = [8, 128], strides = [1, 1]} : vector<8x256xf32> to vector<8x128xf32>
    %54 = arith.addf %52, %53 : vector<8x128xf32>
    %c48 = arith.constant 48 : index
    %c128_22 = arith.constant 128 : index
    %55 = vector.load %arg12[%c48, %c128_22] : memref<64x256xf32, #tpu.memory_space<vmem>>, vector<8x128xf32>
    %56 = vector.extract_strided_slice %51 {offsets = [0, 128], sizes = [8, 128], strides = [1, 1]} : vector<8x256xf32> to vector<8x128xf32>
    %57 = arith.addf %55, %56 : vector<8x128xf32>
    %58 = arith.negf %54 : vector<8x128xf32>
    %59 = math.exp %58 : vector<8x128xf32>
    %cst_23 = arith.constant 1.000000e+00 : f32
    %60 = vector.broadcast %cst_23 : f32 to vector<8x128xf32>
    %61 = arith.addf %60, %59 : vector<8x128xf32>
    %62 = arith.divf %60, %61 : vector<8x128xf32>
    %63 = vector.extract_strided_slice %62 {offsets = [0, 0], sizes = [8, 32], strides = [1, 1]} : vector<8x128xf32> to vector<8x32xf32>
    %64 = vector.extract_strided_slice %62 {offsets = [0, 32], sizes = [8, 32], strides = [1, 1]} : vector<8x128xf32> to vector<8x32xf32>
    %65 = vector.extract_strided_slice %62 {offsets = [0, 96], sizes = [8, 32], strides = [1, 1]} : vector<8x128xf32> to vector<8x32xf32>
    %66 = vector.extract_strided_slice %54 {offsets = [0, 64], sizes = [8, 32], strides = [1, 1]} : vector<8x128xf32> to vector<8x32xf32>
    %67 = math.tanh %66 : vector<8x32xf32>
    %68 = arith.negf %57 : vector<8x128xf32>
    %69 = math.exp %68 : vector<8x128xf32>
    %cst_24 = arith.constant 1.000000e+00 : f32
    %70 = vector.broadcast %cst_24 : f32 to vector<8x128xf32>
    %71 = arith.addf %70, %69 : vector<8x128xf32>
    %72 = arith.divf %70, %71 : vector<8x128xf32>
    %73 = vector.extract_strided_slice %72 {offsets = [0, 0], sizes = [8, 32], strides = [1, 1]} : vector<8x128xf32> to vector<8x32xf32>
    %74 = vector.extract_strided_slice %72 {offsets = [0, 32], sizes = [8, 32], strides = [1, 1]} : vector<8x128xf32> to vector<8x32xf32>
    %75 = vector.extract_strided_slice %72 {offsets = [0, 96], sizes = [8, 32], strides = [1, 1]} : vector<8x128xf32> to vector<8x32xf32>
    %76 = vector.extract_strided_slice %57 {offsets = [0, 64], sizes = [8, 32], strides = [1, 1]} : vector<8x128xf32> to vector<8x32xf32>
    %77 = math.tanh %76 : vector<8x32xf32>
    %78 = arith.mulf %64, %40 : vector<8x32xf32>
    %79 = arith.mulf %63, %67 : vector<8x32xf32>
    %80 = arith.addf %78, %79 : vector<8x32xf32>
    %81 = arith.mulf %74, %43 : vector<8x32xf32>
    %82 = arith.mulf %73, %77 : vector<8x32xf32>
    %83 = arith.addf %81, %82 : vector<8x32xf32>
    %84 = math.tanh %80 : vector<8x32xf32>
    %85 = arith.mulf %65, %84 : vector<8x32xf32>
    %86 = math.tanh %83 : vector<8x32xf32>
    %87 = arith.mulf %75, %86 : vector<8x32xf32>
    %c8_25 = arith.constant 8 : index
    %c0_26 = arith.constant 0 : index
    %88 = vector.load %arg13[%c8_25, %c0_26] : memref<64x64xf32, #tpu.memory_space<vmem>>, vector<8x32xf32>
    tpu.vector_store %arg13[%c8_25, %c0_26], %85 {strides = array<i32>} : memref<64x64xf32, #tpu.memory_space<vmem>>, vector<8x32xf32>,
    %c48_27 = arith.constant 48 : index
    %c32_28 = arith.constant 32 : index
    %89 = vector.load %arg13[%c48_27, %c32_28] : memref<64x64xf32, #tpu.memory_space<vmem>>, vector<8x32xf32>
    tpu.vector_store %arg13[%c48_27, %c32_28], %87 {strides = array<i32>} : memref<64x64xf32, #tpu.memory_space<vmem>>, vector<8x32xf32>,
    %90 = tpu.concatenate %85, %87 in 1 : vector<8x32xf32>, vector<8x32xf32> -> vector<8x64xf32>
    %cst_29 = arith.constant dense<0.000000e+00> : vector<8x256xf32>
    %91 = tpu.matmul %90, %7, %cst_29 {dimension_numbers = #tpu.dot_dimension_numbers<[1], [0], [0], [1], [0, 0, 1, 1], [], []>} : vector<8x64xf32>, vector<64x256xf32>, vector<8x256xf32> -> vector<8x256xf32>
    %c16 = arith.constant 16 : index
    %c0_30 = arith.constant 0 : index
    %92 = vector.load %arg12[%c16, %c0_30] : memref<64x256xf32, #tpu.memory_space<vmem>>, vector<8x128xf32>
    %93 = vector.extract_strided_slice %91 {offsets = [0, 0], sizes = [8, 128], strides = [1, 1]} : vector<8x256xf32> to vector<8x128xf32>
    %94 = arith.addf %92, %93 : vector<8x128xf32>
    %c40 = arith.constant 40 : index
    %c128_31 = arith.constant 128 : index
    %95 = vector.load %arg12[%c40, %c128_31] : memref<64x256xf32, #tpu.memory_space<vmem>>, vector<8x128xf32>
    %96 = vector.extract_strided_slice %91 {offsets = [0, 128], sizes = [8, 128], strides = [1, 1]} : vector<8x256xf32> to vector<8x128xf32>
    %97 = arith.addf %95, %96 : vector<8x128xf32>
    %98 = arith.negf %94 : vector<8x128xf32>
    %99 = math.exp %98 : vector<8x128xf32>
    %cst_32 = arith.constant 1.000000e+00 : f32
    %100 = vector.broadcast %cst_32 : f32 to vector<8x128xf32>
    %101 = arith.addf %100, %99 : vector<8x128xf32>
    %102 = arith.divf %100, %101 : vector<8x128xf32>
    %103 = vector.extract_strided_slice %102 {offsets = [0, 0], sizes = [8, 32], strides = [1, 1]} : vector<8x128xf32> to vector<8x32xf32>
    %104 = vector.extract_strided_slice %102 {offsets = [0, 32], sizes = [8, 32], strides = [1, 1]} : vector<8x128xf32> to vector<8x32xf32>
    %105 = vector.extract_strided_slice %102 {offsets = [0, 96], sizes = [8, 32], strides = [1, 1]} : vector<8x128xf32> to vector<8x32xf32>
    %106 = vector.extract_strided_slice %94 {offsets = [0, 64], sizes = [8, 32], strides = [1, 1]} : vector<8x128xf32> to vector<8x32xf32>
    %107 = math.tanh %106 : vector<8x32xf32>
    %108 = arith.negf %97 : vector<8x128xf32>
    %109 = math.exp %108 : vector<8x128xf32>
    %cst_33 = arith.constant 1.000000e+00 : f32
    %110 = vector.broadcast %cst_33 : f32 to vector<8x128xf32>
    %111 = arith.addf %110, %109 : vector<8x128xf32>
    %112 = arith.divf %110, %111 : vector<8x128xf32>
    %113 = vector.extract_strided_slice %112 {offsets = [0, 0], sizes = [8, 32], strides = [1, 1]} : vector<8x128xf32> to vector<8x32xf32>
    %114 = vector.extract_strided_slice %112 {offsets = [0, 32], sizes = [8, 32], strides = [1, 1]} : vector<8x128xf32> to vector<8x32xf32>
    %115 = vector.extract_strided_slice %112 {offsets = [0, 96], sizes = [8, 32], strides = [1, 1]} : vector<8x128xf32> to vector<8x32xf32>
    %116 = vector.extract_strided_slice %97 {offsets = [0, 64], sizes = [8, 32], strides = [1, 1]} : vector<8x128xf32> to vector<8x32xf32>
    %117 = math.tanh %116 : vector<8x32xf32>
    %118 = arith.mulf %104, %80 : vector<8x32xf32>
    %119 = arith.mulf %103, %107 : vector<8x32xf32>
    %120 = arith.addf %118, %119 : vector<8x32xf32>
    %121 = arith.mulf %114, %83 : vector<8x32xf32>
    %122 = arith.mulf %113, %117 : vector<8x32xf32>
    %123 = arith.addf %121, %122 : vector<8x32xf32>
    %124 = math.tanh %120 : vector<8x32xf32>
    %125 = arith.mulf %105, %124 : vector<8x32xf32>
    %126 = math.tanh %123 : vector<8x32xf32>
    %127 = arith.mulf %115, %126 : vector<8x32xf32>
    %c16_34 = arith.constant 16 : index
    %c0_35 = arith.constant 0 : index
    %128 = vector.load %arg13[%c16_34, %c0_35] : memref<64x64xf32, #tpu.memory_space<vmem>>, vector<8x32xf32>
    tpu.vector_store %arg13[%c16_34, %c0_35], %125 {strides = array<i32>} : memref<64x64xf32, #tpu.memory_space<vmem>>, vector<8x32xf32>,
    %c40_36 = arith.constant 40 : index
    %c32_37 = arith.constant 32 : index
    %129 = vector.load %arg13[%c40_36, %c32_37] : memref<64x64xf32, #tpu.memory_space<vmem>>, vector<8x32xf32>
    tpu.vector_store %arg13[%c40_36, %c32_37], %127 {strides = array<i32>} : memref<64x64xf32, #tpu.memory_space<vmem>>, vector<8x32xf32>,
    %130 = tpu.concatenate %125, %127 in 1 : vector<8x32xf32>, vector<8x32xf32> -> vector<8x64xf32>
    %cst_38 = arith.constant dense<0.000000e+00> : vector<8x256xf32>
    %131 = tpu.matmul %130, %7, %cst_38 {dimension_numbers = #tpu.dot_dimension_numbers<[1], [0], [0], [1], [0, 0, 1, 1], [], []>} : vector<8x64xf32>, vector<64x256xf32>, vector<8x256xf32> -> vector<8x256xf32>
    %c24 = arith.constant 24 : index
    %c0_39 = arith.constant 0 : index
    %132 = vector.load %arg12[%c24, %c0_39] : memref<64x256xf32, #tpu.memory_space<vmem>>, vector<8x128xf32>
    %133 = vector.extract_strided_slice %131 {offsets = [0, 0], sizes = [8, 128], strides = [1, 1]} : vector<8x256xf32> to vector<8x128xf32>
    %134 = arith.addf %132, %133 : vector<8x128xf32>
    %c32_40 = arith.constant 32 : index
    %c128_41 = arith.constant 128 : index
    %135 = vector.load %arg12[%c32_40, %c128_41] : memref<64x256xf32, #tpu.memory_space<vmem>>, vector<8x128xf32>
    %136 = vector.extract_strided_slice %131 {offsets = [0, 128], sizes = [8, 128], strides = [1, 1]} : vector<8x256xf32> to vector<8x128xf32>
    %137 = arith.addf %135, %136 : vector<8x128xf32>
    %138 = arith.negf %134 : vector<8x128xf32>
    %139 = math.exp %138 : vector<8x128xf32>
    %cst_42 = arith.constant 1.000000e+00 : f32
    %140 = vector.broadcast %cst_42 : f32 to vector<8x128xf32>
    %141 = arith.addf %140, %139 : vector<8x128xf32>
    %142 = arith.divf %140, %141 : vector<8x128xf32>
    %143 = vector.extract_strided_slice %142 {offsets = [0, 0], sizes = [8, 32], strides = [1, 1]} : vector<8x128xf32> to vector<8x32xf32>
    %144 = vector.extract_strided_slice %142 {offsets = [0, 32], sizes = [8, 32], strides = [1, 1]} : vector<8x128xf32> to vector<8x32xf32>
    %145 = vector.extract_strided_slice %142 {offsets = [0, 96], sizes = [8, 32], strides = [1, 1]} : vector<8x128xf32> to vector<8x32xf32>
    %146 = vector.extract_strided_slice %134 {offsets = [0, 64], sizes = [8, 32], strides = [1, 1]} : vector<8x128xf32> to vector<8x32xf32>
    %147 = math.tanh %146 : vector<8x32xf32>
    %148 = arith.negf %137 : vector<8x128xf32>
    %149 = math.exp %148 : vector<8x128xf32>
    %cst_43 = arith.constant 1.000000e+00 : f32
    %150 = vector.broadcast %cst_43 : f32 to vector<8x128xf32>
    %151 = arith.addf %150, %149 : vector<8x128xf32>
    %152 = arith.divf %150, %151 : vector<8x128xf32>
    %153 = vector.extract_strided_slice %152 {offsets = [0, 0], sizes = [8, 32], strides = [1, 1]} : vector<8x128xf32> to vector<8x32xf32>
    %154 = vector.extract_strided_slice %152 {offsets = [0, 32], sizes = [8, 32], strides = [1, 1]} : vector<8x128xf32> to vector<8x32xf32>
    %155 = vector.extract_strided_slice %152 {offsets = [0, 96], sizes = [8, 32], strides = [1, 1]} : vector<8x128xf32> to vector<8x32xf32>
    %156 = vector.extract_strided_slice %137 {offsets = [0, 64], sizes = [8, 32], strides = [1, 1]} : vector<8x128xf32> to vector<8x32xf32>
    %157 = math.tanh %156 : vector<8x32xf32>
    %158 = arith.mulf %144, %120 : vector<8x32xf32>
    %159 = arith.mulf %143, %147 : vector<8x32xf32>
    %160 = arith.addf %158, %159 : vector<8x32xf32>
    %161 = arith.mulf %154, %123 : vector<8x32xf32>
    %162 = arith.mulf %153, %157 : vector<8x32xf32>
    %163 = arith.addf %161, %162 : vector<8x32xf32>
    %164 = math.tanh %160 : vector<8x32xf32>
    %165 = arith.mulf %145, %164 : vector<8x32xf32>
    %166 = math.tanh %163 : vector<8x32xf32>
    %167 = arith.mulf %155, %166 : vector<8x32xf32>
    %c24_44 = arith.constant 24 : index
    %c0_45 = arith.constant 0 : index
    %168 = vector.load %arg13[%c24_44, %c0_45] : memref<64x64xf32, #tpu.memory_space<vmem>>, vector<8x32xf32>
    tpu.vector_store %arg13[%c24_44, %c0_45], %165 {strides = array<i32>} : memref<64x64xf32, #tpu.memory_space<vmem>>, vector<8x32xf32>,
    %c32_46 = arith.constant 32 : index
    %c32_47 = arith.constant 32 : index
    %169 = vector.load %arg13[%c32_46, %c32_47] : memref<64x64xf32, #tpu.memory_space<vmem>>, vector<8x32xf32>
    tpu.vector_store %arg13[%c32_46, %c32_47], %167 {strides = array<i32>} : memref<64x64xf32, #tpu.memory_space<vmem>>, vector<8x32xf32>,
    %170 = tpu.concatenate %165, %167 in 1 : vector<8x32xf32>, vector<8x32xf32> -> vector<8x64xf32>
    %cst_48 = arith.constant dense<0.000000e+00> : vector<8x256xf32>
    %171 = tpu.matmul %170, %7, %cst_48 {dimension_numbers = #tpu.dot_dimension_numbers<[1], [0], [0], [1], [0, 0, 1, 1], [], []>} : vector<8x64xf32>, vector<64x256xf32>, vector<8x256xf32> -> vector<8x256xf32>
    %c32_49 = arith.constant 32 : index
    %c0_50 = arith.constant 0 : index
    %172 = vector.load %arg12[%c32_49, %c0_50] : memref<64x256xf32, #tpu.memory_space<vmem>>, vector<8x128xf32>
    %173 = vector.extract_strided_slice %171 {offsets = [0, 0], sizes = [8, 128], strides = [1, 1]} : vector<8x256xf32> to vector<8x128xf32>
    %174 = arith.addf %172, %173 : vector<8x128xf32>
    %c24_51 = arith.constant 24 : index
    %c128_52 = arith.constant 128 : index
    %175 = vector.load %arg12[%c24_51, %c128_52] : memref<64x256xf32, #tpu.memory_space<vmem>>, vector<8x128xf32>
    %176 = vector.extract_strided_slice %171 {offsets = [0, 128], sizes = [8, 128], strides = [1, 1]} : vector<8x256xf32> to vector<8x128xf32>
    %177 = arith.addf %175, %176 : vector<8x128xf32>
    %178 = arith.negf %174 : vector<8x128xf32>
    %179 = math.exp %178 : vector<8x128xf32>
    %cst_53 = arith.constant 1.000000e+00 : f32
    %180 = vector.broadcast %cst_53 : f32 to vector<8x128xf32>
    %181 = arith.addf %180, %179 : vector<8x128xf32>
    %182 = arith.divf %180, %181 : vector<8x128xf32>
    %183 = vector.extract_strided_slice %182 {offsets = [0, 0], sizes = [8, 32], strides = [1, 1]} : vector<8x128xf32> to vector<8x32xf32>
    %184 = vector.extract_strided_slice %182 {offsets = [0, 32], sizes = [8, 32], strides = [1, 1]} : vector<8x128xf32> to vector<8x32xf32>
    %185 = vector.extract_strided_slice %182 {offsets = [0, 96], sizes = [8, 32], strides = [1, 1]} : vector<8x128xf32> to vector<8x32xf32>
    %186 = vector.extract_strided_slice %174 {offsets = [0, 64], sizes = [8, 32], strides = [1, 1]} : vector<8x128xf32> to vector<8x32xf32>
    %187 = math.tanh %186 : vector<8x32xf32>
    %188 = arith.negf %177 : vector<8x128xf32>
    %189 = math.exp %188 : vector<8x128xf32>
    %cst_54 = arith.constant 1.000000e+00 : f32
    %190 = vector.broadcast %cst_54 : f32 to vector<8x128xf32>
    %191 = arith.addf %190, %189 : vector<8x128xf32>
    %192 = arith.divf %190, %191 : vector<8x128xf32>
    %193 = vector.extract_strided_slice %192 {offsets = [0, 0], sizes = [8, 32], strides = [1, 1]} : vector<8x128xf32> to vector<8x32xf32>
    %194 = vector.extract_strided_slice %192 {offsets = [0, 32], sizes = [8, 32], strides = [1, 1]} : vector<8x128xf32> to vector<8x32xf32>
    %195 = vector.extract_strided_slice %192 {offsets = [0, 96], sizes = [8, 32], strides = [1, 1]} : vector<8x128xf32> to vector<8x32xf32>
    %196 = vector.extract_strided_slice %177 {offsets = [0, 64], sizes = [8, 32], strides = [1, 1]} : vector<8x128xf32> to vector<8x32xf32>
    %197 = math.tanh %196 : vector<8x32xf32>
    %198 = arith.mulf %184, %160 : vector<8x32xf32>
    %199 = arith.mulf %183, %187 : vector<8x32xf32>
    %200 = arith.addf %198, %199 : vector<8x32xf32>
    %201 = arith.mulf %194, %163 : vector<8x32xf32>
    %202 = arith.mulf %193, %197 : vector<8x32xf32>
    %203 = arith.addf %201, %202 : vector<8x32xf32>
    %204 = math.tanh %200 : vector<8x32xf32>
    %205 = arith.mulf %185, %204 : vector<8x32xf32>
    %206 = math.tanh %203 : vector<8x32xf32>
    %207 = arith.mulf %195, %206 : vector<8x32xf32>
    %c32_55 = arith.constant 32 : index
    %c0_56 = arith.constant 0 : index
    %208 = vector.load %arg13[%c32_55, %c0_56] : memref<64x64xf32, #tpu.memory_space<vmem>>, vector<8x32xf32>
    tpu.vector_store %arg13[%c32_55, %c0_56], %205 {strides = array<i32>} : memref<64x64xf32, #tpu.memory_space<vmem>>, vector<8x32xf32>,
    %c24_57 = arith.constant 24 : index
    %c32_58 = arith.constant 32 : index
    %209 = vector.load %arg13[%c24_57, %c32_58] : memref<64x64xf32, #tpu.memory_space<vmem>>, vector<8x32xf32>
    tpu.vector_store %arg13[%c24_57, %c32_58], %207 {strides = array<i32>} : memref<64x64xf32, #tpu.memory_space<vmem>>, vector<8x32xf32>,
    %210 = tpu.concatenate %205, %207 in 1 : vector<8x32xf32>, vector<8x32xf32> -> vector<8x64xf32>
    %cst_59 = arith.constant dense<0.000000e+00> : vector<8x256xf32>
    %211 = tpu.matmul %210, %7, %cst_59 {dimension_numbers = #tpu.dot_dimension_numbers<[1], [0], [0], [1], [0, 0, 1, 1], [], []>} : vector<8x64xf32>, vector<64x256xf32>, vector<8x256xf32> -> vector<8x256xf32>
    %c40_60 = arith.constant 40 : index
    %c0_61 = arith.constant 0 : index
    %212 = vector.load %arg12[%c40_60, %c0_61] : memref<64x256xf32, #tpu.memory_space<vmem>>, vector<8x128xf32>
    %213 = vector.extract_strided_slice %211 {offsets = [0, 0], sizes = [8, 128], strides = [1, 1]} : vector<8x256xf32> to vector<8x128xf32>
    %214 = arith.addf %212, %213 : vector<8x128xf32>
    %c16_62 = arith.constant 16 : index
    %c128_63 = arith.constant 128 : index
    %215 = vector.load %arg12[%c16_62, %c128_63] : memref<64x256xf32, #tpu.memory_space<vmem>>, vector<8x128xf32>
    %216 = vector.extract_strided_slice %211 {offsets = [0, 128], sizes = [8, 128], strides = [1, 1]} : vector<8x256xf32> to vector<8x128xf32>
    %217 = arith.addf %215, %216 : vector<8x128xf32>
    %218 = arith.negf %214 : vector<8x128xf32>
    %219 = math.exp %218 : vector<8x128xf32>
    %cst_64 = arith.constant 1.000000e+00 : f32
    %220 = vector.broadcast %cst_64 : f32 to vector<8x128xf32>
    %221 = arith.addf %220, %219 : vector<8x128xf32>
    %222 = arith.divf %220, %221 : vector<8x128xf32>
    %223 = vector.extract_strided_slice %222 {offsets = [0, 0], sizes = [8, 32], strides = [1, 1]} : vector<8x128xf32> to vector<8x32xf32>
    %224 = vector.extract_strided_slice %222 {offsets = [0, 32], sizes = [8, 32], strides = [1, 1]} : vector<8x128xf32> to vector<8x32xf32>
    %225 = vector.extract_strided_slice %222 {offsets = [0, 96], sizes = [8, 32], strides = [1, 1]} : vector<8x128xf32> to vector<8x32xf32>
    %226 = vector.extract_strided_slice %214 {offsets = [0, 64], sizes = [8, 32], strides = [1, 1]} : vector<8x128xf32> to vector<8x32xf32>
    %227 = math.tanh %226 : vector<8x32xf32>
    %228 = arith.negf %217 : vector<8x128xf32>
    %229 = math.exp %228 : vector<8x128xf32>
    %cst_65 = arith.constant 1.000000e+00 : f32
    %230 = vector.broadcast %cst_65 : f32 to vector<8x128xf32>
    %231 = arith.addf %230, %229 : vector<8x128xf32>
    %232 = arith.divf %230, %231 : vector<8x128xf32>
    %233 = vector.extract_strided_slice %232 {offsets = [0, 0], sizes = [8, 32], strides = [1, 1]} : vector<8x128xf32> to vector<8x32xf32>
    %234 = vector.extract_strided_slice %232 {offsets = [0, 32], sizes = [8, 32], strides = [1, 1]} : vector<8x128xf32> to vector<8x32xf32>
    %235 = vector.extract_strided_slice %232 {offsets = [0, 96], sizes = [8, 32], strides = [1, 1]} : vector<8x128xf32> to vector<8x32xf32>
    %236 = vector.extract_strided_slice %217 {offsets = [0, 64], sizes = [8, 32], strides = [1, 1]} : vector<8x128xf32> to vector<8x32xf32>
    %237 = math.tanh %236 : vector<8x32xf32>
    %238 = arith.mulf %224, %200 : vector<8x32xf32>
    %239 = arith.mulf %223, %227 : vector<8x32xf32>
    %240 = arith.addf %238, %239 : vector<8x32xf32>
    %241 = arith.mulf %234, %203 : vector<8x32xf32>
    %242 = arith.mulf %233, %237 : vector<8x32xf32>
    %243 = arith.addf %241, %242 : vector<8x32xf32>
    %244 = math.tanh %240 : vector<8x32xf32>
    %245 = arith.mulf %225, %244 : vector<8x32xf32>
    %246 = math.tanh %243 : vector<8x32xf32>
    %247 = arith.mulf %235, %246 : vector<8x32xf32>
    %c40_66 = arith.constant 40 : index
    %c0_67 = arith.constant 0 : index
    %248 = vector.load %arg13[%c40_66, %c0_67] : memref<64x64xf32, #tpu.memory_space<vmem>>, vector<8x32xf32>
    tpu.vector_store %arg13[%c40_66, %c0_67], %245 {strides = array<i32>} : memref<64x64xf32, #tpu.memory_space<vmem>>, vector<8x32xf32>,
    %c16_68 = arith.constant 16 : index
    %c32_69 = arith.constant 32 : index
    %249 = vector.load %arg13[%c16_68, %c32_69] : memref<64x64xf32, #tpu.memory_space<vmem>>, vector<8x32xf32>
    tpu.vector_store %arg13[%c16_68, %c32_69], %247 {strides = array<i32>} : memref<64x64xf32, #tpu.memory_space<vmem>>, vector<8x32xf32>,
    %250 = tpu.concatenate %245, %247 in 1 : vector<8x32xf32>, vector<8x32xf32> -> vector<8x64xf32>
    %cst_70 = arith.constant dense<0.000000e+00> : vector<8x256xf32>
    %251 = tpu.matmul %250, %7, %cst_70 {dimension_numbers = #tpu.dot_dimension_numbers<[1], [0], [0], [1], [0, 0, 1, 1], [], []>} : vector<8x64xf32>, vector<64x256xf32>, vector<8x256xf32> -> vector<8x256xf32>
    %c48_71 = arith.constant 48 : index
    %c0_72 = arith.constant 0 : index
    %252 = vector.load %arg12[%c48_71, %c0_72] : memref<64x256xf32, #tpu.memory_space<vmem>>, vector<8x128xf32>
    %253 = vector.extract_strided_slice %251 {offsets = [0, 0], sizes = [8, 128], strides = [1, 1]} : vector<8x256xf32> to vector<8x128xf32>
    %254 = arith.addf %252, %253 : vector<8x128xf32>
    %c8_73 = arith.constant 8 : index
    %c128_74 = arith.constant 128 : index
    %255 = vector.load %arg12[%c8_73, %c128_74] : memref<64x256xf32, #tpu.memory_space<vmem>>, vector<8x128xf32>
    %256 = vector.extract_strided_slice %251 {offsets = [0, 128], sizes = [8, 128], strides = [1, 1]} : vector<8x256xf32> to vector<8x128xf32>
    %257 = arith.addf %255, %256 : vector<8x128xf32>
    %258 = arith.negf %254 : vector<8x128xf32>
    %259 = math.exp %258 : vector<8x128xf32>
    %cst_75 = arith.constant 1.000000e+00 : f32
    %260 = vector.broadcast %cst_75 : f32 to vector<8x128xf32>
    %261 = arith.addf %260, %259 : vector<8x128xf32>
    %262 = arith.divf %260, %261 : vector<8x128xf32>
    %263 = vector.extract_strided_slice %262 {offsets = [0, 0], sizes = [8, 32], strides = [1, 1]} : vector<8x128xf32> to vector<8x32xf32>
    %264 = vector.extract_strided_slice %262 {offsets = [0, 32], sizes = [8, 32], strides = [1, 1]} : vector<8x128xf32> to vector<8x32xf32>
    %265 = vector.extract_strided_slice %262 {offsets = [0, 96], sizes = [8, 32], strides = [1, 1]} : vector<8x128xf32> to vector<8x32xf32>
    %266 = vector.extract_strided_slice %254 {offsets = [0, 64], sizes = [8, 32], strides = [1, 1]} : vector<8x128xf32> to vector<8x32xf32>
    %267 = math.tanh %266 : vector<8x32xf32>
    %268 = arith.negf %257 : vector<8x128xf32>
    %269 = math.exp %268 : vector<8x128xf32>
    %cst_76 = arith.constant 1.000000e+00 : f32
    %270 = vector.broadcast %cst_76 : f32 to vector<8x128xf32>
    %271 = arith.addf %270, %269 : vector<8x128xf32>
    %272 = arith.divf %270, %271 : vector<8x128xf32>
    %273 = vector.extract_strided_slice %272 {offsets = [0, 0], sizes = [8, 32], strides = [1, 1]} : vector<8x128xf32> to vector<8x32xf32>
    %274 = vector.extract_strided_slice %272 {offsets = [0, 32], sizes = [8, 32], strides = [1, 1]} : vector<8x128xf32> to vector<8x32xf32>
    %275 = vector.extract_strided_slice %272 {offsets = [0, 96], sizes = [8, 32], strides = [1, 1]} : vector<8x128xf32> to vector<8x32xf32>
    %276 = vector.extract_strided_slice %257 {offsets = [0, 64], sizes = [8, 32], strides = [1, 1]} : vector<8x128xf32> to vector<8x32xf32>
    %277 = math.tanh %276 : vector<8x32xf32>
    %278 = arith.mulf %264, %240 : vector<8x32xf32>
    %279 = arith.mulf %263, %267 : vector<8x32xf32>
    %280 = arith.addf %278, %279 : vector<8x32xf32>
    %281 = arith.mulf %274, %243 : vector<8x32xf32>
    %282 = arith.mulf %273, %277 : vector<8x32xf32>
    %283 = arith.addf %281, %282 : vector<8x32xf32>
    %284 = math.tanh %280 : vector<8x32xf32>
    %285 = arith.mulf %265, %284 : vector<8x32xf32>
    %286 = math.tanh %283 : vector<8x32xf32>
    %287 = arith.mulf %275, %286 : vector<8x32xf32>
    %c48_77 = arith.constant 48 : index
    %c0_78 = arith.constant 0 : index
    %288 = vector.load %arg13[%c48_77, %c0_78] : memref<64x64xf32, #tpu.memory_space<vmem>>, vector<8x32xf32>
    tpu.vector_store %arg13[%c48_77, %c0_78], %285 {strides = array<i32>} : memref<64x64xf32, #tpu.memory_space<vmem>>, vector<8x32xf32>,
    %c8_79 = arith.constant 8 : index
    %c32_80 = arith.constant 32 : index
    %289 = vector.load %arg13[%c8_79, %c32_80] : memref<64x64xf32, #tpu.memory_space<vmem>>, vector<8x32xf32>
    tpu.vector_store %arg13[%c8_79, %c32_80], %287 {strides = array<i32>} : memref<64x64xf32, #tpu.memory_space<vmem>>, vector<8x32xf32>,
    %290 = tpu.concatenate %285, %287 in 1 : vector<8x32xf32>, vector<8x32xf32> -> vector<8x64xf32>
    %cst_81 = arith.constant dense<0.000000e+00> : vector<8x256xf32>
    %291 = tpu.matmul %290, %7, %cst_81 {dimension_numbers = #tpu.dot_dimension_numbers<[1], [0], [0], [1], [0, 0, 1, 1], [], []>} : vector<8x64xf32>, vector<64x256xf32>, vector<8x256xf32> -> vector<8x256xf32>
    %c56_82 = arith.constant 56 : index
    %c0_83 = arith.constant 0 : index
    %292 = vector.load %arg12[%c56_82, %c0_83] : memref<64x256xf32, #tpu.memory_space<vmem>>, vector<8x128xf32>
    %293 = vector.extract_strided_slice %291 {offsets = [0, 0], sizes = [8, 128], strides = [1, 1]} : vector<8x256xf32> to vector<8x128xf32>
    %294 = arith.addf %292, %293 : vector<8x128xf32>
    %c0_84 = arith.constant 0 : index
    %c128_85 = arith.constant 128 : index
    %295 = vector.load %arg12[%c0_84, %c128_85] : memref<64x256xf32, #tpu.memory_space<vmem>>, vector<8x128xf32>
    %296 = vector.extract_strided_slice %291 {offsets = [0, 128], sizes = [8, 128], strides = [1, 1]} : vector<8x256xf32> to vector<8x128xf32>
    %297 = arith.addf %295, %296 : vector<8x128xf32>
    %298 = arith.negf %294 : vector<8x128xf32>
    %299 = math.exp %298 : vector<8x128xf32>
    %cst_86 = arith.constant 1.000000e+00 : f32
    %300 = vector.broadcast %cst_86 : f32 to vector<8x128xf32>
    %301 = arith.addf %300, %299 : vector<8x128xf32>
    %302 = arith.divf %300, %301 : vector<8x128xf32>
    %303 = vector.extract_strided_slice %302 {offsets = [0, 0], sizes = [8, 32], strides = [1, 1]} : vector<8x128xf32> to vector<8x32xf32>
    %304 = vector.extract_strided_slice %302 {offsets = [0, 32], sizes = [8, 32], strides = [1, 1]} : vector<8x128xf32> to vector<8x32xf32>
    %305 = vector.extract_strided_slice %302 {offsets = [0, 96], sizes = [8, 32], strides = [1, 1]} : vector<8x128xf32> to vector<8x32xf32>
    %306 = vector.extract_strided_slice %294 {offsets = [0, 64], sizes = [8, 32], strides = [1, 1]} : vector<8x128xf32> to vector<8x32xf32>
    %307 = math.tanh %306 : vector<8x32xf32>
    %308 = arith.negf %297 : vector<8x128xf32>
    %309 = math.exp %308 : vector<8x128xf32>
    %cst_87 = arith.constant 1.000000e+00 : f32
    %310 = vector.broadcast %cst_87 : f32 to vector<8x128xf32>
    %311 = arith.addf %310, %309 : vector<8x128xf32>
    %312 = arith.divf %310, %311 : vector<8x128xf32>
    %313 = vector.extract_strided_slice %312 {offsets = [0, 0], sizes = [8, 32], strides = [1, 1]} : vector<8x128xf32> to vector<8x32xf32>
    %314 = vector.extract_strided_slice %312 {offsets = [0, 32], sizes = [8, 32], strides = [1, 1]} : vector<8x128xf32> to vector<8x32xf32>
    %315 = vector.extract_strided_slice %312 {offsets = [0, 96], sizes = [8, 32], strides = [1, 1]} : vector<8x128xf32> to vector<8x32xf32>
    %316 = vector.extract_strided_slice %297 {offsets = [0, 64], sizes = [8, 32], strides = [1, 1]} : vector<8x128xf32> to vector<8x32xf32>
    %317 = math.tanh %316 : vector<8x32xf32>
    %318 = arith.mulf %304, %280 : vector<8x32xf32>
    %319 = arith.mulf %303, %307 : vector<8x32xf32>
    %320 = arith.addf %318, %319 : vector<8x32xf32>
    %321 = arith.mulf %314, %283 : vector<8x32xf32>
    %322 = arith.mulf %313, %317 : vector<8x32xf32>
    %323 = arith.addf %321, %322 : vector<8x32xf32>
    %324 = math.tanh %320 : vector<8x32xf32>
    %325 = arith.mulf %305, %324 : vector<8x32xf32>
    %326 = math.tanh %323 : vector<8x32xf32>
    %327 = arith.mulf %315, %326 : vector<8x32xf32>
    %c56_88 = arith.constant 56 : index
    %c0_89 = arith.constant 0 : index
    %328 = vector.load %arg13[%c56_88, %c0_89] : memref<64x64xf32, #tpu.memory_space<vmem>>, vector<8x32xf32>
    tpu.vector_store %arg13[%c56_88, %c0_89], %325 {strides = array<i32>} : memref<64x64xf32, #tpu.memory_space<vmem>>, vector<8x32xf32>,
    %c0_90 = arith.constant 0 : index
    %c32_91 = arith.constant 32 : index
    %329 = vector.load %arg13[%c0_90, %c32_91] : memref<64x64xf32, #tpu.memory_space<vmem>>, vector<8x32xf32>
    tpu.vector_store %arg13[%c0_90, %c32_91], %327 {strides = array<i32>} : memref<64x64xf32, #tpu.memory_space<vmem>>, vector<8x32xf32>,
    %c0_92 = arith.constant 0 : index
    %c0_93 = arith.constant 0 : index
    %330 = vector.load %arg13[%c0_92, %c0_93] : memref<64x64xf32, #tpu.memory_space<vmem>>, vector<64x64xf32>
    %c0_94 = arith.constant 0 : index
    %c0_95 = arith.constant 0 : index
    %331 = vector.load %arg4[%c0_94, %c0_95] : memref<64x256xf32, #tpu.memory_space<vmem>>, vector<64x256xf32>
    %cst_96 = arith.constant dense<0.000000e+00> : vector<64x256xf32>
    %332 = tpu.matmul %330, %331, %cst_96 {dimension_numbers = #tpu.dot_dimension_numbers<[1], [0], [0], [1], [0, 0, 1, 1], [], []>} : vector<64x64xf32>, vector<64x256xf32>, vector<64x256xf32> -> vector<64x256xf32>
    %c0_97 = arith.constant 0 : index
    %c0_98 = arith.constant 0 : index
    %333 = vector.load %arg6[%c0_97, %c0_98] : memref<1x256xf32, #tpu.memory_space<vmem>>, vector<1x256xf32>
    %334 = vector.broadcast %333 : vector<1x256xf32> to vector<64x256xf32>
    %335 = arith.addf %332, %334 : vector<64x256xf32>
    %c0_99 = arith.constant 0 : index
    %c0_100 = arith.constant 0 : index
    %336 = vector.load %arg12[%c0_99, %c0_100] : memref<64x256xf32, #tpu.memory_space<vmem>>, vector<64x256xf32>
    tpu.vector_store %arg12[%c0_99, %c0_100], %335 {strides = array<i32>} : memref<64x256xf32, #tpu.memory_space<vmem>>, vector<64x256xf32>,
    %c0_101 = arith.constant 0 : index
    %c0_102 = arith.constant 0 : index
    %337 = vector.load %arg5[%c0_101, %c0_102] : memref<64x256xf32, #tpu.memory_space<vmem>>, vector<32x128xf32>
    %cst_103 = arith.constant 0.000000e+00 : f32
    %338 = vector.broadcast %cst_103 : f32 to vector<8x32xf32>
    %cst_104 = arith.constant 0.000000e+00 : f32
    %339 = vector.broadcast %cst_104 : f32 to vector<8x32xf32>
    %cst_105 = arith.constant dense<0.000000e+00> : vector<8x128xf32>
    %340 = tpu.matmul %338, %337, %cst_105 {dimension_numbers = #tpu.dot_dimension_numbers<[1], [0], [0], [1], [0, 0, 1, 1], [], []>} : vector<8x32xf32>, vector<32x128xf32>, vector<8x128xf32> -> vector<8x128xf32>
    %c0_106 = arith.constant 0 : index
    %c0_107 = arith.constant 0 : index
    %341 = vector.load %arg12[%c0_106, %c0_107] : memref<64x256xf32, #tpu.memory_space<vmem>>, vector<8x128xf32>
    %342 = arith.addf %341, %340 : vector<8x128xf32>
    %343 = arith.negf %342 : vector<8x128xf32>
    %344 = math.exp %343 : vector<8x128xf32>
    %cst_108 = arith.constant 1.000000e+00 : f32
    %345 = vector.broadcast %cst_108 : f32 to vector<8x128xf32>
    %346 = arith.addf %345, %344 : vector<8x128xf32>
    %347 = arith.divf %345, %346 : vector<8x128xf32>
    %348 = vector.extract_strided_slice %347 {offsets = [0, 0], sizes = [8, 32], strides = [1, 1]} : vector<8x128xf32> to vector<8x32xf32>
    %349 = vector.extract_strided_slice %347 {offsets = [0, 32], sizes = [8, 32], strides = [1, 1]} : vector<8x128xf32> to vector<8x32xf32>
    %350 = vector.extract_strided_slice %347 {offsets = [0, 96], sizes = [8, 32], strides = [1, 1]} : vector<8x128xf32> to vector<8x32xf32>
    %351 = vector.extract_strided_slice %342 {offsets = [0, 64], sizes = [8, 32], strides = [1, 1]} : vector<8x128xf32> to vector<8x32xf32>
    %352 = math.tanh %351 : vector<8x32xf32>
    %353 = arith.mulf %349, %339 : vector<8x32xf32>
    %354 = arith.mulf %348, %352 : vector<8x32xf32>
    %355 = arith.addf %353, %354 : vector<8x32xf32>
    %356 = math.tanh %355 : vector<8x32xf32>
    %357 = arith.mulf %350, %356 : vector<8x32xf32>
    %cst_109 = arith.constant dense<0.000000e+00> : vector<8x128xf32>
    %358 = tpu.matmul %357, %337, %cst_109 {dimension_numbers = #tpu.dot_dimension_numbers<[1], [0], [0], [1], [0, 0, 1, 1], [], []>} : vector<8x32xf32>, vector<32x128xf32>, vector<8x128xf32> -> vector<8x128xf32>
    %c8_110 = arith.constant 8 : index
    %c0_111 = arith.constant 0 : index
    %359 = vector.load %arg12[%c8_110, %c0_111] : memref<64x256xf32, #tpu.memory_space<vmem>>, vector<8x128xf32>
    %360 = arith.addf %359, %358 : vector<8x128xf32>
    %361 = arith.negf %360 : vector<8x128xf32>
    %362 = math.exp %361 : vector<8x128xf32>
    %cst_112 = arith.constant 1.000000e+00 : f32
    %363 = vector.broadcast %cst_112 : f32 to vector<8x128xf32>
    %364 = arith.addf %363, %362 : vector<8x128xf32>
    %365 = arith.divf %363, %364 : vector<8x128xf32>
    %366 = vector.extract_strided_slice %365 {offsets = [0, 0], sizes = [8, 32], strides = [1, 1]} : vector<8x128xf32> to vector<8x32xf32>
    %367 = vector.extract_strided_slice %365 {offsets = [0, 32], sizes = [8, 32], strides = [1, 1]} : vector<8x128xf32> to vector<8x32xf32>
    %368 = vector.extract_strided_slice %365 {offsets = [0, 96], sizes = [8, 32], strides = [1, 1]} : vector<8x128xf32> to vector<8x32xf32>
    %369 = vector.extract_strided_slice %360 {offsets = [0, 64], sizes = [8, 32], strides = [1, 1]} : vector<8x128xf32> to vector<8x32xf32>
    %370 = math.tanh %369 : vector<8x32xf32>
    %371 = arith.mulf %367, %355 : vector<8x32xf32>
    %372 = arith.mulf %366, %370 : vector<8x32xf32>
    %373 = arith.addf %371, %372 : vector<8x32xf32>
    %374 = math.tanh %373 : vector<8x32xf32>
    %375 = arith.mulf %368, %374 : vector<8x32xf32>
    %cst_113 = arith.constant dense<0.000000e+00> : vector<8x128xf32>
    %376 = tpu.matmul %375, %337, %cst_113 {dimension_numbers = #tpu.dot_dimension_numbers<[1], [0], [0], [1], [0, 0, 1, 1], [], []>} : vector<8x32xf32>, vector<32x128xf32>, vector<8x128xf32> -> vector<8x128xf32>
    %c16_114 = arith.constant 16 : index
    %c0_115 = arith.constant 0 : index
    %377 = vector.load %arg12[%c16_114, %c0_115] : memref<64x256xf32, #tpu.memory_space<vmem>>, vector<8x128xf32>
    %378 = arith.addf %377, %376 : vector<8x128xf32>
    %379 = arith.negf %378 : vector<8x128xf32>
    %380 = math.exp %379 : vector<8x128xf32>
    %cst_116 = arith.constant 1.000000e+00 : f32
    %381 = vector.broadcast %cst_116 : f32 to vector<8x128xf32>
    %382 = arith.addf %381, %380 : vector<8x128xf32>
    %383 = arith.divf %381, %382 : vector<8x128xf32>
    %384 = vector.extract_strided_slice %383 {offsets = [0, 0], sizes = [8, 32], strides = [1, 1]} : vector<8x128xf32> to vector<8x32xf32>
    %385 = vector.extract_strided_slice %383 {offsets = [0, 32], sizes = [8, 32], strides = [1, 1]} : vector<8x128xf32> to vector<8x32xf32>
    %386 = vector.extract_strided_slice %383 {offsets = [0, 96], sizes = [8, 32], strides = [1, 1]} : vector<8x128xf32> to vector<8x32xf32>
    %387 = vector.extract_strided_slice %378 {offsets = [0, 64], sizes = [8, 32], strides = [1, 1]} : vector<8x128xf32> to vector<8x32xf32>
    %388 = math.tanh %387 : vector<8x32xf32>
    %389 = arith.mulf %385, %373 : vector<8x32xf32>
    %390 = arith.mulf %384, %388 : vector<8x32xf32>
    %391 = arith.addf %389, %390 : vector<8x32xf32>
    %392 = math.tanh %391 : vector<8x32xf32>
    %393 = arith.mulf %386, %392 : vector<8x32xf32>
    %cst_117 = arith.constant dense<0.000000e+00> : vector<8x128xf32>
    %394 = tpu.matmul %393, %337, %cst_117 {dimension_numbers = #tpu.dot_dimension_numbers<[1], [0], [0], [1], [0, 0, 1, 1], [], []>} : vector<8x32xf32>, vector<32x128xf32>, vector<8x128xf32> -> vector<8x128xf32>
    %c24_118 = arith.constant 24 : index
    %c0_119 = arith.constant 0 : index
    %395 = vector.load %arg12[%c24_118, %c0_119] : memref<64x256xf32, #tpu.memory_space<vmem>>, vector<8x128xf32>
    %396 = arith.addf %395, %394 : vector<8x128xf32>
    %397 = arith.negf %396 : vector<8x128xf32>
    %398 = math.exp %397 : vector<8x128xf32>
    %cst_120 = arith.constant 1.000000e+00 : f32
    %399 = vector.broadcast %cst_120 : f32 to vector<8x128xf32>
    %400 = arith.addf %399, %398 : vector<8x128xf32>
    %401 = arith.divf %399, %400 : vector<8x128xf32>
    %402 = vector.extract_strided_slice %401 {offsets = [0, 0], sizes = [8, 32], strides = [1, 1]} : vector<8x128xf32> to vector<8x32xf32>
    %403 = vector.extract_strided_slice %401 {offsets = [0, 32], sizes = [8, 32], strides = [1, 1]} : vector<8x128xf32> to vector<8x32xf32>
    %404 = vector.extract_strided_slice %401 {offsets = [0, 96], sizes = [8, 32], strides = [1, 1]} : vector<8x128xf32> to vector<8x32xf32>
    %405 = vector.extract_strided_slice %396 {offsets = [0, 64], sizes = [8, 32], strides = [1, 1]} : vector<8x128xf32> to vector<8x32xf32>
    %406 = math.tanh %405 : vector<8x32xf32>
    %407 = arith.mulf %403, %391 : vector<8x32xf32>
    %408 = arith.mulf %402, %406 : vector<8x32xf32>
    %409 = arith.addf %407, %408 : vector<8x32xf32>
    %410 = math.tanh %409 : vector<8x32xf32>
    %411 = arith.mulf %404, %410 : vector<8x32xf32>
    %cst_121 = arith.constant dense<0.000000e+00> : vector<8x128xf32>
    %412 = tpu.matmul %411, %337, %cst_121 {dimension_numbers = #tpu.dot_dimension_numbers<[1], [0], [0], [1], [0, 0, 1, 1], [], []>} : vector<8x32xf32>, vector<32x128xf32>, vector<8x128xf32> -> vector<8x128xf32>
    %c32_122 = arith.constant 32 : index
    %c0_123 = arith.constant 0 : index
    %413 = vector.load %arg12[%c32_122, %c0_123] : memref<64x256xf32, #tpu.memory_space<vmem>>, vector<8x128xf32>
    %414 = arith.addf %413, %412 : vector<8x128xf32>
    %415 = arith.negf %414 : vector<8x128xf32>
    %416 = math.exp %415 : vector<8x128xf32>
    %cst_124 = arith.constant 1.000000e+00 : f32
    %417 = vector.broadcast %cst_124 : f32 to vector<8x128xf32>
    %418 = arith.addf %417, %416 : vector<8x128xf32>
    %419 = arith.divf %417, %418 : vector<8x128xf32>
    %420 = vector.extract_strided_slice %419 {offsets = [0, 0], sizes = [8, 32], strides = [1, 1]} : vector<8x128xf32> to vector<8x32xf32>
    %421 = vector.extract_strided_slice %419 {offsets = [0, 32], sizes = [8, 32], strides = [1, 1]} : vector<8x128xf32> to vector<8x32xf32>
    %422 = vector.extract_strided_slice %419 {offsets = [0, 96], sizes = [8, 32], strides = [1, 1]} : vector<8x128xf32> to vector<8x32xf32>
    %423 = vector.extract_strided_slice %414 {offsets = [0, 64], sizes = [8, 32], strides = [1, 1]} : vector<8x128xf32> to vector<8x32xf32>
    %424 = math.tanh %423 : vector<8x32xf32>
    %425 = arith.mulf %421, %409 : vector<8x32xf32>
    %426 = arith.mulf %420, %424 : vector<8x32xf32>
    %427 = arith.addf %425, %426 : vector<8x32xf32>
    %428 = math.tanh %427 : vector<8x32xf32>
    %429 = arith.mulf %422, %428 : vector<8x32xf32>
    %cst_125 = arith.constant dense<0.000000e+00> : vector<8x128xf32>
    %430 = tpu.matmul %429, %337, %cst_125 {dimension_numbers = #tpu.dot_dimension_numbers<[1], [0], [0], [1], [0, 0, 1, 1], [], []>} : vector<8x32xf32>, vector<32x128xf32>, vector<8x128xf32> -> vector<8x128xf32>
    %c40_126 = arith.constant 40 : index
    %c0_127 = arith.constant 0 : index
    %431 = vector.load %arg12[%c40_126, %c0_127] : memref<64x256xf32, #tpu.memory_space<vmem>>, vector<8x128xf32>
    %432 = arith.addf %431, %430 : vector<8x128xf32>
    %433 = arith.negf %432 : vector<8x128xf32>
    %434 = math.exp %433 : vector<8x128xf32>
    %cst_128 = arith.constant 1.000000e+00 : f32
    %435 = vector.broadcast %cst_128 : f32 to vector<8x128xf32>
    %436 = arith.addf %435, %434 : vector<8x128xf32>
    %437 = arith.divf %435, %436 : vector<8x128xf32>
    %438 = vector.extract_strided_slice %437 {offsets = [0, 0], sizes = [8, 32], strides = [1, 1]} : vector<8x128xf32> to vector<8x32xf32>
    %439 = vector.extract_strided_slice %437 {offsets = [0, 32], sizes = [8, 32], strides = [1, 1]} : vector<8x128xf32> to vector<8x32xf32>
    %440 = vector.extract_strided_slice %437 {offsets = [0, 96], sizes = [8, 32], strides = [1, 1]} : vector<8x128xf32> to vector<8x32xf32>
    %441 = vector.extract_strided_slice %432 {offsets = [0, 64], sizes = [8, 32], strides = [1, 1]} : vector<8x128xf32> to vector<8x32xf32>
    %442 = math.tanh %441 : vector<8x32xf32>
    %443 = arith.mulf %439, %427 : vector<8x32xf32>
    %444 = arith.mulf %438, %442 : vector<8x32xf32>
    %445 = arith.addf %443, %444 : vector<8x32xf32>
    %446 = math.tanh %445 : vector<8x32xf32>
    %447 = arith.mulf %440, %446 : vector<8x32xf32>
    %cst_129 = arith.constant dense<0.000000e+00> : vector<8x128xf32>
    %448 = tpu.matmul %447, %337, %cst_129 {dimension_numbers = #tpu.dot_dimension_numbers<[1], [0], [0], [1], [0, 0, 1, 1], [], []>} : vector<8x32xf32>, vector<32x128xf32>, vector<8x128xf32> -> vector<8x128xf32>
    %c48_130 = arith.constant 48 : index
    %c0_131 = arith.constant 0 : index
    %449 = vector.load %arg12[%c48_130, %c0_131] : memref<64x256xf32, #tpu.memory_space<vmem>>, vector<8x128xf32>
    %450 = arith.addf %449, %448 : vector<8x128xf32>
    %451 = arith.negf %450 : vector<8x128xf32>
    %452 = math.exp %451 : vector<8x128xf32>
    %cst_132 = arith.constant 1.000000e+00 : f32
    %453 = vector.broadcast %cst_132 : f32 to vector<8x128xf32>
    %454 = arith.addf %453, %452 : vector<8x128xf32>
    %455 = arith.divf %453, %454 : vector<8x128xf32>
    %456 = vector.extract_strided_slice %455 {offsets = [0, 0], sizes = [8, 32], strides = [1, 1]} : vector<8x128xf32> to vector<8x32xf32>
    %457 = vector.extract_strided_slice %455 {offsets = [0, 32], sizes = [8, 32], strides = [1, 1]} : vector<8x128xf32> to vector<8x32xf32>
    %458 = vector.extract_strided_slice %455 {offsets = [0, 96], sizes = [8, 32], strides = [1, 1]} : vector<8x128xf32> to vector<8x32xf32>
    %459 = vector.extract_strided_slice %450 {offsets = [0, 64], sizes = [8, 32], strides = [1, 1]} : vector<8x128xf32> to vector<8x32xf32>
    %460 = math.tanh %459 : vector<8x32xf32>
    %461 = arith.mulf %457, %445 : vector<8x32xf32>
    %462 = arith.mulf %456, %460 : vector<8x32xf32>
    %463 = arith.addf %461, %462 : vector<8x32xf32>
    %464 = math.tanh %463 : vector<8x32xf32>
    %465 = arith.mulf %458, %464 : vector<8x32xf32>
    %cst_133 = arith.constant dense<0.000000e+00> : vector<8x128xf32>
    %466 = tpu.matmul %465, %337, %cst_133 {dimension_numbers = #tpu.dot_dimension_numbers<[1], [0], [0], [1], [0, 0, 1, 1], [], []>} : vector<8x32xf32>, vector<32x128xf32>, vector<8x128xf32> -> vector<8x128xf32>
    %c56_134 = arith.constant 56 : index
    %c0_135 = arith.constant 0 : index
    %467 = vector.load %arg12[%c56_134, %c0_135] : memref<64x256xf32, #tpu.memory_space<vmem>>, vector<8x128xf32>
    %468 = arith.addf %467, %466 : vector<8x128xf32>
    %469 = arith.negf %468 : vector<8x128xf32>
    %470 = math.exp %469 : vector<8x128xf32>
    %cst_136 = arith.constant 1.000000e+00 : f32
    %471 = vector.broadcast %cst_136 : f32 to vector<8x128xf32>
    %472 = arith.addf %471, %470 : vector<8x128xf32>
    %473 = arith.divf %471, %472 : vector<8x128xf32>
    %474 = vector.extract_strided_slice %473 {offsets = [0, 0], sizes = [8, 32], strides = [1, 1]} : vector<8x128xf32> to vector<8x32xf32>
    %475 = vector.extract_strided_slice %473 {offsets = [0, 32], sizes = [8, 32], strides = [1, 1]} : vector<8x128xf32> to vector<8x32xf32>
    %476 = vector.extract_strided_slice %473 {offsets = [0, 96], sizes = [8, 32], strides = [1, 1]} : vector<8x128xf32> to vector<8x32xf32>
    %477 = vector.extract_strided_slice %468 {offsets = [0, 64], sizes = [8, 32], strides = [1, 1]} : vector<8x128xf32> to vector<8x32xf32>
    %478 = math.tanh %477 : vector<8x32xf32>
    %479 = arith.mulf %475, %463 : vector<8x32xf32>
    %480 = arith.mulf %474, %478 : vector<8x32xf32>
    %481 = arith.addf %479, %480 : vector<8x32xf32>
    %482 = math.tanh %481 : vector<8x32xf32>
    %483 = arith.mulf %476, %482 : vector<8x32xf32>
    %c56_137 = arith.constant 56 : index
    %c128_138 = arith.constant 128 : index
    %484 = vector.load %arg12[%c56_137, %c128_138] : memref<64x256xf32, #tpu.memory_space<vmem>>, vector<8x128xf32>
    %485 = arith.negf %484 : vector<8x128xf32>
    %486 = math.exp %485 : vector<8x128xf32>
    %cst_139 = arith.constant 1.000000e+00 : f32
    %487 = vector.broadcast %cst_139 : f32 to vector<8x128xf32>
    %488 = arith.addf %487, %486 : vector<8x128xf32>
    %489 = arith.divf %487, %488 : vector<8x128xf32>
    %490 = vector.extract_strided_slice %489 {offsets = [0, 0], sizes = [8, 32], strides = [1, 1]} : vector<8x128xf32> to vector<8x32xf32>
    %491 = vector.extract_strided_slice %489 {offsets = [0, 96], sizes = [8, 32], strides = [1, 1]} : vector<8x128xf32> to vector<8x32xf32>
    %492 = vector.extract_strided_slice %484 {offsets = [0, 64], sizes = [8, 32], strides = [1, 1]} : vector<8x128xf32> to vector<8x32xf32>
    %493 = math.tanh %492 : vector<8x32xf32>
    %494 = arith.mulf %490, %493 : vector<8x32xf32>
    %495 = math.tanh %494 : vector<8x32xf32>
    %496 = arith.mulf %491, %495 : vector<8x32xf32>
    %497 = tpu.concatenate %483, %496 in 1 : vector<8x32xf32>, vector<8x32xf32> -> vector<8x64xf32>
    %c0_140 = arith.constant 0 : index
    %c0_141 = arith.constant 0 : index
    %498 = vector.load %arg7[%c0_140, %c0_141] : memref<64x32xf32, #tpu.memory_space<vmem>>, vector<64x32xf32>
    %cst_142 = arith.constant dense<0.000000e+00> : vector<8x32xf32>
    %499 = tpu.matmul %497, %498, %cst_142 {dimension_numbers = #tpu.dot_dimension_numbers<[1], [0], [0], [1], [0, 0, 1, 1], [], []>} : vector<8x64xf32>, vector<64x32xf32>, vector<8x32xf32> -> vector<8x32xf32>
    %c0_143 = arith.constant 0 : index
    %c0_144 = arith.constant 0 : index
    %500 = vector.load %arg8[%c0_143, %c0_144] : memref<1x32xf32, #tpu.memory_space<vmem>>, vector<1x32xf32>
    %501 = vector.broadcast %500 : vector<1x32xf32> to vector<8x32xf32>
    %502 = arith.addf %499, %501 : vector<8x32xf32>
    %cst_145 = arith.constant 0.000000e+00 : f32
    %503 = vector.broadcast %cst_145 : f32 to vector<8x32xf32>
    %504 = arith.maximumf %502, %503 : vector<8x32xf32>
    %c0_146 = arith.constant 0 : index
    %c0_147 = arith.constant 0 : index
    %505 = vector.load %arg9[%c0_146, %c0_147] : memref<32x128xf32, #tpu.memory_space<vmem>>, vector<32x128xf32>
    %cst_148 = arith.constant dense<0.000000e+00> : vector<8x128xf32>
    %506 = tpu.matmul %504, %505, %cst_148 {dimension_numbers = #tpu.dot_dimension_numbers<[1], [0], [0], [1], [0, 0, 1, 1], [], []>} : vector<8x32xf32>, vector<32x128xf32>, vector<8x128xf32> -> vector<8x128xf32>
    %c0_149 = arith.constant 0 : index
    %c0_150 = arith.constant 0 : index
    %507 = vector.load %arg10[%c0_149, %c0_150] : memref<1x128xf32, #tpu.memory_space<vmem>>, vector<1x128xf32>
    %508 = vector.broadcast %507 : vector<1x128xf32> to vector<8x128xf32>
    %509 = arith.addf %506, %508 : vector<8x128xf32>
    %c0_151 = arith.constant 0 : index
    %c0_152 = arith.constant 0 : index
    %510 = vector.load %arg11[%c0_151, %c0_152] : memref<8x128xf32, #tpu.memory_space<vmem>>, vector<8x128xf32>
    tpu.vector_store %arg11[%c0_151, %c0_152], %509 {strides = array<i32>} : memref<8x128xf32, #tpu.memory_space<vmem>>, vector<8x128xf32>,
    return
  }
}

</mosaic_0001>

<llo_original>
// kernel: lstm_model_forward.1
$region0: #{lstm_model_forward.1}
  #allocation0 [shape = 'u32[]', space=smem, size = 0x4, offset = 0x4, fixed_abs, tag = 'smem constant byte address 0x4 - core index']
  #allocation1 [shape = 'u32[144,128]{1,0:T(1,128)}', space=vmem, size = 0x12000, scoped, tag = 'internal scratch']
  #allocation2 [shape = 'f32[64,256]{1,0:T(8,128)}', space=vmem, size = 0x10000, scoped, tag = 'scratch operand']
  #allocation3 [shape = 'f32[64,64]{1,0:T(8,128)}', space=vmem, size = 0x8000, scoped, tag = 'scratch operand']
  %s0 = inlined_call_operand.vmem [shape: f32[64,16], index: 0, kind: input, shape index: {}]
  %s1 = inlined_call_operand.vmem [shape: f32[16,256], index: 1, kind: input, shape index: {}]
  %s2 = inlined_call_operand.vmem [shape: f32[64,256], index: 2, kind: input, shape index: {}]
  %s3 = inlined_call_operand.vmem [shape: f32[1,256], index: 3, kind: input, shape index: {}]
  %s4 = inlined_call_operand.vmem [shape: f32[64,256], index: 4, kind: input, shape index: {}]
  %s5 = inlined_call_operand.vmem [shape: f32[64,256], index: 5, kind: input, shape index: {}]
  %s6 = inlined_call_operand.vmem [shape: f32[1,256], index: 6, kind: input, shape index: {}]
  %s7 = inlined_call_operand.vmem [shape: f32[64,32], index: 7, kind: input, shape index: {}]
  %s8 = inlined_call_operand.vmem [shape: f32[1,32], index: 8, kind: input, shape index: {}]
  %s9 = inlined_call_operand.vmem [shape: f32[32,128], index: 9, kind: input, shape index: {}]
  %s10 = inlined_call_operand.vmem [shape: f32[1,128], index: 10, kind: input, shape index: {}]
  %s11 = inlined_call_operand.vmem [shape: f32[8,128], index: 11, kind: output, shape index: {}]
  %s12 = sld [smem:[#allocation0]]
  $region54: #{lstm_model_forward.1} parent=0
    _
  %s14 = ssub.s32 1, %s12
  %s15 = scalar_select 0, %s14, %s12
  // Predicated region
  $region2: #{lstm_model_forward.1} parent=0 // pred_check
    _
  $region3: #{lstm_model_forward.1} parent=0 // pred_check_branch
    %17 = sbr.rel (0) target = $region5
  $region4: #{lstm_model_forward.1} parent=0 // pred_region
    _
  $region5: #{lstm_model_forward.1} parent=0 // pred_fallthru
    _
  // Predicated region
  $region6: #{lstm_model_forward.1} parent=0 // pred_check
    _
  $region7: #{lstm_model_forward.1} parent=0 // pred_check_branch
    %19 = sbr.rel (0) target = $region9
  $region8: #{lstm_model_forward.1} parent=0 // pred_region
    _
  $region9: #{lstm_model_forward.1} parent=0 // pred_fallthru
    _
  // Predicated region
  $region10: #{lstm_model_forward.1} parent=0 // pred_check
    _
  $region11: #{lstm_model_forward.1} parent=0 // pred_check_branch
    %21 = sbr.rel (0) target = $region13
  $region12: #{lstm_model_forward.1} parent=0 // pred_region
    _
  $region13: #{lstm_model_forward.1} parent=0 // pred_fallthru
    _
  // Predicated region
  $region14: #{lstm_model_forward.1} parent=0 // pred_check
    _
  $region15: #{lstm_model_forward.1} parent=0 // pred_check_branch
    %23 = sbr.rel (0) target = $region17
  $region16: #{lstm_model_forward.1} parent=0 // pred_region
    _
  $region17: #{lstm_model_forward.1} parent=0 // pred_fallthru
    _
  // Predicated region
  $region18: #{lstm_model_forward.1} parent=0 // pred_check
    _
  $region19: #{lstm_model_forward.1} parent=0 // pred_check_branch
    %25 = sbr.rel (0) target = $region21
  $region20: #{lstm_model_forward.1} parent=0 // pred_region
    _
  $region21: #{lstm_model_forward.1} parent=0 // pred_fallthru
    _
  // Predicated region
  $region22: #{lstm_model_forward.1} parent=0 // pred_check
    _
  $region23: #{lstm_model_forward.1} parent=0 // pred_check_branch
    %27 = sbr.rel (0) target = $region25
  $region24: #{lstm_model_forward.1} parent=0 // pred_region
    _
  $region25: #{lstm_model_forward.1} parent=0 // pred_fallthru
    _
  // Predicated region
  $region26: #{lstm_model_forward.1} parent=0 // pred_check
    _
  $region27: #{lstm_model_forward.1} parent=0 // pred_check_branch
    %29 = sbr.rel (0) target = $region29
  $region28: #{lstm_model_forward.1} parent=0 // pred_region
    _
  $region29: #{lstm_model_forward.1} parent=0 // pred_fallthru
    _
  // Predicated region
  $region30: #{lstm_model_forward.1} parent=0 // pred_check
    _
  $region31: #{lstm_model_forward.1} parent=0 // pred_check_branch
    %31 = sbr.rel (0) target = $region33
  $region32: #{lstm_model_forward.1} parent=0 // pred_region
    _
  $region33: #{lstm_model_forward.1} parent=0 // pred_fallthru
    _
  // Predicated region
  $region34: #{lstm_model_forward.1} parent=0 // pred_check
    _
  $region35: #{lstm_model_forward.1} parent=0 // pred_check_branch
    %33 = sbr.rel (0) target = $region37
  $region36: #{lstm_model_forward.1} parent=0 // pred_region
    _
  $region37: #{lstm_model_forward.1} parent=0 // pred_fallthru
    _
  // Predicated region
  $region38: #{lstm_model_forward.1} parent=0 // pred_check
    _
  $region39: #{lstm_model_forward.1} parent=0 // pred_check_branch
    %35 = sbr.rel (0) target = $region41
  $region40: #{lstm_model_forward.1} parent=0 // pred_region
    _
  $region41: #{lstm_model_forward.1} parent=0 // pred_fallthru
    _
  // Predicated region
  $region42: #{lstm_model_forward.1} parent=0 // pred_check
    _
  $region43: #{lstm_model_forward.1} parent=0 // pred_check_branch
    %37 = sbr.rel (0) target = $region45
  $region44: #{lstm_model_forward.1} parent=0 // pred_region
    _
  $region45: #{lstm_model_forward.1} parent=0 // pred_fallthru
    _
  %v38 = vld [vmem:[%s0] sm:$0xff]
  %v39 = vld [vmem:[%s0 + $0x8] sm:$0xff]
  %v40 = vld [vmem:[%s0 + $0x10] sm:$0xff]
  %v41 = vld [vmem:[%s0 + $0x18] sm:$0xff]
  %v42 = vld [vmem:[%s0 + $0x20] sm:$0xff]
  %v43 = vld [vmem:[%s0 + $0x28] sm:$0xff]
  %v44 = vld [vmem:[%s0 + $0x30] sm:$0xff]
  %v45 = vld [vmem:[%s0 + $0x38] sm:$0xff]
  %v46 = vld [vmem:[%s1] sm:$0xff]
  %v47 = vld [vmem:[%s1 + $0x8] sm:$0xff]
  %v48 = vld [vmem:[%s1 + $0x10] sm:$0xff]
  %v49 = vld [vmem:[%s1 + $0x18] sm:$0xff]
  %v50 = vld [vmem:[%s3] sm:$0x3]
  %v52 = vlaneseq
  %v53 = vshrl.u32 %v52, 7
  %v54 = vsub.s32 0, %v53
  %v55 = vrot.slane %v50, %v54
  %v56 = vlaneseq
  %v57 = vshrl.u32 %v56, 7
  %v58 = vsub.s32 1, %v57
  %v59 = vrot.slane %v50, %v58
  %vm62 = vcmask 130048
  %v64 = vsel %vm62, %v38, 0
  %v67 = vsel %vm62, %v39, 0
  %v70 = vsel %vm62, %v40, 0
  %v73 = vsel %vm62, %v41, 0
  %v76 = vsel %vm62, %v42, 0
  %v79 = vsel %vm62, %v43, 0
  %v82 = vsel %vm62, %v44, 0
  %v85 = vsel %vm62, %v45, 0
  %87 = vmatprep.subr.mxu0 %v47
  %88 = vmatpush1.msra.mxu0 %v46
  %89 = vmatprep.subr.mxu0 %v49
  %90 = vmatpush1.msra.mxu0 %v48
  %91 = vmatprep.subr.mxu0 0.0
  %92 = vmatpush1.msra.mxu0 0.0
  %93 = vmatprep.subr.mxu0 0.0
  %94 = vmatpush1.msra.mxu0 0.0
  %95 = vmatprep.subr.mxu0 0.0
  %96 = vmatpush1.msra.mxu0 0.0
  %97 = vmatprep.subr.mxu0 0.0
  %98 = vmatpush1.msra.mxu0 0.0
  %99 = vmatprep.subr.mxu0 0.0
  %100 = vmatpush1.msra.mxu0 0.0
  %101 = vmatprep.subr.mxu0 0.0
  %102 = vmatpush1.msra.mxu0 0.0
  %103 = vmatprep.subr.mxu0 0.0
  %104 = vmatpush1.msra.mxu0 0.0
  %105 = vmatprep.subr.mxu0 0.0
  %106 = vmatpush1.msra.mxu0 0.0
  %107 = vmatprep.subr.mxu0 0.0
  %108 = vmatpush1.msra.mxu0 0.0
  %109 = vmatprep.subr.mxu0 0.0
  %110 = vmatpush1.msra.mxu0 0.0
  %111 = vmatprep.subr.mxu0 0.0
  %112 = vmatpush1.msra.mxu0 0.0
  %113 = vmatprep.subr.mxu0 0.0
  %114 = vmatpush1.msra.mxu0 0.0
  %115 = vmatprep.subr.mxu0 0.0
  %116 = vmatpush1.msra.mxu0 0.0
  %117 = vmatprep.subr.mxu0 0.0
  %118 = vmatpush1.msra.mxu0 0.0
  %119 = vmatprep.subr.mxu0 0.0
  %120 = vmatpush1.msra.mxu0 0.0
  %121 = vmatprep.subr.mxu0 0.0
  %122 = vmatpush1.msra.mxu0 0.0
  %123 = vmatprep.subr.mxu0 0.0
  %124 = vmatpush1.msra.mxu0 0.0
  %125 = vmatprep.subr.mxu0 0.0
  %126 = vmatpush1.msra.mxu0 0.0
  %127 = vmatprep.subr.mxu0 0.0
  %128 = vmatpush1.msra.mxu0 0.0
  %129 = vmatprep.subr.mxu0 0.0
  %130 = vmatpush1.msra.mxu0 0.0
  %131 = vmatprep.subr.mxu0 0.0
  %132 = vmatpush1.msra.mxu0 0.0
  %133 = vmatprep.subr.mxu0 0.0
  %134 = vmatpush1.msra.mxu0 0.0
  %135 = vmatprep.subr.mxu0 0.0
  %136 = vmatpush1.msra.mxu0 0.0
  %137 = vmatprep.subr.mxu0 0.0
  %138 = vmatpush1.msra.mxu0 0.0
  %139 = vmatprep.subr.mxu0 0.0
  %140 = vmatpush1.msra.mxu0 0.0
  %141 = vmatprep.subr.mxu0 0.0
  %142 = vmatpush1.msra.mxu0 0.0
  %143 = vmatprep.subr.mxu0 0.0
  %144 = vmatpush1.msra.mxu0 0.0
  %145 = vmatprep.subr.mxu0 0.0
  %146 = vmatpush1.msra.mxu0 0.0
  %147 = vmatprep.subr.mxu0 0.0
  %148 = vmatpush1.msra.mxu0 0.0
  %149 = vmatprep.subr.mxu0 0.0
  %150 = vmatpush1.msra.mxu0 0.0
  %151 = vmatprep.mubr.f32.mxu0 0.0
  %152 = vmatmul.mubr.f32.gmra.mrb[0].mxu0 %v64
  %v153 = vpop.f32.mrb[0].mxu0
  %v154 = vadd.f32 %v55, %v153
  %v155 = vpop.f32.mrb[0].mxu0
  %v156 = vadd.f32 %v59, %v155
  %157 = vmatprep.mubr.f32.mxu0 0.0
  %158 = vmatmul.mubr.f32.gmra.mrb[0].mxu0 %v67
  %v159 = vpop.f32.mrb[0].mxu0
  %v160 = vadd.f32 %v55, %v159
  %v161 = vpop.f32.mrb[0].mxu0
  %v162 = vadd.f32 %v59, %v161
  %163 = vmatprep.mubr.f32.mxu0 0.0
  %164 = vmatmul.mubr.f32.gmra.mrb[0].mxu0 %v70
  %v165 = vpop.f32.mrb[0].mxu0
  %v166 = vadd.f32 %v55, %v165
  %v167 = vpop.f32.mrb[0].mxu0
  %v168 = vadd.f32 %v59, %v167
  %169 = vmatprep.mubr.f32.mxu0 0.0
  %170 = vmatmul.mubr.f32.gmra.mrb[0].mxu0 %v73
  %v171 = vpop.f32.mrb[0].mxu0
  %v172 = vadd.f32 %v55, %v171
  %v173 = vpop.f32.mrb[0].mxu0
  %v174 = vadd.f32 %v59, %v173
  %175 = vmatprep.mubr.f32.mxu0 0.0
  %176 = vmatmul.mubr.f32.gmra.mrb[0].mxu0 %v76
  %v177 = vpop.f32.mrb[0].mxu0
  %v178 = vadd.f32 %v55, %v177
  %v179 = vpop.f32.mrb[0].mxu0
  %v180 = vadd.f32 %v59, %v179
  %181 = vmatprep.mubr.f32.mxu0 0.0
  %182 = vmatmul.mubr.f32.gmra.mrb[0].mxu0 %v79
  %v183 = vpop.f32.mrb[0].mxu0
  %v184 = vadd.f32 %v55, %v183
  %v185 = vpop.f32.mrb[0].mxu0
  %v186 = vadd.f32 %v59, %v185
  %187 = vmatprep.mubr.f32.mxu0 0.0
  %188 = vmatmul.mubr.f32.gmra.mrb[0].mxu0 %v82
  %v189 = vpop.f32.mrb[0].mxu0
  %v190 = vadd.f32 %v55, %v189
  %v191 = vpop.f32.mrb[0].mxu0
  %v192 = vadd.f32 %v59, %v191
  %193 = vmatprep.mubr.f32.mxu0 0.0
  %194 = vmatmul.mubr.f32.gmra.mrb[0].mxu0 %v85
  %v195 = vpop.f32.mrb[0].mxu0
  %v196 = vadd.f32 %v55, %v195
  %v197 = vpop.f32.mrb[0].mxu0
  %v198 = vadd.f32 %v59, %v197
  %199 = vdwg.mxu0
  %200 = vst [vmem:[#allocation2] sm:$0xff] %v154
  %201 = vst [vmem:[#allocation2 + $0x8] sm:$0xff] %v156
  %202 = vst [vmem:[#allocation2 + $0x10] sm:$0xff] %v160
  %203 = vst [vmem:[#allocation2 + $0x18] sm:$0xff] %v162
  %204 = vst [vmem:[#allocation2 + $0x20] sm:$0xff] %v166
  %205 = vst [vmem:[#allocation2 + $0x28] sm:$0xff] %v168
  %206 = vst [vmem:[#allocation2 + $0x30] sm:$0xff] %v172
  %207 = vst [vmem:[#allocation2 + $0x38] sm:$0xff] %v174
  %208 = vst [vmem:[#allocation2 + $0x40] sm:$0xff] %v178
  %209 = vst [vmem:[#allocation2 + $0x48] sm:$0xff] %v180
  %210 = vst [vmem:[#allocation2 + $0x50] sm:$0xff] %v184
  %211 = vst [vmem:[#allocation2 + $0x58] sm:$0xff] %v186
  %212 = vst [vmem:[#allocation2 + $0x60] sm:$0xff] %v190
  %213 = vst [vmem:[#allocation2 + $0x68] sm:$0xff] %v192
  %214 = vst [vmem:[#allocation2 + $0x70] sm:$0xff] %v196
  %215 = vst [vmem:[#allocation2 + $0x78] sm:$0xff] %v198
  %v216 = vld [vmem:[%s2] sm:$0xff]
  %v217 = vld [vmem:[%s2 + $0x8] sm:$0xff]
  %v218 = vld [vmem:[%s2 + $0x10] sm:$0xff]
  %v219 = vld [vmem:[%s2 + $0x18] sm:$0xff]
  %v220 = vld [vmem:[%s2 + $0x20] sm:$0xff]
  %v221 = vld [vmem:[%s2 + $0x28] sm:$0xff]
  %v222 = vld [vmem:[%s2 + $0x30] sm:$0xff]
  %v223 = vld [vmem:[%s2 + $0x38] sm:$0xff]
  %v224 = vld [vmem:[%s2 + $0x40] sm:$0xff]
  %v225 = vld [vmem:[%s2 + $0x48] sm:$0xff]
  %v226 = vld [vmem:[%s2 + $0x50] sm:$0xff]
  %v227 = vld [vmem:[%s2 + $0x58] sm:$0xff]
  %v228 = vld [vmem:[%s2 + $0x60] sm:$0xff]
  %v229 = vld [vmem:[%s2 + $0x68] sm:$0xff]
  %v230 = vld [vmem:[%s2 + $0x70] sm:$0xff]
  %v231 = vld [vmem:[%s2 + $0x78] sm:$0xff]
  %vm232 = vcmask 523264
  %v234 = vsel %vm232, 0.0, 0
  %236 = vmatprep.subr.mxu0 %v217
  %237 = vmatpush1.msra.mxu0 %v216
  %238 = vmatprep.subr.mxu0 %v219
  %239 = vmatpush1.msra.mxu0 %v218
  %240 = vmatprep.subr.mxu0 %v221
  %241 = vmatpush1.msra.mxu0 %v220
  %242 = vmatprep.subr.mxu0 %v223
  %243 = vmatpush1.msra.mxu0 %v222
  %244 = vmatprep.subr.mxu0 %v225
  %245 = vmatpush1.msra.mxu0 %v224
  %246 = vmatprep.subr.mxu0 %v227
  %247 = vmatpush1.msra.mxu0 %v226
  %248 = vmatprep.subr.mxu0 %v229
  %249 = vmatpush1.msra.mxu0 %v228
  %250 = vmatprep.subr.mxu0 %v231
  %251 = vmatpush1.msra.mxu0 %v230
  %252 = vmatprep.subr.mxu0 0.0
  %253 = vmatpush1.msra.mxu0 0.0
  %254 = vmatprep.subr.mxu0 0.0
  %255 = vmatpush1.msra.mxu0 0.0
  %256 = vmatprep.subr.mxu0 0.0
  %257 = vmatpush1.msra.mxu0 0.0
  %258 = vmatprep.subr.mxu0 0.0
  %259 = vmatpush1.msra.mxu0 0.0
  %260 = vmatprep.subr.mxu0 0.0
  %261 = vmatpush1.msra.mxu0 0.0
  %262 = vmatprep.subr.mxu0 0.0
  %263 = vmatpush1.msra.mxu0 0.0
  %264 = vmatprep.subr.mxu0 0.0
  %265 = vmatpush1.msra.mxu0 0.0
  %266 = vmatprep.subr.mxu0 0.0
  %267 = vmatpush1.msra.mxu0 0.0
  %268 = vmatprep.subr.mxu0 0.0
  %269 = vmatpush1.msra.mxu0 0.0
  %270 = vmatprep.subr.mxu0 0.0
  %271 = vmatpush1.msra.mxu0 0.0
  %272 = vmatprep.subr.mxu0 0.0
  %273 = vmatpush1.msra.mxu0 0.0
  %274 = vmatprep.subr.mxu0 0.0
  %275 = vmatpush1.msra.mxu0 0.0
  %276 = vmatprep.subr.mxu0 0.0
  %277 = vmatpush1.msra.mxu0 0.0
  %278 = vmatprep.subr.mxu0 0.0
  %279 = vmatpush1.msra.mxu0 0.0
  %280 = vmatprep.subr.mxu0 0.0
  %281 = vmatpush1.msra.mxu0 0.0
  %282 = vmatprep.subr.mxu0 0.0
  %283 = vmatpush1.msra.mxu0 0.0
  %284 = vmatprep.subr.mxu0 0.0
  %285 = vmatpush1.msra.mxu0 0.0
  %286 = vmatprep.subr.mxu0 0.0
  %287 = vmatpush1.msra.mxu0 0.0
  %288 = vmatprep.subr.mxu0 0.0
  %289 = vmatpush1.msra.mxu0 0.0
  %290 = vmatprep.subr.mxu0 0.0
  %291 = vmatpush1.msra.mxu0 0.0
  %292 = vmatprep.subr.mxu0 0.0
  %293 = vmatpush1.msra.mxu0 0.0
  %294 = vmatprep.subr.mxu0 0.0
  %295 = vmatpush1.msra.mxu0 0.0
  %296 = vmatprep.subr.mxu0 0.0
  %297 = vmatpush1.msra.mxu0 0.0
  %298 = vmatprep.subr.mxu0 0.0
  %299 = vmatpush1.msra.mxu0 0.0
  %300 = vmatprep.mubr.f32.mxu0 0.0
  %301 = vmatmul.mubr.f32.gmra.mrb[0].mxu0 %v234
  %v302 = vpop.f32.mrb[0].mxu0
  %v303 = vadd.f32 0.0, %v302
  %v304 = vpop.f32.mrb[0].mxu0
  %v305 = vadd.f32 0.0, %v304
  %306 = vdwg.mxu0
  %v307 = vld [vmem:[#allocation2] sm:$0xff]
  %v308 = vadd.f32 %v307, %v303
  %v309 = vld [vmem:[#allocation2 + $0x78] sm:$0xff]
  %v310 = vadd.f32 %v309, %v305
  %v311 = vxor.u32 %v308, 2147483648
  %v312 = vmul.f32 %v311, 1.442695
  %v313 = vpow.pop %v312
  %v314 = vadd.f32 %v313, 1.0
  %v315 = vrcp.pop %v314
  %v316 = vmul.f32 1.0, %v315
  %v317 = vtanh.pop %v308
  %v318 = vxor.u32 %v310, 2147483648
  %v319 = vmul.f32 %v318, 1.442695
  %v320 = vpow.pop %v319
  %v321 = vadd.f32 %v320, 1.0
  %v322 = vrcp.pop %v321
  %v323 = vmul.f32 1.0, %v322
  %v324 = vtanh.pop %v310
  %v325 = vmul.f32 %v316, 0.0
  %327 = vrot.lane.b32.xlu0 %v317, 64
  %v328 = vpop.permute.xlu0 %327
  %v330 = vmul.f32 %v316, %v328
  %332 = vrot.lane.b32.xlu0 %v330, 32
  %v333 = vpop.permute.xlu0 %332
  %v335 = vadd.f32 %v325, %v333
  %v336 = vmul.f32 %v323, 0.0
  %338 = vrot.lane.b32.xlu0 %v324, 64
  %v339 = vpop.permute.xlu0 %338
  %v341 = vmul.f32 %v323, %v339
  %343 = vrot.lane.b32.xlu0 %v341, 32
  %v344 = vpop.permute.xlu0 %343
  %v346 = vadd.f32 %v336, %v344
  %v347 = vtanh.pop %v335
  %349 = vrot.lane.b32.xlu0 %v347, 64
  %v350 = vpop.permute.xlu0 %349
  %v352 = vmul.f32 %v316, %v350
  %v353 = vtanh.pop %v346
  %355 = vrot.lane.b32.xlu0 %v353, 64
  %v356 = vpop.permute.xlu0 %355
  %v358 = vmul.f32 %v323, %v356
  %360 = vrot.lane.b32.xlu0 %v352, 32
  %v361 = vpop.permute.xlu0 %360
  %vm363 = vcmask 261120
  %364 = vst.msk [vmem:[#allocation3] sm:$0xff] %vm363, %v361
  %366 = vrot.lane.b32.xlu0 %v358, 64
  %v367 = vpop.permute.xlu0 %366
  %vm369 = vcmask 523520
  %370 = vst.msk [vmem:[#allocation3 + $0x38] sm:$0xff] %vm369, %v367
  %v371 = vsel %vm363, %v361, %v367
  %v373 = vsel %vm232, %v371, 0
  %375 = vmatprep.subr.mxu0 %v217
  %376 = vmatpush1.msra.mxu0 %v216
  %377 = vmatprep.subr.mxu0 %v219
  %378 = vmatpush1.msra.mxu0 %v218
  %379 = vmatprep.subr.mxu0 %v221
  %380 = vmatpush1.msra.mxu0 %v220
  %381 = vmatprep.subr.mxu0 %v223
  %382 = vmatpush1.msra.mxu0 %v222
  %383 = vmatprep.subr.mxu0 %v225
  %384 = vmatpush1.msra.mxu0 %v224
  %385 = vmatprep.subr.mxu0 %v227
  %386 = vmatpush1.msra.mxu0 %v226
  %387 = vmatprep.subr.mxu0 %v229
  %388 = vmatpush1.msra.mxu0 %v228
  %389 = vmatprep.subr.mxu0 %v231
  %390 = vmatpush1.msra.mxu0 %v230
  %391 = vmatprep.subr.mxu0 0.0
  %392 = vmatpush1.msra.mxu0 0.0
  %393 = vmatprep.subr.mxu0 0.0
  %394 = vmatpush1.msra.mxu0 0.0
  %395 = vmatprep.subr.mxu0 0.0
  %396 = vmatpush1.msra.mxu0 0.0
  %397 = vmatprep.subr.mxu0 0.0
  %398 = vmatpush1.msra.mxu0 0.0
  %399 = vmatprep.subr.mxu0 0.0
  %400 = vmatpush1.msra.mxu0 0.0
  %401 = vmatprep.subr.mxu0 0.0
  %402 = vmatpush1.msra.mxu0 0.0
  %403 = vmatprep.subr.mxu0 0.0
  %404 = vmatpush1.msra.mxu0 0.0
  %405 = vmatprep.subr.mxu0 0.0
  %406 = vmatpush1.msra.mxu0 0.0
  %407 = vmatprep.subr.mxu0 0.0
  %408 = vmatpush1.msra.mxu0 0.0
  %409 = vmatprep.subr.mxu0 0.0
  %410 = vmatpush1.msra.mxu0 0.0
  %411 = vmatprep.subr.mxu0 0.0
  %412 = vmatpush1.msra.mxu0 0.0
  %413 = vmatprep.subr.mxu0 0.0
  %414 = vmatpush1.msra.mxu0 0.0
  %415 = vmatprep.subr.mxu0 0.0
  %416 = vmatpush1.msra.mxu0 0.0
  %417 = vmatprep.subr.mxu0 0.0
  %418 = vmatpush1.msra.mxu0 0.0
  %419 = vmatprep.subr.mxu0 0.0
  %420 = vmatpush1.msra.mxu0 0.0
  %421 = vmatprep.subr.mxu0 0.0
  %422 = vmatpush1.msra.mxu0 0.0
  %423 = vmatprep.subr.mxu0 0.0
  %424 = vmatpush1.msra.mxu0 0.0
  %425 = vmatprep.subr.mxu0 0.0
  %426 = vmatpush1.msra.mxu0 0.0
  %427 = vmatprep.subr.mxu0 0.0
  %428 = vmatpush1.msra.mxu0 0.0
  %429 = vmatprep.subr.mxu0 0.0
  %430 = vmatpush1.msra.mxu0 0.0
  %431 = vmatprep.subr.mxu0 0.0
  %432 = vmatpush1.msra.mxu0 0.0
  %433 = vmatprep.subr.mxu0 0.0
  %434 = vmatpush1.msra.mxu0 0.0
  %435 = vmatprep.subr.mxu0 0.0
  %436 = vmatpush1.msra.mxu0 0.0
  %437 = vmatprep.subr.mxu0 0.0
  %438 = vmatpush1.msra.mxu0 0.0
  %439 = vmatprep.mubr.f32.mxu0 0.0
  %440 = vmatmul.mubr.f32.gmra.mrb[0].mxu0 %v373
  %v441 = vpop.f32.mrb[0].mxu0
  %v442 = vadd.f32 0.0, %v441
  %v443 = vpop.f32.mrb[0].mxu0
  %v444 = vadd.f32 0.0, %v443
  %445 = vdwg.mxu0
  %v446 = vld [vmem:[#allocation2 + $0x10] sm:$0xff]
  %v447 = vadd.f32 %v446, %v442
  %v448 = vld [vmem:[#allocation2 + $0x68] sm:$0xff]
  %v449 = vadd.f32 %v448, %v444
  %v450 = vxor.u32 %v447, 2147483648
  %v451 = vmul.f32 %v450, 1.442695
  %v452 = vpow.pop %v451
  %v453 = vadd.f32 %v452, 1.0
  %v454 = vrcp.pop %v453
  %v455 = vmul.f32 1.0, %v454
  %v456 = vtanh.pop %v447
  %v457 = vxor.u32 %v449, 2147483648
  %v458 = vmul.f32 %v457, 1.442695
  %v459 = vpow.pop %v458
  %v460 = vadd.f32 %v459, 1.0
  %v461 = vrcp.pop %v460
  %v462 = vmul.f32 1.0, %v461
  %v463 = vtanh.pop %v449
  %v464 = vmul.f32 %v455, %v335
  %466 = vrot.lane.b32.xlu0 %v456, 64
  %v467 = vpop.permute.xlu0 %466
  %v469 = vmul.f32 %v455, %v467
  %471 = vrot.lane.b32.xlu0 %v469, 32
  %v472 = vpop.permute.xlu0 %471
  %v474 = vadd.f32 %v464, %v472
  %v475 = vmul.f32 %v462, %v346
  %477 = vrot.lane.b32.xlu0 %v463, 64
  %v478 = vpop.permute.xlu0 %477
  %v480 = vmul.f32 %v462, %v478
  %482 = vrot.lane.b32.xlu0 %v480, 32
  %v483 = vpop.permute.xlu0 %482
  %v485 = vadd.f32 %v475, %v483
  %v486 = vtanh.pop %v474
  %488 = vrot.lane.b32.xlu0 %v486, 64
  %v489 = vpop.permute.xlu0 %488
  %v491 = vmul.f32 %v455, %v489
  %v492 = vtanh.pop %v485
  %494 = vrot.lane.b32.xlu0 %v492, 64
  %v495 = vpop.permute.xlu0 %494
  %v497 = vmul.f32 %v462, %v495
  %499 = vrot.lane.b32.xlu0 %v491, 32
  %v500 = vpop.permute.xlu0 %499
  %502 = vst.msk [vmem:[#allocation3 + $0x8] sm:$0xff] %vm363, %v500
  %504 = vrot.lane.b32.xlu0 %v497, 64
  %v505 = vpop.permute.xlu0 %504
  %507 = vst.msk [vmem:[#allocation3 + $0x30] sm:$0xff] %vm369, %v505
  %v508 = vsel %vm363, %v500, %v505
  %v510 = vsel %vm232, %v508, 0
  %512 = vmatprep.subr.mxu0 %v217
  %513 = vmatpush1.msra.mxu0 %v216
  %514 = vmatprep.subr.mxu0 %v219
  %515 = vmatpush1.msra.mxu0 %v218
  %516 = vmatprep.subr.mxu0 %v221
  %517 = vmatpush1.msra.mxu0 %v220
  %518 = vmatprep.subr.mxu0 %v223
  %519 = vmatpush1.msra.mxu0 %v222
  %520 = vmatprep.subr.mxu0 %v225
  %521 = vmatpush1.msra.mxu0 %v224
  %522 = vmatprep.subr.mxu0 %v227
  %523 = vmatpush1.msra.mxu0 %v226
  %524 = vmatprep.subr.mxu0 %v229
  %525 = vmatpush1.msra.mxu0 %v228
  %526 = vmatprep.subr.mxu0 %v231
  %527 = vmatpush1.msra.mxu0 %v230
  %528 = vmatprep.subr.mxu0 0.0
  %529 = vmatpush1.msra.mxu0 0.0
  %530 = vmatprep.subr.mxu0 0.0
  %531 = vmatpush1.msra.mxu0 0.0
  %532 = vmatprep.subr.mxu0 0.0
  %533 = vmatpush1.msra.mxu0 0.0
  %534 = vmatprep.subr.mxu0 0.0
  %535 = vmatpush1.msra.mxu0 0.0
  %536 = vmatprep.subr.mxu0 0.0
  %537 = vmatpush1.msra.mxu0 0.0
  %538 = vmatprep.subr.mxu0 0.0
  %539 = vmatpush1.msra.mxu0 0.0
  %540 = vmatprep.subr.mxu0 0.0
  %541 = vmatpush1.msra.mxu0 0.0
  %542 = vmatprep.subr.mxu0 0.0
  %543 = vmatpush1.msra.mxu0 0.0
  %544 = vmatprep.subr.mxu0 0.0
  %545 = vmatpush1.msra.mxu0 0.0
  %546 = vmatprep.subr.mxu0 0.0
  %547 = vmatpush1.msra.mxu0 0.0
  %548 = vmatprep.subr.mxu0 0.0
  %549 = vmatpush1.msra.mxu0 0.0
  %550 = vmatprep.subr.mxu0 0.0
  %551 = vmatpush1.msra.mxu0 0.0
  %552 = vmatprep.subr.mxu0 0.0
  %553 = vmatpush1.msra.mxu0 0.0
  %554 = vmatprep.subr.mxu0 0.0
  %555 = vmatpush1.msra.mxu0 0.0
  %556 = vmatprep.subr.mxu0 0.0
  %557 = vmatpush1.msra.mxu0 0.0
  %558 = vmatprep.subr.mxu0 0.0
  %559 = vmatpush1.msra.mxu0 0.0
  %560 = vmatprep.subr.mxu0 0.0
  %561 = vmatpush1.msra.mxu0 0.0
  %562 = vmatprep.subr.mxu0 0.0
  %563 = vmatpush1.msra.mxu0 0.0
  %564 = vmatprep.subr.mxu0 0.0
  %565 = vmatpush1.msra.mxu0 0.0
  %566 = vmatprep.subr.mxu0 0.0
  %567 = vmatpush1.msra.mxu0 0.0
  %568 = vmatprep.subr.mxu0 0.0
  %569 = vmatpush1.msra.mxu0 0.0
  %570 = vmatprep.subr.mxu0 0.0
  %571 = vmatpush1.msra.mxu0 0.0
  %572 = vmatprep.subr.mxu0 0.0
  %573 = vmatpush1.msra.mxu0 0.0
  %574 = vmatprep.subr.mxu0 0.0
  %575 = vmatpush1.msra.mxu0 0.0
  %576 = vmatprep.mubr.f32.mxu0 0.0
  %577 = vmatmul.mubr.f32.gmra.mrb[0].mxu0 %v510
  %v578 = vpop.f32.mrb[0].mxu0
  %v579 = vadd.f32 0.0, %v578
  %v580 = vpop.f32.mrb[0].mxu0
  %v581 = vadd.f32 0.0, %v580
  %582 = vdwg.mxu0
  %v583 = vld [vmem:[#allocation2 + $0x20] sm:$0xff]
  %v584 = vadd.f32 %v583, %v579
  %v585 = vld [vmem:[#allocation2 + $0x58] sm:$0xff]
  %v586 = vadd.f32 %v585, %v581
  %v587 = vxor.u32 %v584, 2147483648
  %v588 = vmul.f32 %v587, 1.442695
  %v589 = vpow.pop %v588
  %v590 = vadd.f32 %v589, 1.0
  %v591 = vrcp.pop %v590
  %v592 = vmul.f32 1.0, %v591
  %v593 = vtanh.pop %v584
  %v594 = vxor.u32 %v586, 2147483648
  %v595 = vmul.f32 %v594, 1.442695
  %v596 = vpow.pop %v595
  %v597 = vadd.f32 %v596, 1.0
  %v598 = vrcp.pop %v597
  %v599 = vmul.f32 1.0, %v598
  %v600 = vtanh.pop %v586
  %v601 = vmul.f32 %v592, %v474
  %603 = vrot.lane.b32.xlu0 %v593, 64
  %v604 = vpop.permute.xlu0 %603
  %v606 = vmul.f32 %v592, %v604
  %608 = vrot.lane.b32.xlu0 %v606, 32
  %v609 = vpop.permute.xlu0 %608
  %v611 = vadd.f32 %v601, %v609
  %v612 = vmul.f32 %v599, %v485
  %614 = vrot.lane.b32.xlu0 %v600, 64
  %v615 = vpop.permute.xlu0 %614
  %v617 = vmul.f32 %v599, %v615
  %619 = vrot.lane.b32.xlu0 %v617, 32
  %v620 = vpop.permute.xlu0 %619
  %v622 = vadd.f32 %v612, %v620
  %v623 = vtanh.pop %v611
  %625 = vrot.lane.b32.xlu0 %v623, 64
  %v626 = vpop.permute.xlu0 %625
  %v628 = vmul.f32 %v592, %v626
  %v629 = vtanh.pop %v622
  %631 = vrot.lane.b32.xlu0 %v629, 64
  %v632 = vpop.permute.xlu0 %631
  %v634 = vmul.f32 %v599, %v632
  %636 = vrot.lane.b32.xlu0 %v628, 32
  %v637 = vpop.permute.xlu0 %636
  %639 = vst.msk [vmem:[#allocation3 + $0x10] sm:$0xff] %vm363, %v637
  %641 = vrot.lane.b32.xlu0 %v634, 64
  %v642 = vpop.permute.xlu0 %641
  %644 = vst.msk [vmem:[#allocation3 + $0x28] sm:$0xff] %vm369, %v642
  %v645 = vsel %vm363, %v637, %v642
  %v647 = vsel %vm232, %v645, 0
  %649 = vmatprep.subr.mxu0 %v217
  %650 = vmatpush1.msra.mxu0 %v216
  %651 = vmatprep.subr.mxu0 %v219
  %652 = vmatpush1.msra.mxu0 %v218
  %653 = vmatprep.subr.mxu0 %v221
  %654 = vmatpush1.msra.mxu0 %v220
  %655 = vmatprep.subr.mxu0 %v223
  %656 = vmatpush1.msra.mxu0 %v222
  %657 = vmatprep.subr.mxu0 %v225
  %658 = vmatpush1.msra.mxu0 %v224
  %659 = vmatprep.subr.mxu0 %v227
  %660 = vmatpush1.msra.mxu0 %v226
  %661 = vmatprep.subr.mxu0 %v229
  %662 = vmatpush1.msra.mxu0 %v228
  %663 = vmatprep.subr.mxu0 %v231
  %664 = vmatpush1.msra.mxu0 %v230
  %665 = vmatprep.subr.mxu0 0.0
  %666 = vmatpush1.msra.mxu0 0.0
  %667 = vmatprep.subr.mxu0 0.0
  %668 = vmatpush1.msra.mxu0 0.0
  %669 = vmatprep.subr.mxu0 0.0
  %670 = vmatpush1.msra.mxu0 0.0
  %671 = vmatprep.subr.mxu0 0.0
  %672 = vmatpush1.msra.mxu0 0.0
  %673 = vmatprep.subr.mxu0 0.0
  %674 = vmatpush1.msra.mxu0 0.0
  %675 = vmatprep.subr.mxu0 0.0
  %676 = vmatpush1.msra.mxu0 0.0
  %677 = vmatprep.subr.mxu0 0.0
  %678 = vmatpush1.msra.mxu0 0.0
  %679 = vmatprep.subr.mxu0 0.0
  %680 = vmatpush1.msra.mxu0 0.0
  %681 = vmatprep.subr.mxu0 0.0
  %682 = vmatpush1.msra.mxu0 0.0
  %683 = vmatprep.subr.mxu0 0.0
  %684 = vmatpush1.msra.mxu0 0.0
  %685 = vmatprep.subr.mxu0 0.0
  %686 = vmatpush1.msra.mxu0 0.0
  %687 = vmatprep.subr.mxu0 0.0
  %688 = vmatpush1.msra.mxu0 0.0
  %689 = vmatprep.subr.mxu0 0.0
  %690 = vmatpush1.msra.mxu0 0.0
  %691 = vmatprep.subr.mxu0 0.0
  %692 = vmatpush1.msra.mxu0 0.0
  %693 = vmatprep.subr.mxu0 0.0
  %694 = vmatpush1.msra.mxu0 0.0
  %695 = vmatprep.subr.mxu0 0.0
  %696 = vmatpush1.msra.mxu0 0.0
  %697 = vmatprep.subr.mxu0 0.0
  %698 = vmatpush1.msra.mxu0 0.0
  %699 = vmatprep.subr.mxu0 0.0
  %700 = vmatpush1.msra.mxu0 0.0
  %701 = vmatprep.subr.mxu0 0.0
  %702 = vmatpush1.msra.mxu0 0.0
  %703 = vmatprep.subr.mxu0 0.0
  %704 = vmatpush1.msra.mxu0 0.0
  %705 = vmatprep.subr.mxu0 0.0
  %706 = vmatpush1.msra.mxu0 0.0
  %707 = vmatprep.subr.mxu0 0.0
  %708 = vmatpush1.msra.mxu0 0.0
  %709 = vmatprep.subr.mxu0 0.0
  %710 = vmatpush1.msra.mxu0 0.0
  %711 = vmatprep.subr.mxu0 0.0
  %712 = vmatpush1.msra.mxu0 0.0
  %713 = vmatprep.mubr.f32.mxu0 0.0
  %714 = vmatmul.mubr.f32.gmra.mrb[0].mxu0 %v647
  %v715 = vpop.f32.mrb[0].mxu0
  %v716 = vadd.f32 0.0, %v715
  %v717 = vpop.f32.mrb[0].mxu0
  %v718 = vadd.f32 0.0, %v717
  %719 = vdwg.mxu0
  %v720 = vld [vmem:[#allocation2 + $0x30] sm:$0xff]
  %v721 = vadd.f32 %v720, %v716
  %v722 = vld [vmem:[#allocation2 + $0x48] sm:$0xff]
  %v723 = vadd.f32 %v722, %v718
  %v724 = vxor.u32 %v721, 2147483648
  %v725 = vmul.f32 %v724, 1.442695
  %v726 = vpow.pop %v725
  %v727 = vadd.f32 %v726, 1.0
  %v728 = vrcp.pop %v727
  %v729 = vmul.f32 1.0, %v728
  %v730 = vtanh.pop %v721
  %v731 = vxor.u32 %v723, 2147483648
  %v732 = vmul.f32 %v731, 1.442695
  %v733 = vpow.pop %v732
  %v734 = vadd.f32 %v733, 1.0
  %v735 = vrcp.pop %v734
  %v736 = vmul.f32 1.0, %v735
  %v737 = vtanh.pop %v723
  %v738 = vmul.f32 %v729, %v611
  %740 = vrot.lane.b32.xlu0 %v730, 64
  %v741 = vpop.permute.xlu0 %740
  %v743 = vmul.f32 %v729, %v741
  %745 = vrot.lane.b32.xlu0 %v743, 32
  %v746 = vpop.permute.xlu0 %745
  %v748 = vadd.f32 %v738, %v746
  %v749 = vmul.f32 %v736, %v622
  %751 = vrot.lane.b32.xlu0 %v737, 64
  %v752 = vpop.permute.xlu0 %751
  %v754 = vmul.f32 %v736, %v752
  %756 = vrot.lane.b32.xlu0 %v754, 32
  %v757 = vpop.permute.xlu0 %756
  %v759 = vadd.f32 %v749, %v757
  %v760 = vtanh.pop %v748
  %762 = vrot.lane.b32.xlu0 %v760, 64
  %v763 = vpop.permute.xlu0 %762
  %v765 = vmul.f32 %v729, %v763
  %v766 = vtanh.pop %v759
  %768 = vrot.lane.b32.xlu0 %v766, 64
  %v769 = vpop.permute.xlu0 %768
  %v771 = vmul.f32 %v736, %v769
  %773 = vrot.lane.b32.xlu0 %v765, 32
  %v774 = vpop.permute.xlu0 %773
  %776 = vst.msk [vmem:[#allocation3 + $0x18] sm:$0xff] %vm363, %v774
  %778 = vrot.lane.b32.xlu0 %v771, 64
  %v779 = vpop.permute.xlu0 %778
  %781 = vst.msk [vmem:[#allocation3 + $0x20] sm:$0xff] %vm369, %v779
  %v782 = vsel %vm363, %v774, %v779
  %v784 = vsel %vm232, %v782, 0
  %786 = vmatprep.subr.mxu0 %v217
  %787 = vmatpush1.msra.mxu0 %v216
  %788 = vmatprep.subr.mxu0 %v219
  %789 = vmatpush1.msra.mxu0 %v218
  %790 = vmatprep.subr.mxu0 %v221
  %791 = vmatpush1.msra.mxu0 %v220
  %792 = vmatprep.subr.mxu0 %v223
  %793 = vmatpush1.msra.mxu0 %v222
  %794 = vmatprep.subr.mxu0 %v225
  %795 = vmatpush1.msra.mxu0 %v224
  %796 = vmatprep.subr.mxu0 %v227
  %797 = vmatpush1.msra.mxu0 %v226
  %798 = vmatprep.subr.mxu0 %v229
  %799 = vmatpush1.msra.mxu0 %v228
  %800 = vmatprep.subr.mxu0 %v231
  %801 = vmatpush1.msra.mxu0 %v230
  %802 = vmatprep.subr.mxu0 0.0
  %803 = vmatpush1.msra.mxu0 0.0
  %804 = vmatprep.subr.mxu0 0.0
  %805 = vmatpush1.msra.mxu0 0.0
  %806 = vmatprep.subr.mxu0 0.0
  %807 = vmatpush1.msra.mxu0 0.0
  %808 = vmatprep.subr.mxu0 0.0
  %809 = vmatpush1.msra.mxu0 0.0
  %810 = vmatprep.subr.mxu0 0.0
  %811 = vmatpush1.msra.mxu0 0.0
  %812 = vmatprep.subr.mxu0 0.0
  %813 = vmatpush1.msra.mxu0 0.0
  %814 = vmatprep.subr.mxu0 0.0
  %815 = vmatpush1.msra.mxu0 0.0
  %816 = vmatprep.subr.mxu0 0.0
  %817 = vmatpush1.msra.mxu0 0.0
  %818 = vmatprep.subr.mxu0 0.0
  %819 = vmatpush1.msra.mxu0 0.0
  %820 = vmatprep.subr.mxu0 0.0
  %821 = vmatpush1.msra.mxu0 0.0
  %822 = vmatprep.subr.mxu0 0.0
  %823 = vmatpush1.msra.mxu0 0.0
  %824 = vmatprep.subr.mxu0 0.0
  %825 = vmatpush1.msra.mxu0 0.0
  %826 = vmatprep.subr.mxu0 0.0
  %827 = vmatpush1.msra.mxu0 0.0
  %828 = vmatprep.subr.mxu0 0.0
  %829 = vmatpush1.msra.mxu0 0.0
  %830 = vmatprep.subr.mxu0 0.0
  %831 = vmatpush1.msra.mxu0 0.0
  %832 = vmatprep.subr.mxu0 0.0
  %833 = vmatpush1.msra.mxu0 0.0
  %834 = vmatprep.subr.mxu0 0.0
  %835 = vmatpush1.msra.mxu0 0.0
  %836 = vmatprep.subr.mxu0 0.0
  %837 = vmatpush1.msra.mxu0 0.0
  %838 = vmatprep.subr.mxu0 0.0
  %839 = vmatpush1.msra.mxu0 0.0
  %840 = vmatprep.subr.mxu0 0.0
  %841 = vmatpush1.msra.mxu0 0.0
  %842 = vmatprep.subr.mxu0 0.0
  %843 = vmatpush1.msra.mxu0 0.0
  %844 = vmatprep.subr.mxu0 0.0
  %845 = vmatpush1.msra.mxu0 0.0
  %846 = vmatprep.subr.mxu0 0.0
  %847 = vmatpush1.msra.mxu0 0.0
  %848 = vmatprep.subr.mxu0 0.0
  %849 = vmatpush1.msra.mxu0 0.0
  %850 = vmatprep.mubr.f32.mxu0 0.0
  %851 = vmatmul.mubr.f32.gmra.mrb[0].mxu0 %v784
  %v852 = vpop.f32.mrb[0].mxu0
  %v853 = vadd.f32 0.0, %v852
  %v854 = vpop.f32.mrb[0].mxu0
  %v855 = vadd.f32 0.0, %v854
  %856 = vdwg.mxu0
  %v857 = vld [vmem:[#allocation2 + $0x40] sm:$0xff]
  %v858 = vadd.f32 %v857, %v853
  %v859 = vld [vmem:[#allocation2 + $0x38] sm:$0xff]
  %v860 = vadd.f32 %v859, %v855
  %v861 = vxor.u32 %v858, 2147483648
  %v862 = vmul.f32 %v861, 1.442695
  %v863 = vpow.pop %v862
  %v864 = vadd.f32 %v863, 1.0
  %v865 = vrcp.pop %v864
  %v866 = vmul.f32 1.0, %v865
  %v867 = vtanh.pop %v858
  %v868 = vxor.u32 %v860, 2147483648
  %v869 = vmul.f32 %v868, 1.442695
  %v870 = vpow.pop %v869
  %v871 = vadd.f32 %v870, 1.0
  %v872 = vrcp.pop %v871
  %v873 = vmul.f32 1.0, %v872
  %v874 = vtanh.pop %v860
  %v875 = vmul.f32 %v866, %v748
  %877 = vrot.lane.b32.xlu0 %v867, 64
  %v878 = vpop.permute.xlu0 %877
  %v880 = vmul.f32 %v866, %v878
  %882 = vrot.lane.b32.xlu0 %v880, 32
  %v883 = vpop.permute.xlu0 %882
  %v885 = vadd.f32 %v875, %v883
  %v886 = vmul.f32 %v873, %v759
  %888 = vrot.lane.b32.xlu0 %v874, 64
  %v889 = vpop.permute.xlu0 %888
  %v891 = vmul.f32 %v873, %v889
  %893 = vrot.lane.b32.xlu0 %v891, 32
  %v894 = vpop.permute.xlu0 %893
  %v896 = vadd.f32 %v886, %v894
  %v897 = vtanh.pop %v885
  %899 = vrot.lane.b32.xlu0 %v897, 64
  %v900 = vpop.permute.xlu0 %899
  %v902 = vmul.f32 %v866, %v900
  %v903 = vtanh.pop %v896
  %905 = vrot.lane.b32.xlu0 %v903, 64
  %v906 = vpop.permute.xlu0 %905
  %v908 = vmul.f32 %v873, %v906
  %910 = vrot.lane.b32.xlu0 %v902, 32
  %v911 = vpop.permute.xlu0 %910
  %913 = vst.msk [vmem:[#allocation3 + $0x20] sm:$0xff] %vm363, %v911
  %915 = vrot.lane.b32.xlu0 %v908, 64
  %v916 = vpop.permute.xlu0 %915
  %918 = vst.msk [vmem:[#allocation3 + $0x18] sm:$0xff] %vm369, %v916
  %v919 = vsel %vm363, %v911, %v916
  %v921 = vsel %vm232, %v919, 0
  %923 = vmatprep.subr.mxu0 %v217
  %924 = vmatpush1.msra.mxu0 %v216
  %925 = vmatprep.subr.mxu0 %v219
  %926 = vmatpush1.msra.mxu0 %v218
  %927 = vmatprep.subr.mxu0 %v221
  %928 = vmatpush1.msra.mxu0 %v220
  %929 = vmatprep.subr.mxu0 %v223
  %930 = vmatpush1.msra.mxu0 %v222
  %931 = vmatprep.subr.mxu0 %v225
  %932 = vmatpush1.msra.mxu0 %v224
  %933 = vmatprep.subr.mxu0 %v227
  %934 = vmatpush1.msra.mxu0 %v226
  %935 = vmatprep.subr.mxu0 %v229
  %936 = vmatpush1.msra.mxu0 %v228
  %937 = vmatprep.subr.mxu0 %v231
  %938 = vmatpush1.msra.mxu0 %v230
  %939 = vmatprep.subr.mxu0 0.0
  %940 = vmatpush1.msra.mxu0 0.0
  %941 = vmatprep.subr.mxu0 0.0
  %942 = vmatpush1.msra.mxu0 0.0
  %943 = vmatprep.subr.mxu0 0.0
  %944 = vmatpush1.msra.mxu0 0.0
  %945 = vmatprep.subr.mxu0 0.0
  %946 = vmatpush1.msra.mxu0 0.0
  %947 = vmatprep.subr.mxu0 0.0
  %948 = vmatpush1.msra.mxu0 0.0
  %949 = vmatprep.subr.mxu0 0.0
  %950 = vmatpush1.msra.mxu0 0.0
  %951 = vmatprep.subr.mxu0 0.0
  %952 = vmatpush1.msra.mxu0 0.0
  %953 = vmatprep.subr.mxu0 0.0
  %954 = vmatpush1.msra.mxu0 0.0
  %955 = vmatprep.subr.mxu0 0.0
  %956 = vmatpush1.msra.mxu0 0.0
  %957 = vmatprep.subr.mxu0 0.0
  %958 = vmatpush1.msra.mxu0 0.0
  %959 = vmatprep.subr.mxu0 0.0
  %960 = vmatpush1.msra.mxu0 0.0
  %961 = vmatprep.subr.mxu0 0.0
  %962 = vmatpush1.msra.mxu0 0.0
  %963 = vmatprep.subr.mxu0 0.0
  %964 = vmatpush1.msra.mxu0 0.0
  %965 = vmatprep.subr.mxu0 0.0
  %966 = vmatpush1.msra.mxu0 0.0
  %967 = vmatprep.subr.mxu0 0.0
  %968 = vmatpush1.msra.mxu0 0.0
  %969 = vmatprep.subr.mxu0 0.0
  %970 = vmatpush1.msra.mxu0 0.0
  %971 = vmatprep.subr.mxu0 0.0
  %972 = vmatpush1.msra.mxu0 0.0
  %973 = vmatprep.subr.mxu0 0.0
  %974 = vmatpush1.msra.mxu0 0.0
  %975 = vmatprep.subr.mxu0 0.0
  %976 = vmatpush1.msra.mxu0 0.0
  %977 = vmatprep.subr.mxu0 0.0
  %978 = vmatpush1.msra.mxu0 0.0
  %979 = vmatprep.subr.mxu0 0.0
  %980 = vmatpush1.msra.mxu0 0.0
  %981 = vmatprep.subr.mxu0 0.0
  %982 = vmatpush1.msra.mxu0 0.0
  %983 = vmatprep.subr.mxu0 0.0
  %984 = vmatpush1.msra.mxu0 0.0
  %985 = vmatprep.subr.mxu0 0.0
  %986 = vmatpush1.msra.mxu0 0.0
  %987 = vmatprep.mubr.f32.mxu0 0.0
  %988 = vmatmul.mubr.f32.gmra.mrb[0].mxu0 %v921
  %v989 = vpop.f32.mrb[0].mxu0
  %v990 = vadd.f32 0.0, %v989
  %v991 = vpop.f32.mrb[0].mxu0
  %v992 = vadd.f32 0.0, %v991
  %993 = vdwg.mxu0
  %v994 = vld [vmem:[#allocation2 + $0x50] sm:$0xff]
  %v995 = vadd.f32 %v994, %v990
  %v996 = vld [vmem:[#allocation2 + $0x28] sm:$0xff]
  %v997 = vadd.f32 %v996, %v992
  %v998 = vxor.u32 %v995, 2147483648
  %v999 = vmul.f32 %v998, 1.442695
  %v1000 = vpow.pop %v999
  %v1001 = vadd.f32 %v1000, 1.0
  %v1002 = vrcp.pop %v1001
  %v1003 = vmul.f32 1.0, %v1002
  %v1004 = vtanh.pop %v995
  %v1005 = vxor.u32 %v997, 2147483648
  %v1006 = vmul.f32 %v1005, 1.442695
  %v1007 = vpow.pop %v1006
  %v1008 = vadd.f32 %v1007, 1.0
  %v1009 = vrcp.pop %v1008
  %v1010 = vmul.f32 1.0, %v1009
  %v1011 = vtanh.pop %v997
  %v1012 = vmul.f32 %v1003, %v885
  %1014 = vrot.lane.b32.xlu0 %v1004, 64
  %v1015 = vpop.permute.xlu0 %1014
  %v1017 = vmul.f32 %v1003, %v1015
  %1019 = vrot.lane.b32.xlu0 %v1017, 32
  %v1020 = vpop.permute.xlu0 %1019
  %v1022 = vadd.f32 %v1012, %v1020
  %v1023 = vmul.f32 %v1010, %v896
  %1025 = vrot.lane.b32.xlu0 %v1011, 64
  %v1026 = vpop.permute.xlu0 %1025
  %v1028 = vmul.f32 %v1010, %v1026
  %1030 = vrot.lane.b32.xlu0 %v1028, 32
  %v1031 = vpop.permute.xlu0 %1030
  %v1033 = vadd.f32 %v1023, %v1031
  %v1034 = vtanh.pop %v1022
  %1036 = vrot.lane.b32.xlu0 %v1034, 64
  %v1037 = vpop.permute.xlu0 %1036
  %v1039 = vmul.f32 %v1003, %v1037
  %v1040 = vtanh.pop %v1033
  %1042 = vrot.lane.b32.xlu0 %v1040, 64
  %v1043 = vpop.permute.xlu0 %1042
  %v1045 = vmul.f32 %v1010, %v1043
  %1047 = vrot.lane.b32.xlu0 %v1039, 32
  %v1048 = vpop.permute.xlu0 %1047
  %1050 = vst.msk [vmem:[#allocation3 + $0x28] sm:$0xff] %vm363, %v1048
  %1052 = vrot.lane.b32.xlu0 %v1045, 64
  %v1053 = vpop.permute.xlu0 %1052
  %1055 = vst.msk [vmem:[#allocation3 + $0x10] sm:$0xff] %vm369, %v1053
  %v1056 = vsel %vm363, %v1048, %v1053
  %v1058 = vsel %vm232, %v1056, 0
  %1060 = vmatprep.subr.mxu0 %v217
  %1061 = vmatpush1.msra.mxu0 %v216
  %1062 = vmatprep.subr.mxu0 %v219
  %1063 = vmatpush1.msra.mxu0 %v218
  %1064 = vmatprep.subr.mxu0 %v221
  %1065 = vmatpush1.msra.mxu0 %v220
  %1066 = vmatprep.subr.mxu0 %v223
  %1067 = vmatpush1.msra.mxu0 %v222
  %1068 = vmatprep.subr.mxu0 %v225
  %1069 = vmatpush1.msra.mxu0 %v224
  %1070 = vmatprep.subr.mxu0 %v227
  %1071 = vmatpush1.msra.mxu0 %v226
  %1072 = vmatprep.subr.mxu0 %v229
  %1073 = vmatpush1.msra.mxu0 %v228
  %1074 = vmatprep.subr.mxu0 %v231
  %1075 = vmatpush1.msra.mxu0 %v230
  %1076 = vmatprep.subr.mxu0 0.0
  %1077 = vmatpush1.msra.mxu0 0.0
  %1078 = vmatprep.subr.mxu0 0.0
  %1079 = vmatpush1.msra.mxu0 0.0
  %1080 = vmatprep.subr.mxu0 0.0
  %1081 = vmatpush1.msra.mxu0 0.0
  %1082 = vmatprep.subr.mxu0 0.0
  %1083 = vmatpush1.msra.mxu0 0.0
  %1084 = vmatprep.subr.mxu0 0.0
  %1085 = vmatpush1.msra.mxu0 0.0
  %1086 = vmatprep.subr.mxu0 0.0
  %1087 = vmatpush1.msra.mxu0 0.0
  %1088 = vmatprep.subr.mxu0 0.0
  %1089 = vmatpush1.msra.mxu0 0.0
  %1090 = vmatprep.subr.mxu0 0.0
  %1091 = vmatpush1.msra.mxu0 0.0
  %1092 = vmatprep.subr.mxu0 0.0
  %1093 = vmatpush1.msra.mxu0 0.0
  %1094 = vmatprep.subr.mxu0 0.0
  %1095 = vmatpush1.msra.mxu0 0.0
  %1096 = vmatprep.subr.mxu0 0.0
  %1097 = vmatpush1.msra.mxu0 0.0
  %1098 = vmatprep.subr.mxu0 0.0
  %1099 = vmatpush1.msra.mxu0 0.0
  %1100 = vmatprep.subr.mxu0 0.0
  %1101 = vmatpush1.msra.mxu0 0.0
  %1102 = vmatprep.subr.mxu0 0.0
  %1103 = vmatpush1.msra.mxu0 0.0
  %1104 = vmatprep.subr.mxu0 0.0
  %1105 = vmatpush1.msra.mxu0 0.0
  %1106 = vmatprep.subr.mxu0 0.0
  %1107 = vmatpush1.msra.mxu0 0.0
  %1108 = vmatprep.subr.mxu0 0.0
  %1109 = vmatpush1.msra.mxu0 0.0
  %1110 = vmatprep.subr.mxu0 0.0
  %1111 = vmatpush1.msra.mxu0 0.0
  %1112 = vmatprep.subr.mxu0 0.0
  %1113 = vmatpush1.msra.mxu0 0.0
  %1114 = vmatprep.subr.mxu0 0.0
  %1115 = vmatpush1.msra.mxu0 0.0
  %1116 = vmatprep.subr.mxu0 0.0
  %1117 = vmatpush1.msra.mxu0 0.0
  %1118 = vmatprep.subr.mxu0 0.0
  %1119 = vmatpush1.msra.mxu0 0.0
  %1120 = vmatprep.subr.mxu0 0.0
  %1121 = vmatpush1.msra.mxu0 0.0
  %1122 = vmatprep.subr.mxu0 0.0
  %1123 = vmatpush1.msra.mxu0 0.0
  %1124 = vmatprep.mubr.f32.mxu0 0.0
  %1125 = vmatmul.mubr.f32.gmra.mrb[0].mxu0 %v1058
  %v1126 = vpop.f32.mrb[0].mxu0
  %v1127 = vadd.f32 0.0, %v1126
  %v1128 = vpop.f32.mrb[0].mxu0
  %v1129 = vadd.f32 0.0, %v1128
  %1130 = vdwg.mxu0
  %v1131 = vld [vmem:[#allocation2 + $0x60] sm:$0xff]
  %v1132 = vadd.f32 %v1131, %v1127
  %v1133 = vld [vmem:[#allocation2 + $0x18] sm:$0xff]
  %v1134 = vadd.f32 %v1133, %v1129
  %v1135 = vxor.u32 %v1132, 2147483648
  %v1136 = vmul.f32 %v1135, 1.442695
  %v1137 = vpow.pop %v1136
  %v1138 = vadd.f32 %v1137, 1.0
  %v1139 = vrcp.pop %v1138
  %v1140 = vmul.f32 1.0, %v1139
  %v1141 = vtanh.pop %v1132
  %v1142 = vxor.u32 %v1134, 2147483648
  %v1143 = vmul.f32 %v1142, 1.442695
  %v1144 = vpow.pop %v1143
  %v1145 = vadd.f32 %v1144, 1.0
  %v1146 = vrcp.pop %v1145
  %v1147 = vmul.f32 1.0, %v1146
  %v1148 = vtanh.pop %v1134
  %v1149 = vmul.f32 %v1140, %v1022
  %1151 = vrot.lane.b32.xlu0 %v1141, 64
  %v1152 = vpop.permute.xlu0 %1151
  %v1154 = vmul.f32 %v1140, %v1152
  %1156 = vrot.lane.b32.xlu0 %v1154, 32
  %v1157 = vpop.permute.xlu0 %1156
  %v1159 = vadd.f32 %v1149, %v1157
  %v1160 = vmul.f32 %v1147, %v1033
  %1162 = vrot.lane.b32.xlu0 %v1148, 64
  %v1163 = vpop.permute.xlu0 %1162
  %v1165 = vmul.f32 %v1147, %v1163
  %1167 = vrot.lane.b32.xlu0 %v1165, 32
  %v1168 = vpop.permute.xlu0 %1167
  %v1170 = vadd.f32 %v1160, %v1168
  %v1171 = vtanh.pop %v1159
  %1173 = vrot.lane.b32.xlu0 %v1171, 64
  %v1174 = vpop.permute.xlu0 %1173
  %v1176 = vmul.f32 %v1140, %v1174
  %v1177 = vtanh.pop %v1170
  %1179 = vrot.lane.b32.xlu0 %v1177, 64
  %v1180 = vpop.permute.xlu0 %1179
  %v1182 = vmul.f32 %v1147, %v1180
  %1184 = vrot.lane.b32.xlu0 %v1176, 32
  %v1185 = vpop.permute.xlu0 %1184
  %1187 = vst.msk [vmem:[#allocation3 + $0x30] sm:$0xff] %vm363, %v1185
  %1189 = vrot.lane.b32.xlu0 %v1182, 64
  %v1190 = vpop.permute.xlu0 %1189
  %1192 = vst.msk [vmem:[#allocation3 + $0x8] sm:$0xff] %vm369, %v1190
  %v1193 = vsel %vm363, %v1185, %v1190
  %v1195 = vsel %vm232, %v1193, 0
  %1197 = vmatprep.subr.mxu0 %v217
  %1198 = vmatpush1.msra.mxu0 %v216
  %1199 = vmatprep.subr.mxu0 %v219
  %1200 = vmatpush1.msra.mxu0 %v218
  %1201 = vmatprep.subr.mxu0 %v221
  %1202 = vmatpush1.msra.mxu0 %v220
  %1203 = vmatprep.subr.mxu0 %v223
  %1204 = vmatpush1.msra.mxu0 %v222
  %1205 = vmatprep.subr.mxu0 %v225
  %1206 = vmatpush1.msra.mxu0 %v224
  %1207 = vmatprep.subr.mxu0 %v227
  %1208 = vmatpush1.msra.mxu0 %v226
  %1209 = vmatprep.subr.mxu0 %v229
  %1210 = vmatpush1.msra.mxu0 %v228
  %1211 = vmatprep.subr.mxu0 %v231
  %1212 = vmatpush1.msra.mxu0 %v230
  %1213 = vmatprep.subr.mxu0 0.0
  %1214 = vmatpush1.msra.mxu0 0.0
  %1215 = vmatprep.subr.mxu0 0.0
  %1216 = vmatpush1.msra.mxu0 0.0
  %1217 = vmatprep.subr.mxu0 0.0
  %1218 = vmatpush1.msra.mxu0 0.0
  %1219 = vmatprep.subr.mxu0 0.0
  %1220 = vmatpush1.msra.mxu0 0.0
  %1221 = vmatprep.subr.mxu0 0.0
  %1222 = vmatpush1.msra.mxu0 0.0
  %1223 = vmatprep.subr.mxu0 0.0
  %1224 = vmatpush1.msra.mxu0 0.0
  %1225 = vmatprep.subr.mxu0 0.0
  %1226 = vmatpush1.msra.mxu0 0.0
  %1227 = vmatprep.subr.mxu0 0.0
  %1228 = vmatpush1.msra.mxu0 0.0
  %1229 = vmatprep.subr.mxu0 0.0
  %1230 = vmatpush1.msra.mxu0 0.0
  %1231 = vmatprep.subr.mxu0 0.0
  %1232 = vmatpush1.msra.mxu0 0.0
  %1233 = vmatprep.subr.mxu0 0.0
  %1234 = vmatpush1.msra.mxu0 0.0
  %1235 = vmatprep.subr.mxu0 0.0
  %1236 = vmatpush1.msra.mxu0 0.0
  %1237 = vmatprep.subr.mxu0 0.0
  %1238 = vmatpush1.msra.mxu0 0.0
  %1239 = vmatprep.subr.mxu0 0.0
  %1240 = vmatpush1.msra.mxu0 0.0
  %1241 = vmatprep.subr.mxu0 0.0
  %1242 = vmatpush1.msra.mxu0 0.0
  %1243 = vmatprep.subr.mxu0 0.0
  %1244 = vmatpush1.msra.mxu0 0.0
  %1245 = vmatprep.subr.mxu0 0.0
  %1246 = vmatpush1.msra.mxu0 0.0
  %1247 = vmatprep.subr.mxu0 0.0
  %1248 = vmatpush1.msra.mxu0 0.0
  %1249 = vmatprep.subr.mxu0 0.0
  %1250 = vmatpush1.msra.mxu0 0.0
  %1251 = vmatprep.subr.mxu0 0.0
  %1252 = vmatpush1.msra.mxu0 0.0
  %1253 = vmatprep.subr.mxu0 0.0
  %1254 = vmatpush1.msra.mxu0 0.0
  %1255 = vmatprep.subr.mxu0 0.0
  %1256 = vmatpush1.msra.mxu0 0.0
  %1257 = vmatprep.subr.mxu0 0.0
  %1258 = vmatpush1.msra.mxu0 0.0
  %1259 = vmatprep.subr.mxu0 0.0
  %1260 = vmatpush1.msra.mxu0 0.0
  %1261 = vmatprep.mubr.f32.mxu0 0.0
  %1262 = vmatmul.mubr.f32.gmra.mrb[0].mxu0 %v1195
  %v1263 = vpop.f32.mrb[0].mxu0
  %v1264 = vadd.f32 0.0, %v1263
  %v1265 = vpop.f32.mrb[0].mxu0
  %v1266 = vadd.f32 0.0, %v1265
  %1267 = vdwg.mxu0
  %v1268 = vld [vmem:[#allocation2 + $0x70] sm:$0xff]
  %v1269 = vadd.f32 %v1268, %v1264
  %v1270 = vld [vmem:[#allocation2 + $0x8] sm:$0xff]
  %v1271 = vadd.f32 %v1270, %v1266
  %v1272 = vxor.u32 %v1269, 2147483648
  %v1273 = vmul.f32 %v1272, 1.442695
  %v1274 = vpow.pop %v1273
  %v1275 = vadd.f32 %v1274, 1.0
  %v1276 = vrcp.pop %v1275
  %v1277 = vmul.f32 1.0, %v1276
  %v1278 = vtanh.pop %v1269
  %v1279 = vxor.u32 %v1271, 2147483648
  %v1280 = vmul.f32 %v1279, 1.442695
  %v1281 = vpow.pop %v1280
  %v1282 = vadd.f32 %v1281, 1.0
  %v1283 = vrcp.pop %v1282
  %v1284 = vmul.f32 1.0, %v1283
  %v1285 = vtanh.pop %v1271
  %v1286 = vmul.f32 %v1277, %v1159
  %1288 = vrot.lane.b32.xlu0 %v1278, 64
  %v1289 = vpop.permute.xlu0 %1288
  %v1291 = vmul.f32 %v1277, %v1289
  %1293 = vrot.lane.b32.xlu0 %v1291, 32
  %v1294 = vpop.permute.xlu0 %1293
  %v1296 = vadd.f32 %v1286, %v1294
  %v1297 = vmul.f32 %v1284, %v1170
  %1299 = vrot.lane.b32.xlu0 %v1285, 64
  %v1300 = vpop.permute.xlu0 %1299
  %v1302 = vmul.f32 %v1284, %v1300
  %1304 = vrot.lane.b32.xlu0 %v1302, 32
  %v1305 = vpop.permute.xlu0 %1304
  %v1307 = vadd.f32 %v1297, %v1305
  %v1308 = vtanh.pop %v1296
  %1310 = vrot.lane.b32.xlu0 %v1308, 64
  %v1311 = vpop.permute.xlu0 %1310
  %v1313 = vmul.f32 %v1277, %v1311
  %v1314 = vtanh.pop %v1307
  %1316 = vrot.lane.b32.xlu0 %v1314, 64
  %v1317 = vpop.permute.xlu0 %1316
  %v1319 = vmul.f32 %v1284, %v1317
  %1321 = vrot.lane.b32.xlu0 %v1313, 32
  %v1322 = vpop.permute.xlu0 %1321
  %1324 = vst.msk [vmem:[#allocation3 + $0x38] sm:$0xff] %vm363, %v1322
  %1326 = vrot.lane.b32.xlu0 %v1319, 64
  %v1327 = vpop.permute.xlu0 %1326
  %1329 = vst.msk [vmem:[#allocation3] sm:$0xff] %vm369, %v1327
  %v1330 = vld [vmem:[#allocation3] sm:$0xff]
  %v1331 = vld [vmem:[#allocation3 + $0x8] sm:$0xff]
  %v1332 = vld [vmem:[#allocation3 + $0x10] sm:$0xff]
  %v1333 = vld [vmem:[#allocation3 + $0x18] sm:$0xff]
  %v1334 = vld [vmem:[#allocation3 + $0x20] sm:$0xff]
  %v1335 = vld [vmem:[#allocation3 + $0x28] sm:$0xff]
  %v1336 = vld [vmem:[#allocation3 + $0x30] sm:$0xff]
  %v1337 = vld [vmem:[#allocation3 + $0x38] sm:$0xff]
  %v1338 = vld [vmem:[%s4] sm:$0xff]
  %v1339 = vld [vmem:[%s4 + $0x8] sm:$0xff]
  %v1340 = vld [vmem:[%s4 + $0x10] sm:$0xff]
  %v1341 = vld [vmem:[%s4 + $0x18] sm:$0xff]
  %v1342 = vld [vmem:[%s4 + $0x20] sm:$0xff]
  %v1343 = vld [vmem:[%s4 + $0x28] sm:$0xff]
  %v1344 = vld [vmem:[%s4 + $0x30] sm:$0xff]
  %v1345 = vld [vmem:[%s4 + $0x38] sm:$0xff]
  %v1346 = vld [vmem:[%s4 + $0x40] sm:$0xff]
  %v1347 = vld [vmem:[%s4 + $0x48] sm:$0xff]
  %v1348 = vld [vmem:[%s4 + $0x50] sm:$0xff]
  %v1349 = vld [vmem:[%s4 + $0x58] sm:$0xff]
  %v1350 = vld [vmem:[%s4 + $0x60] sm:$0xff]
  %v1351 = vld [vmem:[%s4 + $0x68] sm:$0xff]
  %v1352 = vld [vmem:[%s4 + $0x70] sm:$0xff]
  %v1353 = vld [vmem:[%s4 + $0x78] sm:$0xff]
  %v1354 = vld [vmem:[%s6] sm:$0x3]
  %v1356 = vlaneseq
  %v1357 = vshrl.u32 %v1356, 7
  %v1358 = vsub.s32 0, %v1357
  %v1359 = vrot.slane %v1354, %v1358
  %v1360 = vlaneseq
  %v1361 = vshrl.u32 %v1360, 7
  %v1362 = vsub.s32 1, %v1361
  %v1363 = vrot.slane %v1354, %v1362
  %v1367 = vsel %vm232, %v1330, 0
  %v1370 = vsel %vm232, %v1331, 0
  %v1373 = vsel %vm232, %v1332, 0
  %v1376 = vsel %vm232, %v1333, 0
  %v1379 = vsel %vm232, %v1334, 0
  %v1382 = vsel %vm232, %v1335, 0
  %v1385 = vsel %vm232, %v1336, 0
  %v1388 = vsel %vm232, %v1337, 0
  %1390 = vmatprep.subr.mxu0 %v1339
  %1391 = vmatpush1.msra.mxu0 %v1338
  %1392 = vmatprep.subr.mxu0 %v1341
  %1393 = vmatpush1.msra.mxu0 %v1340
  %1394 = vmatprep.subr.mxu0 %v1343
  %1395 = vmatpush1.msra.mxu0 %v1342
  %1396 = vmatprep.subr.mxu0 %v1345
  %1397 = vmatpush1.msra.mxu0 %v1344
  %1398 = vmatprep.subr.mxu0 %v1347
  %1399 = vmatpush1.msra.mxu0 %v1346
  %1400 = vmatprep.subr.mxu0 %v1349
  %1401 = vmatpush1.msra.mxu0 %v1348
  %1402 = vmatprep.subr.mxu0 %v1351
  %1403 = vmatpush1.msra.mxu0 %v1350
  %1404 = vmatprep.subr.mxu0 %v1353
  %1405 = vmatpush1.msra.mxu0 %v1352
  %1406 = vmatprep.subr.mxu0 0.0
  %1407 = vmatpush1.msra.mxu0 0.0
  %1408 = vmatprep.subr.mxu0 0.0
  %1409 = vmatpush1.msra.mxu0 0.0
  %1410 = vmatprep.subr.mxu0 0.0
  %1411 = vmatpush1.msra.mxu0 0.0
  %1412 = vmatprep.subr.mxu0 0.0
  %1413 = vmatpush1.msra.mxu0 0.0
  %1414 = vmatprep.subr.mxu0 0.0
  %1415 = vmatpush1.msra.mxu0 0.0
  %1416 = vmatprep.subr.mxu0 0.0
  %1417 = vmatpush1.msra.mxu0 0.0
  %1418 = vmatprep.subr.mxu0 0.0
  %1419 = vmatpush1.msra.mxu0 0.0
  %1420 = vmatprep.subr.mxu0 0.0
  %1421 = vmatpush1.msra.mxu0 0.0
  %1422 = vmatprep.subr.mxu0 0.0
  %1423 = vmatpush1.msra.mxu0 0.0
  %1424 = vmatprep.subr.mxu0 0.0
  %1425 = vmatpush1.msra.mxu0 0.0
  %1426 = vmatprep.subr.mxu0 0.0
  %1427 = vmatpush1.msra.mxu0 0.0
  %1428 = vmatprep.subr.mxu0 0.0
  %1429 = vmatpush1.msra.mxu0 0.0
  %1430 = vmatprep.subr.mxu0 0.0
  %1431 = vmatpush1.msra.mxu0 0.0
  %1432 = vmatprep.subr.mxu0 0.0
  %1433 = vmatpush1.msra.mxu0 0.0
  %1434 = vmatprep.subr.mxu0 0.0
  %1435 = vmatpush1.msra.mxu0 0.0
  %1436 = vmatprep.subr.mxu0 0.0
  %1437 = vmatpush1.msra.mxu0 0.0
  %1438 = vmatprep.subr.mxu0 0.0
  %1439 = vmatpush1.msra.mxu0 0.0
  %1440 = vmatprep.subr.mxu0 0.0
  %1441 = vmatpush1.msra.mxu0 0.0
  %1442 = vmatprep.subr.mxu0 0.0
  %1443 = vmatpush1.msra.mxu0 0.0
  %1444 = vmatprep.subr.mxu0 0.0
  %1445 = vmatpush1.msra.mxu0 0.0
  %1446 = vmatprep.subr.mxu0 0.0
  %1447 = vmatpush1.msra.mxu0 0.0
  %1448 = vmatprep.subr.mxu0 0.0
  %1449 = vmatpush1.msra.mxu0 0.0
  %1450 = vmatprep.subr.mxu0 0.0
  %1451 = vmatpush1.msra.mxu0 0.0
  %1452 = vmatprep.subr.mxu0 0.0
  %1453 = vmatpush1.msra.mxu0 0.0
  %1454 = vmatprep.mubr.f32.mxu0 0.0
  %1455 = vmatmul.mubr.f32.gmra.mrb[0].mxu0 %v1367
  %v1456 = vpop.f32.mrb[0].mxu0
  %v1457 = vadd.f32 %v1359, %v1456
  %v1458 = vpop.f32.mrb[0].mxu0
  %v1459 = vadd.f32 %v1363, %v1458
  %1460 = vmatprep.mubr.f32.mxu0 0.0
  %1461 = vmatmul.mubr.f32.gmra.mrb[0].mxu0 %v1370
  %v1462 = vpop.f32.mrb[0].mxu0
  %v1463 = vadd.f32 %v1359, %v1462
  %v1464 = vpop.f32.mrb[0].mxu0
  %v1465 = vadd.f32 %v1363, %v1464
  %1466 = vmatprep.mubr.f32.mxu0 0.0
  %1467 = vmatmul.mubr.f32.gmra.mrb[0].mxu0 %v1373
  %v1468 = vpop.f32.mrb[0].mxu0
  %v1469 = vadd.f32 %v1359, %v1468
  %v1470 = vpop.f32.mrb[0].mxu0
  %v1471 = vadd.f32 %v1363, %v1470
  %1472 = vmatprep.mubr.f32.mxu0 0.0
  %1473 = vmatmul.mubr.f32.gmra.mrb[0].mxu0 %v1376
  %v1474 = vpop.f32.mrb[0].mxu0
  %v1475 = vadd.f32 %v1359, %v1474
  %v1476 = vpop.f32.mrb[0].mxu0
  %v1477 = vadd.f32 %v1363, %v1476
  %1478 = vmatprep.mubr.f32.mxu0 0.0
  %1479 = vmatmul.mubr.f32.gmra.mrb[0].mxu0 %v1379
  %v1480 = vpop.f32.mrb[0].mxu0
  %v1481 = vadd.f32 %v1359, %v1480
  %v1482 = vpop.f32.mrb[0].mxu0
  %v1483 = vadd.f32 %v1363, %v1482
  %1484 = vmatprep.mubr.f32.mxu0 0.0
  %1485 = vmatmul.mubr.f32.gmra.mrb[0].mxu0 %v1382
  %v1486 = vpop.f32.mrb[0].mxu0
  %v1487 = vadd.f32 %v1359, %v1486
  %v1488 = vpop.f32.mrb[0].mxu0
  %v1489 = vadd.f32 %v1363, %v1488
  %1490 = vmatprep.mubr.f32.mxu0 0.0
  %1491 = vmatmul.mubr.f32.gmra.mrb[0].mxu0 %v1385
  %v1492 = vpop.f32.mrb[0].mxu0
  %v1493 = vadd.f32 %v1359, %v1492
  %v1494 = vpop.f32.mrb[0].mxu0
  %v1495 = vadd.f32 %v1363, %v1494
  %1496 = vmatprep.mubr.f32.mxu0 0.0
  %1497 = vmatmul.mubr.f32.gmra.mrb[0].mxu0 %v1388
  %v1498 = vpop.f32.mrb[0].mxu0
  %v1499 = vadd.f32 %v1359, %v1498
  %v1500 = vpop.f32.mrb[0].mxu0
  %v1501 = vadd.f32 %v1363, %v1500
  %1502 = vdwg.mxu0
  %1503 = vst [vmem:[#allocation2] sm:$0xff] %v1457
  %1504 = vst [vmem:[#allocation2 + $0x8] sm:$0xff] %v1459
  %1505 = vst [vmem:[#allocation2 + $0x10] sm:$0xff] %v1463
  %1506 = vst [vmem:[#allocation2 + $0x18] sm:$0xff] %v1465
  %1507 = vst [vmem:[#allocation2 + $0x20] sm:$0xff] %v1469
  %1508 = vst [vmem:[#allocation2 + $0x28] sm:$0xff] %v1471
  %1509 = vst [vmem:[#allocation2 + $0x30] sm:$0xff] %v1475
  %1510 = vst [vmem:[#allocation2 + $0x38] sm:$0xff] %v1477
  %1511 = vst [vmem:[#allocation2 + $0x40] sm:$0xff] %v1481
  %1512 = vst [vmem:[#allocation2 + $0x48] sm:$0xff] %v1483
  %1513 = vst [vmem:[#allocation2 + $0x50] sm:$0xff] %v1487
  %1514 = vst [vmem:[#allocation2 + $0x58] sm:$0xff] %v1489
  %1515 = vst [vmem:[#allocation2 + $0x60] sm:$0xff] %v1493
  %1516 = vst [vmem:[#allocation2 + $0x68] sm:$0xff] %v1495
  %1517 = vst [vmem:[#allocation2 + $0x70] sm:$0xff] %v1499
  %1518 = vst [vmem:[#allocation2 + $0x78] sm:$0xff] %v1501
  %v1519 = vld [vmem:[%s5] sm:$0xff]
  %v1520 = vld [vmem:[%s5 + $0x10] sm:$0xff]
  %v1521 = vld [vmem:[%s5 + $0x20] sm:$0xff]
  %v1522 = vld [vmem:[%s5 + $0x30] sm:$0xff]
  %v1523 = vsel %vm363, 0.0, 0
  %1525 = vmatprep.subr.mxu0 0.0
  %1526 = vmatpush1.msra.mxu0 %v1519
  %1527 = vmatprep.subr.mxu0 0.0
  %1528 = vmatpush1.msra.mxu0 %v1520
  %1529 = vmatprep.subr.mxu0 0.0
  %1530 = vmatpush1.msra.mxu0 %v1521
  %1531 = vmatprep.subr.mxu0 0.0
  %1532 = vmatpush1.msra.mxu0 %v1522
  %1533 = vmatprep.subr.mxu0 0.0
  %1534 = vmatpush1.msra.mxu0 0.0
  %1535 = vmatprep.subr.mxu0 0.0
  %1536 = vmatpush1.msra.mxu0 0.0
  %1537 = vmatprep.subr.mxu0 0.0
  %1538 = vmatpush1.msra.mxu0 0.0
  %1539 = vmatprep.subr.mxu0 0.0
  %1540 = vmatpush1.msra.mxu0 0.0
  %1541 = vmatprep.subr.mxu0 0.0
  %1542 = vmatpush1.msra.mxu0 0.0
  %1543 = vmatprep.subr.mxu0 0.0
  %1544 = vmatpush1.msra.mxu0 0.0
  %1545 = vmatprep.subr.mxu0 0.0
  %1546 = vmatpush1.msra.mxu0 0.0
  %1547 = vmatprep.subr.mxu0 0.0
  %1548 = vmatpush1.msra.mxu0 0.0
  %1549 = vmatprep.subr.mxu0 0.0
  %1550 = vmatpush1.msra.mxu0 0.0
  %1551 = vmatprep.subr.mxu0 0.0
  %1552 = vmatpush1.msra.mxu0 0.0
  %1553 = vmatprep.subr.mxu0 0.0
  %1554 = vmatpush1.msra.mxu0 0.0
  %1555 = vmatprep.subr.mxu0 0.0
  %1556 = vmatpush1.msra.mxu0 0.0
  %1557 = vmatprep.subr.mxu0 0.0
  %1558 = vmatpush1.msra.mxu0 0.0
  %1559 = vmatprep.subr.mxu0 0.0
  %1560 = vmatpush1.msra.mxu0 0.0
  %1561 = vmatprep.subr.mxu0 0.0
  %1562 = vmatpush1.msra.mxu0 0.0
  %1563 = vmatprep.subr.mxu0 0.0
  %1564 = vmatpush1.msra.mxu0 0.0
  %1565 = vmatprep.subr.mxu0 0.0
  %1566 = vmatpush1.msra.mxu0 0.0
  %1567 = vmatprep.subr.mxu0 0.0
  %1568 = vmatpush1.msra.mxu0 0.0
  %1569 = vmatprep.subr.mxu0 0.0
  %1570 = vmatpush1.msra.mxu0 0.0
  %1571 = vmatprep.subr.mxu0 0.0
  %1572 = vmatpush1.msra.mxu0 0.0
  %1573 = vmatprep.subr.mxu0 0.0
  %1574 = vmatpush1.msra.mxu0 0.0
  %1575 = vmatprep.subr.mxu0 0.0
  %1576 = vmatpush1.msra.mxu0 0.0
  %1577 = vmatprep.subr.mxu0 0.0
  %1578 = vmatpush1.msra.mxu0 0.0
  %1579 = vmatprep.subr.mxu0 0.0
  %1580 = vmatpush1.msra.mxu0 0.0
  %1581 = vmatprep.subr.mxu0 0.0
  %1582 = vmatpush1.msra.mxu0 0.0
  %1583 = vmatprep.subr.mxu0 0.0
  %1584 = vmatpush1.msra.mxu0 0.0
  %1585 = vmatprep.subr.mxu0 0.0
  %1586 = vmatpush1.msra.mxu0 0.0
  %1587 = vmatprep.subr.mxu0 0.0
  %1588 = vmatpush1.msra.mxu0 0.0
  %1589 = vmatprep.mubr.f32.mxu0 0.0
  %1590 = vmatmul.mubr.f32.gmra.mrb[0].mxu0 %v1523
  %v1591 = vpop.f32.mrb[0].mxu0
  %v1592 = vadd.f32 0.0, %v1591
  %v1593 = vpop.f32.mrb[0].mxu0
  %1594 = vdwg.mxu0
  %v1595 = vld [vmem:[#allocation2] sm:$0xff]
  %v1596 = vadd.f32 %v1595, %v1592
  %v1597 = vxor.u32 %v1596, 2147483648
  %v1598 = vmul.f32 %v1597, 1.442695
  %v1599 = vpow.pop %v1598
  %v1600 = vadd.f32 %v1599, 1.0
  %v1601 = vrcp.pop %v1600
  %v1602 = vmul.f32 1.0, %v1601
  %v1603 = vtanh.pop %v1596
  %v1604 = vmul.f32 %v1602, 0.0
  %1606 = vrot.lane.b32.xlu0 %v1603, 64
  %v1607 = vpop.permute.xlu0 %1606
  %v1609 = vmul.f32 %v1602, %v1607
  %1611 = vrot.lane.b32.xlu0 %v1609, 32
  %v1612 = vpop.permute.xlu0 %1611
  %v1614 = vadd.f32 %v1604, %v1612
  %v1615 = vtanh.pop %v1614
  %1617 = vrot.lane.b32.xlu0 %v1615, 64
  %v1618 = vpop.permute.xlu0 %1617
  %v1620 = vmul.f32 %v1602, %v1618
  %1622 = vrot.lane.b32.xlu0 %v1620, 32
  %v1623 = vpop.permute.xlu0 %1622
  %v1624 = vsel %vm363, %v1623, 0
  %1626 = vmatprep.subr.mxu0 0.0
  %1627 = vmatpush1.msra.mxu0 %v1519
  %1628 = vmatprep.subr.mxu0 0.0
  %1629 = vmatpush1.msra.mxu0 %v1520
  %1630 = vmatprep.subr.mxu0 0.0
  %1631 = vmatpush1.msra.mxu0 %v1521
  %1632 = vmatprep.subr.mxu0 0.0
  %1633 = vmatpush1.msra.mxu0 %v1522
  %1634 = vmatprep.subr.mxu0 0.0
  %1635 = vmatpush1.msra.mxu0 0.0
  %1636 = vmatprep.subr.mxu0 0.0
  %1637 = vmatpush1.msra.mxu0 0.0
  %1638 = vmatprep.subr.mxu0 0.0
  %1639 = vmatpush1.msra.mxu0 0.0
  %1640 = vmatprep.subr.mxu0 0.0
  %1641 = vmatpush1.msra.mxu0 0.0
  %1642 = vmatprep.subr.mxu0 0.0
  %1643 = vmatpush1.msra.mxu0 0.0
  %1644 = vmatprep.subr.mxu0 0.0
  %1645 = vmatpush1.msra.mxu0 0.0
  %1646 = vmatprep.subr.mxu0 0.0
  %1647 = vmatpush1.msra.mxu0 0.0
  %1648 = vmatprep.subr.mxu0 0.0
  %1649 = vmatpush1.msra.mxu0 0.0
  %1650 = vmatprep.subr.mxu0 0.0
  %1651 = vmatpush1.msra.mxu0 0.0
  %1652 = vmatprep.subr.mxu0 0.0
  %1653 = vmatpush1.msra.mxu0 0.0
  %1654 = vmatprep.subr.mxu0 0.0
  %1655 = vmatpush1.msra.mxu0 0.0
  %1656 = vmatprep.subr.mxu0 0.0
  %1657 = vmatpush1.msra.mxu0 0.0
  %1658 = vmatprep.subr.mxu0 0.0
  %1659 = vmatpush1.msra.mxu0 0.0
  %1660 = vmatprep.subr.mxu0 0.0
  %1661 = vmatpush1.msra.mxu0 0.0
  %1662 = vmatprep.subr.mxu0 0.0
  %1663 = vmatpush1.msra.mxu0 0.0
  %1664 = vmatprep.subr.mxu0 0.0
  %1665 = vmatpush1.msra.mxu0 0.0
  %1666 = vmatprep.subr.mxu0 0.0
  %1667 = vmatpush1.msra.mxu0 0.0
  %1668 = vmatprep.subr.mxu0 0.0
  %1669 = vmatpush1.msra.mxu0 0.0
  %1670 = vmatprep.subr.mxu0 0.0
  %1671 = vmatpush1.msra.mxu0 0.0
  %1672 = vmatprep.subr.mxu0 0.0
  %1673 = vmatpush1.msra.mxu0 0.0
  %1674 = vmatprep.subr.mxu0 0.0
  %1675 = vmatpush1.msra.mxu0 0.0
  %1676 = vmatprep.subr.mxu0 0.0
  %1677 = vmatpush1.msra.mxu0 0.0
  %1678 = vmatprep.subr.mxu0 0.0
  %1679 = vmatpush1.msra.mxu0 0.0
  %1680 = vmatprep.subr.mxu0 0.0
  %1681 = vmatpush1.msra.mxu0 0.0
  %1682 = vmatprep.subr.mxu0 0.0
  %1683 = vmatpush1.msra.mxu0 0.0
  %1684 = vmatprep.subr.mxu0 0.0
  %1685 = vmatpush1.msra.mxu0 0.0
  %1686 = vmatprep.subr.mxu0 0.0
  %1687 = vmatpush1.msra.mxu0 0.0
  %1688 = vmatprep.subr.mxu0 0.0
  %1689 = vmatpush1.msra.mxu0 0.0
  %1690 = vmatprep.mubr.f32.mxu0 0.0
  %1691 = vmatmul.mubr.f32.gmra.mrb[0].mxu0 %v1624
  %v1692 = vpop.f32.mrb[0].mxu0
  %v1693 = vadd.f32 0.0, %v1692
  %v1694 = vpop.f32.mrb[0].mxu0
  %1695 = vdwg.mxu0
  %v1696 = vld [vmem:[#allocation2 + $0x10] sm:$0xff]
  %v1697 = vadd.f32 %v1696, %v1693
  %v1698 = vxor.u32 %v1697, 2147483648
  %v1699 = vmul.f32 %v1698, 1.442695
  %v1700 = vpow.pop %v1699
  %v1701 = vadd.f32 %v1700, 1.0
  %v1702 = vrcp.pop %v1701
  %v1703 = vmul.f32 1.0, %v1702
  %v1704 = vtanh.pop %v1697
  %v1705 = vmul.f32 %v1703, %v1614
  %1707 = vrot.lane.b32.xlu0 %v1704, 64
  %v1708 = vpop.permute.xlu0 %1707
  %v1710 = vmul.f32 %v1703, %v1708
  %1712 = vrot.lane.b32.xlu0 %v1710, 32
  %v1713 = vpop.permute.xlu0 %1712
  %v1715 = vadd.f32 %v1705, %v1713
  %v1716 = vtanh.pop %v1715
  %1718 = vrot.lane.b32.xlu0 %v1716, 64
  %v1719 = vpop.permute.xlu0 %1718
  %v1721 = vmul.f32 %v1703, %v1719
  %1723 = vrot.lane.b32.xlu0 %v1721, 32
  %v1724 = vpop.permute.xlu0 %1723
  %v1725 = vsel %vm363, %v1724, 0
  %1727 = vmatprep.subr.mxu0 0.0
  %1728 = vmatpush1.msra.mxu0 %v1519
  %1729 = vmatprep.subr.mxu0 0.0
  %1730 = vmatpush1.msra.mxu0 %v1520
  %1731 = vmatprep.subr.mxu0 0.0
  %1732 = vmatpush1.msra.mxu0 %v1521
  %1733 = vmatprep.subr.mxu0 0.0
  %1734 = vmatpush1.msra.mxu0 %v1522
  %1735 = vmatprep.subr.mxu0 0.0
  %1736 = vmatpush1.msra.mxu0 0.0
  %1737 = vmatprep.subr.mxu0 0.0
  %1738 = vmatpush1.msra.mxu0 0.0
  %1739 = vmatprep.subr.mxu0 0.0
  %1740 = vmatpush1.msra.mxu0 0.0
  %1741 = vmatprep.subr.mxu0 0.0
  %1742 = vmatpush1.msra.mxu0 0.0
  %1743 = vmatprep.subr.mxu0 0.0
  %1744 = vmatpush1.msra.mxu0 0.0
  %1745 = vmatprep.subr.mxu0 0.0
  %1746 = vmatpush1.msra.mxu0 0.0
  %1747 = vmatprep.subr.mxu0 0.0
  %1748 = vmatpush1.msra.mxu0 0.0
  %1749 = vmatprep.subr.mxu0 0.0
  %1750 = vmatpush1.msra.mxu0 0.0
  %1751 = vmatprep.subr.mxu0 0.0
  %1752 = vmatpush1.msra.mxu0 0.0
  %1753 = vmatprep.subr.mxu0 0.0
  %1754 = vmatpush1.msra.mxu0 0.0
  %1755 = vmatprep.subr.mxu0 0.0
  %1756 = vmatpush1.msra.mxu0 0.0
  %1757 = vmatprep.subr.mxu0 0.0
  %1758 = vmatpush1.msra.mxu0 0.0
  %1759 = vmatprep.subr.mxu0 0.0
  %1760 = vmatpush1.msra.mxu0 0.0
  %1761 = vmatprep.subr.mxu0 0.0
  %1762 = vmatpush1.msra.mxu0 0.0
  %1763 = vmatprep.subr.mxu0 0.0
  %1764 = vmatpush1.msra.mxu0 0.0
  %1765 = vmatprep.subr.mxu0 0.0
  %1766 = vmatpush1.msra.mxu0 0.0
  %1767 = vmatprep.subr.mxu0 0.0
  %1768 = vmatpush1.msra.mxu0 0.0
  %1769 = vmatprep.subr.mxu0 0.0
  %1770 = vmatpush1.msra.mxu0 0.0
  %1771 = vmatprep.subr.mxu0 0.0
  %1772 = vmatpush1.msra.mxu0 0.0
  %1773 = vmatprep.subr.mxu0 0.0
  %1774 = vmatpush1.msra.mxu0 0.0
  %1775 = vmatprep.subr.mxu0 0.0
  %1776 = vmatpush1.msra.mxu0 0.0
  %1777 = vmatprep.subr.mxu0 0.0
  %1778 = vmatpush1.msra.mxu0 0.0
  %1779 = vmatprep.subr.mxu0 0.0
  %1780 = vmatpush1.msra.mxu0 0.0
  %1781 = vmatprep.subr.mxu0 0.0
  %1782 = vmatpush1.msra.mxu0 0.0
  %1783 = vmatprep.subr.mxu0 0.0
  %1784 = vmatpush1.msra.mxu0 0.0
  %1785 = vmatprep.subr.mxu0 0.0
  %1786 = vmatpush1.msra.mxu0 0.0
  %1787 = vmatprep.subr.mxu0 0.0
  %1788 = vmatpush1.msra.mxu0 0.0
  %1789 = vmatprep.subr.mxu0 0.0
  %1790 = vmatpush1.msra.mxu0 0.0
  %1791 = vmatprep.mubr.f32.mxu0 0.0
  %1792 = vmatmul.mubr.f32.gmra.mrb[0].mxu0 %v1725
  %v1793 = vpop.f32.mrb[0].mxu0
  %v1794 = vadd.f32 0.0, %v1793
  %v1795 = vpop.f32.mrb[0].mxu0
  %1796 = vdwg.mxu0
  %v1797 = vld [vmem:[#allocation2 + $0x20] sm:$0xff]
  %v1798 = vadd.f32 %v1797, %v1794
  %v1799 = vxor.u32 %v1798, 2147483648
  %v1800 = vmul.f32 %v1799, 1.442695
  %v1801 = vpow.pop %v1800
  %v1802 = vadd.f32 %v1801, 1.0
  %v1803 = vrcp.pop %v1802
  %v1804 = vmul.f32 1.0, %v1803
  %v1805 = vtanh.pop %v1798
  %v1806 = vmul.f32 %v1804, %v1715
  %1808 = vrot.lane.b32.xlu0 %v1805, 64
  %v1809 = vpop.permute.xlu0 %1808
  %v1811 = vmul.f32 %v1804, %v1809
  %1813 = vrot.lane.b32.xlu0 %v1811, 32
  %v1814 = vpop.permute.xlu0 %1813
  %v1816 = vadd.f32 %v1806, %v1814
  %v1817 = vtanh.pop %v1816
  %1819 = vrot.lane.b32.xlu0 %v1817, 64
  %v1820 = vpop.permute.xlu0 %1819
  %v1822 = vmul.f32 %v1804, %v1820
  %1824 = vrot.lane.b32.xlu0 %v1822, 32
  %v1825 = vpop.permute.xlu0 %1824
  %v1826 = vsel %vm363, %v1825, 0
  %1828 = vmatprep.subr.mxu0 0.0
  %1829 = vmatpush1.msra.mxu0 %v1519
  %1830 = vmatprep.subr.mxu0 0.0
  %1831 = vmatpush1.msra.mxu0 %v1520
  %1832 = vmatprep.subr.mxu0 0.0
  %1833 = vmatpush1.msra.mxu0 %v1521
  %1834 = vmatprep.subr.mxu0 0.0
  %1835 = vmatpush1.msra.mxu0 %v1522
  %1836 = vmatprep.subr.mxu0 0.0
  %1837 = vmatpush1.msra.mxu0 0.0
  %1838 = vmatprep.subr.mxu0 0.0
  %1839 = vmatpush1.msra.mxu0 0.0
  %1840 = vmatprep.subr.mxu0 0.0
  %1841 = vmatpush1.msra.mxu0 0.0
  %1842 = vmatprep.subr.mxu0 0.0
  %1843 = vmatpush1.msra.mxu0 0.0
  %1844 = vmatprep.subr.mxu0 0.0
  %1845 = vmatpush1.msra.mxu0 0.0
  %1846 = vmatprep.subr.mxu0 0.0
  %1847 = vmatpush1.msra.mxu0 0.0
  %1848 = vmatprep.subr.mxu0 0.0
  %1849 = vmatpush1.msra.mxu0 0.0
  %1850 = vmatprep.subr.mxu0 0.0
  %1851 = vmatpush1.msra.mxu0 0.0
  %1852 = vmatprep.subr.mxu0 0.0
  %1853 = vmatpush1.msra.mxu0 0.0
  %1854 = vmatprep.subr.mxu0 0.0
  %1855 = vmatpush1.msra.mxu0 0.0
  %1856 = vmatprep.subr.mxu0 0.0
  %1857 = vmatpush1.msra.mxu0 0.0
  %1858 = vmatprep.subr.mxu0 0.0
  %1859 = vmatpush1.msra.mxu0 0.0
  %1860 = vmatprep.subr.mxu0 0.0
  %1861 = vmatpush1.msra.mxu0 0.0
  %1862 = vmatprep.subr.mxu0 0.0
  %1863 = vmatpush1.msra.mxu0 0.0
  %1864 = vmatprep.subr.mxu0 0.0
  %1865 = vmatpush1.msra.mxu0 0.0
  %1866 = vmatprep.subr.mxu0 0.0
  %1867 = vmatpush1.msra.mxu0 0.0
  %1868 = vmatprep.subr.mxu0 0.0
  %1869 = vmatpush1.msra.mxu0 0.0
  %1870 = vmatprep.subr.mxu0 0.0
  %1871 = vmatpush1.msra.mxu0 0.0
  %1872 = vmatprep.subr.mxu0 0.0
  %1873 = vmatpush1.msra.mxu0 0.0
  %1874 = vmatprep.subr.mxu0 0.0
  %1875 = vmatpush1.msra.mxu0 0.0
  %1876 = vmatprep.subr.mxu0 0.0
  %1877 = vmatpush1.msra.mxu0 0.0
  %1878 = vmatprep.subr.mxu0 0.0
  %1879 = vmatpush1.msra.mxu0 0.0
  %1880 = vmatprep.subr.mxu0 0.0
  %1881 = vmatpush1.msra.mxu0 0.0
  %1882 = vmatprep.subr.mxu0 0.0
  %1883 = vmatpush1.msra.mxu0 0.0
  %1884 = vmatprep.subr.mxu0 0.0
  %1885 = vmatpush1.msra.mxu0 0.0
  %1886 = vmatprep.subr.mxu0 0.0
  %1887 = vmatpush1.msra.mxu0 0.0
  %1888 = vmatprep.subr.mxu0 0.0
  %1889 = vmatpush1.msra.mxu0 0.0
  %1890 = vmatprep.subr.mxu0 0.0
  %1891 = vmatpush1.msra.mxu0 0.0
  %1892 = vmatprep.mubr.f32.mxu0 0.0
  %1893 = vmatmul.mubr.f32.gmra.mrb[0].mxu0 %v1826
  %v1894 = vpop.f32.mrb[0].mxu0
  %v1895 = vadd.f32 0.0, %v1894
  %v1896 = vpop.f32.mrb[0].mxu0
  %1897 = vdwg.mxu0
  %v1898 = vld [vmem:[#allocation2 + $0x30] sm:$0xff]
  %v1899 = vadd.f32 %v1898, %v1895
  %v1900 = vxor.u32 %v1899, 2147483648
  %v1901 = vmul.f32 %v1900, 1.442695
  %v1902 = vpow.pop %v1901
  %v1903 = vadd.f32 %v1902, 1.0
  %v1904 = vrcp.pop %v1903
  %v1905 = vmul.f32 1.0, %v1904
  %v1906 = vtanh.pop %v1899
  %v1907 = vmul.f32 %v1905, %v1816
  %1909 = vrot.lane.b32.xlu0 %v1906, 64
  %v1910 = vpop.permute.xlu0 %1909
  %v1912 = vmul.f32 %v1905, %v1910
  %1914 = vrot.lane.b32.xlu0 %v1912, 32
  %v1915 = vpop.permute.xlu0 %1914
  %v1917 = vadd.f32 %v1907, %v1915
  %v1918 = vtanh.pop %v1917
  %1920 = vrot.lane.b32.xlu0 %v1918, 64
  %v1921 = vpop.permute.xlu0 %1920
  %v1923 = vmul.f32 %v1905, %v1921
  %1925 = vrot.lane.b32.xlu0 %v1923, 32
  %v1926 = vpop.permute.xlu0 %1925
  %v1927 = vsel %vm363, %v1926, 0
  %1929 = vmatprep.subr.mxu0 0.0
  %1930 = vmatpush1.msra.mxu0 %v1519
  %1931 = vmatprep.subr.mxu0 0.0
  %1932 = vmatpush1.msra.mxu0 %v1520
  %1933 = vmatprep.subr.mxu0 0.0
  %1934 = vmatpush1.msra.mxu0 %v1521
  %1935 = vmatprep.subr.mxu0 0.0
  %1936 = vmatpush1.msra.mxu0 %v1522
  %1937 = vmatprep.subr.mxu0 0.0
  %1938 = vmatpush1.msra.mxu0 0.0
  %1939 = vmatprep.subr.mxu0 0.0
  %1940 = vmatpush1.msra.mxu0 0.0
  %1941 = vmatprep.subr.mxu0 0.0
  %1942 = vmatpush1.msra.mxu0 0.0
  %1943 = vmatprep.subr.mxu0 0.0
  %1944 = vmatpush1.msra.mxu0 0.0
  %1945 = vmatprep.subr.mxu0 0.0
  %1946 = vmatpush1.msra.mxu0 0.0
  %1947 = vmatprep.subr.mxu0 0.0
  %1948 = vmatpush1.msra.mxu0 0.0
  %1949 = vmatprep.subr.mxu0 0.0
  %1950 = vmatpush1.msra.mxu0 0.0
  %1951 = vmatprep.subr.mxu0 0.0
  %1952 = vmatpush1.msra.mxu0 0.0
  %1953 = vmatprep.subr.mxu0 0.0
  %1954 = vmatpush1.msra.mxu0 0.0
  %1955 = vmatprep.subr.mxu0 0.0
  %1956 = vmatpush1.msra.mxu0 0.0
  %1957 = vmatprep.subr.mxu0 0.0
  %1958 = vmatpush1.msra.mxu0 0.0
  %1959 = vmatprep.subr.mxu0 0.0
  %1960 = vmatpush1.msra.mxu0 0.0
  %1961 = vmatprep.subr.mxu0 0.0
  %1962 = vmatpush1.msra.mxu0 0.0
  %1963 = vmatprep.subr.mxu0 0.0
  %1964 = vmatpush1.msra.mxu0 0.0
  %1965 = vmatprep.subr.mxu0 0.0
  %1966 = vmatpush1.msra.mxu0 0.0
  %1967 = vmatprep.subr.mxu0 0.0
  %1968 = vmatpush1.msra.mxu0 0.0
  %1969 = vmatprep.subr.mxu0 0.0
  %1970 = vmatpush1.msra.mxu0 0.0
  %1971 = vmatprep.subr.mxu0 0.0
  %1972 = vmatpush1.msra.mxu0 0.0
  %1973 = vmatprep.subr.mxu0 0.0
  %1974 = vmatpush1.msra.mxu0 0.0
  %1975 = vmatprep.subr.mxu0 0.0
  %1976 = vmatpush1.msra.mxu0 0.0
  %1977 = vmatprep.subr.mxu0 0.0
  %1978 = vmatpush1.msra.mxu0 0.0
  %1979 = vmatprep.subr.mxu0 0.0
  %1980 = vmatpush1.msra.mxu0 0.0
  %1981 = vmatprep.subr.mxu0 0.0
  %1982 = vmatpush1.msra.mxu0 0.0
  %1983 = vmatprep.subr.mxu0 0.0
  %1984 = vmatpush1.msra.mxu0 0.0
  %1985 = vmatprep.subr.mxu0 0.0
  %1986 = vmatpush1.msra.mxu0 0.0
  %1987 = vmatprep.subr.mxu0 0.0
  %1988 = vmatpush1.msra.mxu0 0.0
  %1989 = vmatprep.subr.mxu0 0.0
  %1990 = vmatpush1.msra.mxu0 0.0
  %1991 = vmatprep.subr.mxu0 0.0
  %1992 = vmatpush1.msra.mxu0 0.0
  %1993 = vmatprep.mubr.f32.mxu0 0.0
  %1994 = vmatmul.mubr.f32.gmra.mrb[0].mxu0 %v1927
  %v1995 = vpop.f32.mrb[0].mxu0
  %v1996 = vadd.f32 0.0, %v1995
  %v1997 = vpop.f32.mrb[0].mxu0
  %1998 = vdwg.mxu0
  %v1999 = vld [vmem:[#allocation2 + $0x40] sm:$0xff]
  %v2000 = vadd.f32 %v1999, %v1996
  %v2001 = vxor.u32 %v2000, 2147483648
  %v2002 = vmul.f32 %v2001, 1.442695
  %v2003 = vpow.pop %v2002
  %v2004 = vadd.f32 %v2003, 1.0
  %v2005 = vrcp.pop %v2004
  %v2006 = vmul.f32 1.0, %v2005
  %v2007 = vtanh.pop %v2000
  %v2008 = vmul.f32 %v2006, %v1917
  %2010 = vrot.lane.b32.xlu0 %v2007, 64
  %v2011 = vpop.permute.xlu0 %2010
  %v2013 = vmul.f32 %v2006, %v2011
  %2015 = vrot.lane.b32.xlu0 %v2013, 32
  %v2016 = vpop.permute.xlu0 %2015
  %v2018 = vadd.f32 %v2008, %v2016
  %v2019 = vtanh.pop %v2018
  %2021 = vrot.lane.b32.xlu0 %v2019, 64
  %v2022 = vpop.permute.xlu0 %2021
  %v2024 = vmul.f32 %v2006, %v2022
  %2026 = vrot.lane.b32.xlu0 %v2024, 32
  %v2027 = vpop.permute.xlu0 %2026
  %v2028 = vsel %vm363, %v2027, 0
  %2030 = vmatprep.subr.mxu0 0.0
  %2031 = vmatpush1.msra.mxu0 %v1519
  %2032 = vmatprep.subr.mxu0 0.0
  %2033 = vmatpush1.msra.mxu0 %v1520
  %2034 = vmatprep.subr.mxu0 0.0
  %2035 = vmatpush1.msra.mxu0 %v1521
  %2036 = vmatprep.subr.mxu0 0.0
  %2037 = vmatpush1.msra.mxu0 %v1522
  %2038 = vmatprep.subr.mxu0 0.0
  %2039 = vmatpush1.msra.mxu0 0.0
  %2040 = vmatprep.subr.mxu0 0.0
  %2041 = vmatpush1.msra.mxu0 0.0
  %2042 = vmatprep.subr.mxu0 0.0
  %2043 = vmatpush1.msra.mxu0 0.0
  %2044 = vmatprep.subr.mxu0 0.0
  %2045 = vmatpush1.msra.mxu0 0.0
  %2046 = vmatprep.subr.mxu0 0.0
  %2047 = vmatpush1.msra.mxu0 0.0
  %2048 = vmatprep.subr.mxu0 0.0
  %2049 = vmatpush1.msra.mxu0 0.0
  %2050 = vmatprep.subr.mxu0 0.0
  %2051 = vmatpush1.msra.mxu0 0.0
  %2052 = vmatprep.subr.mxu0 0.0
  %2053 = vmatpush1.msra.mxu0 0.0
  %2054 = vmatprep.subr.mxu0 0.0
  %2055 = vmatpush1.msra.mxu0 0.0
  %2056 = vmatprep.subr.mxu0 0.0
  %2057 = vmatpush1.msra.mxu0 0.0
  %2058 = vmatprep.subr.mxu0 0.0
  %2059 = vmatpush1.msra.mxu0 0.0
  %2060 = vmatprep.subr.mxu0 0.0
  %2061 = vmatpush1.msra.mxu0 0.0
  %2062 = vmatprep.subr.mxu0 0.0
  %2063 = vmatpush1.msra.mxu0 0.0
  %2064 = vmatprep.subr.mxu0 0.0
  %2065 = vmatpush1.msra.mxu0 0.0
  %2066 = vmatprep.subr.mxu0 0.0
  %2067 = vmatpush1.msra.mxu0 0.0
  %2068 = vmatprep.subr.mxu0 0.0
  %2069 = vmatpush1.msra.mxu0 0.0
  %2070 = vmatprep.subr.mxu0 0.0
  %2071 = vmatpush1.msra.mxu0 0.0
  %2072 = vmatprep.subr.mxu0 0.0
  %2073 = vmatpush1.msra.mxu0 0.0
  %2074 = vmatprep.subr.mxu0 0.0
  %2075 = vmatpush1.msra.mxu0 0.0
  %2076 = vmatprep.subr.mxu0 0.0
  %2077 = vmatpush1.msra.mxu0 0.0
  %2078 = vmatprep.subr.mxu0 0.0
  %2079 = vmatpush1.msra.mxu0 0.0
  %2080 = vmatprep.subr.mxu0 0.0
  %2081 = vmatpush1.msra.mxu0 0.0
  %2082 = vmatprep.subr.mxu0 0.0
  %2083 = vmatpush1.msra.mxu0 0.0
  %2084 = vmatprep.subr.mxu0 0.0
  %2085 = vmatpush1.msra.mxu0 0.0
  %2086 = vmatprep.subr.mxu0 0.0
  %2087 = vmatpush1.msra.mxu0 0.0
  %2088 = vmatprep.subr.mxu0 0.0
  %2089 = vmatpush1.msra.mxu0 0.0
  %2090 = vmatprep.subr.mxu0 0.0
  %2091 = vmatpush1.msra.mxu0 0.0
  %2092 = vmatprep.subr.mxu0 0.0
  %2093 = vmatpush1.msra.mxu0 0.0
  %2094 = vmatprep.mubr.f32.mxu0 0.0
  %2095 = vmatmul.mubr.f32.gmra.mrb[0].mxu0 %v2028
  %v2096 = vpop.f32.mrb[0].mxu0
  %v2097 = vadd.f32 0.0, %v2096
  %v2098 = vpop.f32.mrb[0].mxu0
  %2099 = vdwg.mxu0
  %v2100 = vld [vmem:[#allocation2 + $0x50] sm:$0xff]
  %v2101 = vadd.f32 %v2100, %v2097
  %v2102 = vxor.u32 %v2101, 2147483648
  %v2103 = vmul.f32 %v2102, 1.442695
  %v2104 = vpow.pop %v2103
  %v2105 = vadd.f32 %v2104, 1.0
  %v2106 = vrcp.pop %v2105
  %v2107 = vmul.f32 1.0, %v2106
  %v2108 = vtanh.pop %v2101
  %v2109 = vmul.f32 %v2107, %v2018
  %2111 = vrot.lane.b32.xlu0 %v2108, 64
  %v2112 = vpop.permute.xlu0 %2111
  %v2114 = vmul.f32 %v2107, %v2112
  %2116 = vrot.lane.b32.xlu0 %v2114, 32
  %v2117 = vpop.permute.xlu0 %2116
  %v2119 = vadd.f32 %v2109, %v2117
  %v2120 = vtanh.pop %v2119
  %2122 = vrot.lane.b32.xlu0 %v2120, 64
  %v2123 = vpop.permute.xlu0 %2122
  %v2125 = vmul.f32 %v2107, %v2123
  %2127 = vrot.lane.b32.xlu0 %v2125, 32
  %v2128 = vpop.permute.xlu0 %2127
  %v2129 = vsel %vm363, %v2128, 0
  %2131 = vmatprep.subr.mxu0 0.0
  %2132 = vmatpush1.msra.mxu0 %v1519
  %2133 = vmatprep.subr.mxu0 0.0
  %2134 = vmatpush1.msra.mxu0 %v1520
  %2135 = vmatprep.subr.mxu0 0.0
  %2136 = vmatpush1.msra.mxu0 %v1521
  %2137 = vmatprep.subr.mxu0 0.0
  %2138 = vmatpush1.msra.mxu0 %v1522
  %2139 = vmatprep.subr.mxu0 0.0
  %2140 = vmatpush1.msra.mxu0 0.0
  %2141 = vmatprep.subr.mxu0 0.0
  %2142 = vmatpush1.msra.mxu0 0.0
  %2143 = vmatprep.subr.mxu0 0.0
  %2144 = vmatpush1.msra.mxu0 0.0
  %2145 = vmatprep.subr.mxu0 0.0
  %2146 = vmatpush1.msra.mxu0 0.0
  %2147 = vmatprep.subr.mxu0 0.0
  %2148 = vmatpush1.msra.mxu0 0.0
  %2149 = vmatprep.subr.mxu0 0.0
  %2150 = vmatpush1.msra.mxu0 0.0
  %2151 = vmatprep.subr.mxu0 0.0
  %2152 = vmatpush1.msra.mxu0 0.0
  %2153 = vmatprep.subr.mxu0 0.0
  %2154 = vmatpush1.msra.mxu0 0.0
  %2155 = vmatprep.subr.mxu0 0.0
  %2156 = vmatpush1.msra.mxu0 0.0
  %2157 = vmatprep.subr.mxu0 0.0
  %2158 = vmatpush1.msra.mxu0 0.0
  %2159 = vmatprep.subr.mxu0 0.0
  %2160 = vmatpush1.msra.mxu0 0.0
  %2161 = vmatprep.subr.mxu0 0.0
  %2162 = vmatpush1.msra.mxu0 0.0
  %2163 = vmatprep.subr.mxu0 0.0
  %2164 = vmatpush1.msra.mxu0 0.0
  %2165 = vmatprep.subr.mxu0 0.0
  %2166 = vmatpush1.msra.mxu0 0.0
  %2167 = vmatprep.subr.mxu0 0.0
  %2168 = vmatpush1.msra.mxu0 0.0
  %2169 = vmatprep.subr.mxu0 0.0
  %2170 = vmatpush1.msra.mxu0 0.0
  %2171 = vmatprep.subr.mxu0 0.0
  %2172 = vmatpush1.msra.mxu0 0.0
  %2173 = vmatprep.subr.mxu0 0.0
  %2174 = vmatpush1.msra.mxu0 0.0
  %2175 = vmatprep.subr.mxu0 0.0
  %2176 = vmatpush1.msra.mxu0 0.0
  %2177 = vmatprep.subr.mxu0 0.0
  %2178 = vmatpush1.msra.mxu0 0.0
  %2179 = vmatprep.subr.mxu0 0.0
  %2180 = vmatpush1.msra.mxu0 0.0
  %2181 = vmatprep.subr.mxu0 0.0
  %2182 = vmatpush1.msra.mxu0 0.0
  %2183 = vmatprep.subr.mxu0 0.0
  %2184 = vmatpush1.msra.mxu0 0.0
  %2185 = vmatprep.subr.mxu0 0.0
  %2186 = vmatpush1.msra.mxu0 0.0
  %2187 = vmatprep.subr.mxu0 0.0
  %2188 = vmatpush1.msra.mxu0 0.0
  %2189 = vmatprep.subr.mxu0 0.0
  %2190 = vmatpush1.msra.mxu0 0.0
  %2191 = vmatprep.subr.mxu0 0.0
  %2192 = vmatpush1.msra.mxu0 0.0
  %2193 = vmatprep.subr.mxu0 0.0
  %2194 = vmatpush1.msra.mxu0 0.0
  %2195 = vmatprep.mubr.f32.mxu0 0.0
  %2196 = vmatmul.mubr.f32.gmra.mrb[0].mxu0 %v2129
  %v2197 = vpop.f32.mrb[0].mxu0
  %v2198 = vadd.f32 0.0, %v2197
  %v2199 = vpop.f32.mrb[0].mxu0
  %2200 = vdwg.mxu0
  %v2201 = vld [vmem:[#allocation2 + $0x60] sm:$0xff]
  %v2202 = vadd.f32 %v2201, %v2198
  %v2203 = vxor.u32 %v2202, 2147483648
  %v2204 = vmul.f32 %v2203, 1.442695
  %v2205 = vpow.pop %v2204
  %v2206 = vadd.f32 %v2205, 1.0
  %v2207 = vrcp.pop %v2206
  %v2208 = vmul.f32 1.0, %v2207
  %v2209 = vtanh.pop %v2202
  %v2210 = vmul.f32 %v2208, %v2119
  %2212 = vrot.lane.b32.xlu0 %v2209, 64
  %v2213 = vpop.permute.xlu0 %2212
  %v2215 = vmul.f32 %v2208, %v2213
  %2217 = vrot.lane.b32.xlu0 %v2215, 32
  %v2218 = vpop.permute.xlu0 %2217
  %v2220 = vadd.f32 %v2210, %v2218
  %v2221 = vtanh.pop %v2220
  %2223 = vrot.lane.b32.xlu0 %v2221, 64
  %v2224 = vpop.permute.xlu0 %2223
  %v2226 = vmul.f32 %v2208, %v2224
  %2228 = vrot.lane.b32.xlu0 %v2226, 32
  %v2229 = vpop.permute.xlu0 %2228
  %v2230 = vsel %vm363, %v2229, 0
  %2232 = vmatprep.subr.mxu0 0.0
  %2233 = vmatpush1.msra.mxu0 %v1519
  %2234 = vmatprep.subr.mxu0 0.0
  %2235 = vmatpush1.msra.mxu0 %v1520
  %2236 = vmatprep.subr.mxu0 0.0
  %2237 = vmatpush1.msra.mxu0 %v1521
  %2238 = vmatprep.subr.mxu0 0.0
  %2239 = vmatpush1.msra.mxu0 %v1522
  %2240 = vmatprep.subr.mxu0 0.0
  %2241 = vmatpush1.msra.mxu0 0.0
  %2242 = vmatprep.subr.mxu0 0.0
  %2243 = vmatpush1.msra.mxu0 0.0
  %2244 = vmatprep.subr.mxu0 0.0
  %2245 = vmatpush1.msra.mxu0 0.0
  %2246 = vmatprep.subr.mxu0 0.0
  %2247 = vmatpush1.msra.mxu0 0.0
  %2248 = vmatprep.subr.mxu0 0.0
  %2249 = vmatpush1.msra.mxu0 0.0
  %2250 = vmatprep.subr.mxu0 0.0
  %2251 = vmatpush1.msra.mxu0 0.0
  %2252 = vmatprep.subr.mxu0 0.0
  %2253 = vmatpush1.msra.mxu0 0.0
  %2254 = vmatprep.subr.mxu0 0.0
  %2255 = vmatpush1.msra.mxu0 0.0
  %2256 = vmatprep.subr.mxu0 0.0
  %2257 = vmatpush1.msra.mxu0 0.0
  %2258 = vmatprep.subr.mxu0 0.0
  %2259 = vmatpush1.msra.mxu0 0.0
  %2260 = vmatprep.subr.mxu0 0.0
  %2261 = vmatpush1.msra.mxu0 0.0
  %2262 = vmatprep.subr.mxu0 0.0
  %2263 = vmatpush1.msra.mxu0 0.0
  %2264 = vmatprep.subr.mxu0 0.0
  %2265 = vmatpush1.msra.mxu0 0.0
  %2266 = vmatprep.subr.mxu0 0.0
  %2267 = vmatpush1.msra.mxu0 0.0
  %2268 = vmatprep.subr.mxu0 0.0
  %2269 = vmatpush1.msra.mxu0 0.0
  %2270 = vmatprep.subr.mxu0 0.0
  %2271 = vmatpush1.msra.mxu0 0.0
  %2272 = vmatprep.subr.mxu0 0.0
  %2273 = vmatpush1.msra.mxu0 0.0
  %2274 = vmatprep.subr.mxu0 0.0
  %2275 = vmatpush1.msra.mxu0 0.0
  %2276 = vmatprep.subr.mxu0 0.0
  %2277 = vmatpush1.msra.mxu0 0.0
  %2278 = vmatprep.subr.mxu0 0.0
  %2279 = vmatpush1.msra.mxu0 0.0
  %2280 = vmatprep.subr.mxu0 0.0
  %2281 = vmatpush1.msra.mxu0 0.0
  %2282 = vmatprep.subr.mxu0 0.0
  %2283 = vmatpush1.msra.mxu0 0.0
  %2284 = vmatprep.subr.mxu0 0.0
  %2285 = vmatpush1.msra.mxu0 0.0
  %2286 = vmatprep.subr.mxu0 0.0
  %2287 = vmatpush1.msra.mxu0 0.0
  %2288 = vmatprep.subr.mxu0 0.0
  %2289 = vmatpush1.msra.mxu0 0.0
  %2290 = vmatprep.subr.mxu0 0.0
  %2291 = vmatpush1.msra.mxu0 0.0
  %2292 = vmatprep.subr.mxu0 0.0
  %2293 = vmatpush1.msra.mxu0 0.0
  %2294 = vmatprep.subr.mxu0 0.0
  %2295 = vmatpush1.msra.mxu0 0.0
  %2296 = vmatprep.mubr.f32.mxu0 0.0
  %2297 = vmatmul.mubr.f32.gmra.mrb[0].mxu0 %v2230
  %v2298 = vpop.f32.mrb[0].mxu0
  %v2299 = vadd.f32 0.0, %v2298
  %v2300 = vpop.f32.mrb[0].mxu0
  %2301 = vdwg.mxu0
  %v2302 = vld [vmem:[#allocation2 + $0x70] sm:$0xff]
  %v2303 = vadd.f32 %v2302, %v2299
  %v2304 = vxor.u32 %v2303, 2147483648
  %v2305 = vmul.f32 %v2304, 1.442695
  %v2306 = vpow.pop %v2305
  %v2307 = vadd.f32 %v2306, 1.0
  %v2308 = vrcp.pop %v2307
  %v2309 = vmul.f32 1.0, %v2308
  %v2310 = vtanh.pop %v2303
  %v2311 = vmul.f32 %v2309, %v2220
  %2313 = vrot.lane.b32.xlu0 %v2310, 64
  %v2314 = vpop.permute.xlu0 %2313
  %v2316 = vmul.f32 %v2309, %v2314
  %2318 = vrot.lane.b32.xlu0 %v2316, 32
  %v2319 = vpop.permute.xlu0 %2318
  %v2321 = vadd.f32 %v2311, %v2319
  %v2322 = vtanh.pop %v2321
  %2324 = vrot.lane.b32.xlu0 %v2322, 64
  %v2325 = vpop.permute.xlu0 %2324
  %v2327 = vmul.f32 %v2309, %v2325
  %v2328 = vld [vmem:[#allocation2 + $0x78] sm:$0xff]
  %v2329 = vxor.u32 %v2328, 2147483648
  %v2330 = vmul.f32 %v2329, 1.442695
  %v2331 = vpow.pop %v2330
  %v2332 = vadd.f32 %v2331, 1.0
  %v2333 = vrcp.pop %v2332
  %v2334 = vmul.f32 1.0, %v2333
  %v2335 = vtanh.pop %v2328
  %2337 = vrot.lane.b32.xlu0 %v2335, 64
  %v2338 = vpop.permute.xlu0 %2337
  %v2340 = vmul.f32 %v2334, %v2338
  %v2341 = vtanh.pop %v2340
  %2343 = vrot.lane.b32.xlu0 %v2341, 96
  %v2344 = vpop.permute.xlu0 %2343
  %v2346 = vmul.f32 %v2334, %v2344
  %2348 = vrot.lane.b32.xlu0 %v2327, 32
  %v2349 = vpop.permute.xlu0 %2348
  %2352 = vrot.lane.b32.xlu0 %v2346, 64
  %v2353 = vpop.permute.xlu0 %2352
  %v2355 = vsel %vm363, %v2349, %v2353
  %v2356 = vld [vmem:[%s7] sm:$0xff]
  %v2357 = vld [vmem:[%s7 + $0x8] sm:$0xff]
  %v2358 = vld [vmem:[%s7 + $0x10] sm:$0xff]
  %v2359 = vld [vmem:[%s7 + $0x18] sm:$0xff]
  %v2360 = vld [vmem:[%s7 + $0x20] sm:$0xff]
  %v2361 = vld [vmem:[%s7 + $0x28] sm:$0xff]
  %v2362 = vld [vmem:[%s7 + $0x30] sm:$0xff]
  %v2363 = vld [vmem:[%s7 + $0x38] sm:$0xff]
  %v2364 = vld [vmem:[%s8] sm:$0x1]
  %v2366 = vlaneseq
  %v2367 = vshrl.u32 %v2366, 7
  %v2368 = vsub.s32 0, %v2367
  %v2369 = vrot.slane %v2364, %v2368
  %v2372 = vsel %vm232, %v2355, 0
  %2374 = vmatprep.subr.mxu0 0.0
  %2375 = vmatpush1.msra.mxu0 %v2356
  %2376 = vmatprep.subr.mxu0 0.0
  %2377 = vmatpush1.msra.mxu0 %v2357
  %2378 = vmatprep.subr.mxu0 0.0
  %2379 = vmatpush1.msra.mxu0 %v2358
  %2380 = vmatprep.subr.mxu0 0.0
  %2381 = vmatpush1.msra.mxu0 %v2359
  %2382 = vmatprep.subr.mxu0 0.0
  %2383 = vmatpush1.msra.mxu0 %v2360
  %2384 = vmatprep.subr.mxu0 0.0
  %2385 = vmatpush1.msra.mxu0 %v2361
  %2386 = vmatprep.subr.mxu0 0.0
  %2387 = vmatpush1.msra.mxu0 %v2362
  %2388 = vmatprep.subr.mxu0 0.0
  %2389 = vmatpush1.msra.mxu0 %v2363
  %2390 = vmatprep.subr.mxu0 0.0
  %2391 = vmatpush1.msra.mxu0 0.0
  %2392 = vmatprep.subr.mxu0 0.0
  %2393 = vmatpush1.msra.mxu0 0.0
  %2394 = vmatprep.subr.mxu0 0.0
  %2395 = vmatpush1.msra.mxu0 0.0
  %2396 = vmatprep.subr.mxu0 0.0
  %2397 = vmatpush1.msra.mxu0 0.0
  %2398 = vmatprep.subr.mxu0 0.0
  %2399 = vmatpush1.msra.mxu0 0.0
  %2400 = vmatprep.subr.mxu0 0.0
  %2401 = vmatpush1.msra.mxu0 0.0
  %2402 = vmatprep.subr.mxu0 0.0
  %2403 = vmatpush1.msra.mxu0 0.0
  %2404 = vmatprep.subr.mxu0 0.0
  %2405 = vmatpush1.msra.mxu0 0.0
  %2406 = vmatprep.subr.mxu0 0.0
  %2407 = vmatpush1.msra.mxu0 0.0
  %2408 = vmatprep.subr.mxu0 0.0
  %2409 = vmatpush1.msra.mxu0 0.0
  %2410 = vmatprep.subr.mxu0 0.0
  %2411 = vmatpush1.msra.mxu0 0.0
  %2412 = vmatprep.subr.mxu0 0.0
  %2413 = vmatpush1.msra.mxu0 0.0
  %2414 = vmatprep.subr.mxu0 0.0
  %2415 = vmatpush1.msra.mxu0 0.0
  %2416 = vmatprep.subr.mxu0 0.0
  %2417 = vmatpush1.msra.mxu0 0.0
  %2418 = vmatprep.subr.mxu0 0.0
  %2419 = vmatpush1.msra.mxu0 0.0
  %2420 = vmatprep.subr.mxu0 0.0
  %2421 = vmatpush1.msra.mxu0 0.0
  %2422 = vmatprep.subr.mxu0 0.0
  %2423 = vmatpush1.msra.mxu0 0.0
  %2424 = vmatprep.subr.mxu0 0.0
  %2425 = vmatpush1.msra.mxu0 0.0
  %2426 = vmatprep.subr.mxu0 0.0
  %2427 = vmatpush1.msra.mxu0 0.0
  %2428 = vmatprep.subr.mxu0 0.0
  %2429 = vmatpush1.msra.mxu0 0.0
  %2430 = vmatprep.subr.mxu0 0.0
  %2431 = vmatpush1.msra.mxu0 0.0
  %2432 = vmatprep.subr.mxu0 0.0
  %2433 = vmatpush1.msra.mxu0 0.0
  %2434 = vmatprep.subr.mxu0 0.0
  %2435 = vmatpush1.msra.mxu0 0.0
  %2436 = vmatprep.subr.mxu0 0.0
  %2437 = vmatpush1.msra.mxu0 0.0
  %2438 = vmatprep.mubr.f32.mxu0 0.0
  %2439 = vmatmul.mubr.f32.gmra.mrb[0].mxu0 %v2372
  %v2440 = vpop.f32.mrb[0].mxu0
  %v2441 = vadd.f32 %v2369, %v2440
  %v2442 = vpop.f32.mrb[0].mxu0
  %2443 = vdwg.mxu0
  %v2444 = vmax.f32 %v2441, 0.0
  %v2445 = vld [vmem:[%s9] sm:$0xff]
  %v2446 = vld [vmem:[%s9 + $0x8] sm:$0xff]
  %v2447 = vld [vmem:[%s9 + $0x10] sm:$0xff]
  %v2448 = vld [vmem:[%s9 + $0x18] sm:$0xff]
  %v2449 = vld [vmem:[%s10] sm:$0x1]
  %v2451 = vlaneseq
  %v2452 = vshrl.u32 %v2451, 7
  %v2453 = vsub.s32 0, %v2452
  %v2454 = vrot.slane %v2449, %v2453
  %v2457 = vsel %vm363, %v2444, 0
  %2459 = vmatprep.subr.mxu0 0.0
  %2460 = vmatpush1.msra.mxu0 %v2445
  %2461 = vmatprep.subr.mxu0 0.0
  %2462 = vmatpush1.msra.mxu0 %v2446
  %2463 = vmatprep.subr.mxu0 0.0
  %2464 = vmatpush1.msra.mxu0 %v2447
  %2465 = vmatprep.subr.mxu0 0.0
  %2466 = vmatpush1.msra.mxu0 %v2448
  %2467 = vmatprep.subr.mxu0 0.0
  %2468 = vmatpush1.msra.mxu0 0.0
  %2469 = vmatprep.subr.mxu0 0.0
  %2470 = vmatpush1.msra.mxu0 0.0
  %2471 = vmatprep.subr.mxu0 0.0
  %2472 = vmatpush1.msra.mxu0 0.0
  %2473 = vmatprep.subr.mxu0 0.0
  %2474 = vmatpush1.msra.mxu0 0.0
  %2475 = vmatprep.subr.mxu0 0.0
  %2476 = vmatpush1.msra.mxu0 0.0
  %2477 = vmatprep.subr.mxu0 0.0
  %2478 = vmatpush1.msra.mxu0 0.0
  %2479 = vmatprep.subr.mxu0 0.0
  %2480 = vmatpush1.msra.mxu0 0.0
  %2481 = vmatprep.subr.mxu0 0.0
  %2482 = vmatpush1.msra.mxu0 0.0
  %2483 = vmatprep.subr.mxu0 0.0
  %2484 = vmatpush1.msra.mxu0 0.0
  %2485 = vmatprep.subr.mxu0 0.0
  %2486 = vmatpush1.msra.mxu0 0.0
  %2487 = vmatprep.subr.mxu0 0.0
  %2488 = vmatpush1.msra.mxu0 0.0
  %2489 = vmatprep.subr.mxu0 0.0
  %2490 = vmatpush1.msra.mxu0 0.0
  %2491 = vmatprep.subr.mxu0 0.0
  %2492 = vmatpush1.msra.mxu0 0.0
  %2493 = vmatprep.subr.mxu0 0.0
  %2494 = vmatpush1.msra.mxu0 0.0
  %2495 = vmatprep.subr.mxu0 0.0
  %2496 = vmatpush1.msra.mxu0 0.0
  %2497 = vmatprep.subr.mxu0 0.0
  %2498 = vmatpush1.msra.mxu0 0.0
  %2499 = vmatprep.subr.mxu0 0.0
  %2500 = vmatpush1.msra.mxu0 0.0
  %2501 = vmatprep.subr.mxu0 0.0
  %2502 = vmatpush1.msra.mxu0 0.0
  %2503 = vmatprep.subr.mxu0 0.0
  %2504 = vmatpush1.msra.mxu0 0.0
  %2505 = vmatprep.subr.mxu0 0.0
  %2506 = vmatpush1.msra.mxu0 0.0
  %2507 = vmatprep.subr.mxu0 0.0
  %2508 = vmatpush1.msra.mxu0 0.0
  %2509 = vmatprep.subr.mxu0 0.0
  %2510 = vmatpush1.msra.mxu0 0.0
  %2511 = vmatprep.subr.mxu0 0.0
  %2512 = vmatpush1.msra.mxu0 0.0
  %2513 = vmatprep.subr.mxu0 0.0
  %2514 = vmatpush1.msra.mxu0 0.0
  %2515 = vmatprep.subr.mxu0 0.0
  %2516 = vmatpush1.msra.mxu0 0.0
  %2517 = vmatprep.subr.mxu0 0.0
  %2518 = vmatpush1.msra.mxu0 0.0
  %2519 = vmatprep.subr.mxu0 0.0
  %2520 = vmatpush1.msra.mxu0 0.0
  %2521 = vmatprep.subr.mxu0 0.0
  %2522 = vmatpush1.msra.mxu0 0.0
  %2523 = vmatprep.mubr.f32.mxu0 0.0
  %2524 = vmatmul.mubr.f32.gmra.mrb[0].mxu0 %v2457
  %v2525 = vpop.f32.mrb[0].mxu0
  %v2526 = vadd.f32 %v2454, %v2525
  %v2527 = vpop.f32.mrb[0].mxu0
  %2528 = vdwg.mxu0
  %2529 = vst [vmem:[%s11] sm:$0xff] %v2526
  // Predicated region
  $region46: #{lstm_model_forward.1} parent=0 // pred_check
    _
  $region47: #{lstm_model_forward.1} parent=0 // pred_check_branch
    %2531 = sbr.rel (0) target = $region49
  $region48: #{lstm_model_forward.1} parent=0 // pred_region
    _
  $region49: #{lstm_model_forward.1} parent=0 // pred_fallthru
    _
  // Predicated region
  $region50: #{lstm_model_forward.1} parent=0 // pred_check
    _
  $region51: #{lstm_model_forward.1} parent=0 // pred_check_branch
    %2533 = sbr.rel (0) target = $region53
  $region52: #{lstm_model_forward.1} parent=0 // pred_region
    _
  $region53: #{lstm_model_forward.1} parent=0 // pred_fallthru
    _

</llo_original>
